<compile_context>
chip_gen: v7x
topology: tpu7x:2x2x1
jax: 0.10.0
libtpu: 0.0.40
codegen_flags: <defaults>
</compile_context>

<pallas_src>
import functools

import jax
import jax.numpy as jnp
import numpy as np
from jax import lax
from jax.experimental import pallas as pl
from jax.experimental.pallas import tpu as pltpu

K_ACTIVE = 10          # KWinnersTakeAll k_active (scaled down for small demo shapes)
RECURRENT_COEF = 1.0   # AreaRNN default recurrent_coef
P_SYNAPSE = 0.05       # AreaRNN default synapse probability


# ---------------------------------------------------------------------------
# Kernel helpers
# ---------------------------------------------------------------------------
def _kwta_row(z, idx_beats, k_active):
    """k-winners-take-all on a (1, n) f32 row -> (1, n) f32 with exactly k ones.

    Pairwise rank: beats[p, q] == "element p outranks element q" (strictly
    greater value, or equal value with lower index -> stable top-k tie-break).
    rank[q] = number of elements that beat q; winner iff rank < k.
    idx_beats is the precomputed (n, n) bool matrix p_idx < q_idx (hoisted out
    of the per-area loop by the caller).
    O(n^2) VPU compares — fine for n <= ~256 (16 f32 vregs per compare at n=128).
    """
    z_col = jnp.transpose(z)                                        # (n, 1)
    beats = (z_col > z) | ((z_col == z) & idx_beats)                # (n, n) bool
    # Sublane-axis reduce (axis 0) is the cheaper XLU path.
    rank = jnp.sum(beats.astype(jnp.int32), axis=0, keepdims=True)  # (1, n)
    return (rank < k_active).astype(jnp.float32)


def _areas_kernel(w_ref, v_ref, out_ref, *, k_active):
    """One grid step == A_BLK areas.

    w_ref   : (A_BLK, OUT, K) bf16   packed [W_in | W_rec]  (or just W_in)
    v_ref   : (A_BLK, 1,   K) bf16   packed [x | coef*y]    (or just x)
    out_ref : (A_BLK, OUT)    f32    kWTA outputs, one row per area
    """
    a_blk, n = out_ref.shape

    # Hoisted loop-invariant tie-break matrix (built once per grid step).
    p_idx = lax.broadcasted_iota(jnp.int32, (n, n), 0)
    q_idx = lax.broadcasted_iota(jnp.int32, (n, n), 1)
    idx_beats = p_idx < q_idx

    rows = []
    for a in range(a_blk):  # static unroll, a_blk <= 8
        # Fused matvec on the MXU: (1, K) x (OUT, K) contracted on K -> (1, OUT),
        # bf16 operands, f32 accumulation.
        z = lax.dot_general(v_ref[a], w_ref[a],
                            (((1,), (1,)), ((), ())),
                            preferred_element_type=jnp.float32)
        rows.append(_kwta_row(z, idx_beats, k_active))
    # Single sublane/lane-dense store of the whole (A_BLK, OUT) tile.
    out_ref[...] = jnp.concatenate(rows, axis=0)


# ---------------------------------------------------------------------------
# Wrapper
# ---------------------------------------------------------------------------
def pack_area_stack_weights(w_in, w_rec):
    """One-time packing of per-area weights into a bf16 slab [W_in | W_rec].

    w_in  : (A, OUT, IN)  f32
    w_rec : (A, OUT, OUT) f32
    -> (A, OUT, IN + OUT) bf16
    """
    return jnp.concatenate([w_in, w_rec], axis=-1).astype(jnp.bfloat16)


def area_stack_forward(w_packed, xs_stim, y_latent=None, *,
                       k_active=K_ACTIVE, recurrent_coef=RECURRENT_COEF):
    """AreaStack.forward (eval mode).

    w_packed : (A, OUT, IN+OUT) bf16  from pack_area_stack_weights
    xs_stim  : (A, IN)                stimulus per area
    y_latent : (A, OUT) or None       previous latent per area (None = skipped)
    returns  : (A, OUT) f32 stacked kWTA outputs (use list(out) for the
               per-area list the torch module returns).
    """
    A, OUT, k_total = w_packed.shape
    IN = k_total - OUT

    if y_latent is None:
        # No-recurrence fast path: only read the W_in columns of the slab and
        # skip the recurrent half of the contraction entirely.
        k_eff = IN
        v = xs_stim.astype(jnp.bfloat16).reshape(A, 1, IN)
    else:
        # Fold recurrent_coef into y and fuse the two matvecs into one.
        k_eff = k_total
        xy = jnp.concatenate(
            [xs_stim.astype(jnp.float32),
             recurrent_coef * y_latent.astype(jnp.float32)], axis=-1)
        v = xy.astype(jnp.bfloat16).reshape(A, 1, k_total)

    # 8 areas per grid step when possible (sublane-dense output tile, even grid
    # length for v7x megacore when A is a multiple of 16); otherwise one step.
    a_blk = 8 if A % 8 == 0 else A
    grid = (A // a_blk,)

    out = pl.pallas_call(
        functools.partial(_areas_kernel, k_active=k_active),
        out_shape=jax.ShapeDtypeStruct((A, OUT), jnp.float32),
        grid=grid,
        in_specs=[
            pl.BlockSpec((a_blk, OUT, k_eff), lambda g: (g, 0, 0)),
            pl.BlockSpec((a_blk, 1, k_eff), lambda g: (g, 0, 0)),
        ],
        out_specs=pl.BlockSpec((a_blk, OUT), lambda g: (g, 0)),
        compiler_params=pltpu.CompilerParams(
            dimension_semantics=("parallel",)),
    )(w_packed, v)
    return out


# ---------------------------------------------------------------------------
# Deterministic parameter construction (AreaRNN.__init__: Bernoulli(p) 0/1
# matrices, then per-row normalization so pre-synaptic sums == 1.0).
# ---------------------------------------------------------------------------
def _make_area_weights(key, out_features, in_features, p_synapse):
    k1, k2 = jax.random.split(key)
    w_in = jax.random.bernoulli(k1, p_synapse, (out_features, in_features))
    w_rec = jax.random.bernoulli(k2, p_synapse, (out_features, out_features))
    w_in = w_in.astype(jnp.float32)
    w_rec = w_rec.astype(jnp.float32)
    w_in = w_in / jnp.maximum(w_in.sum(axis=1, keepdims=True), 1.0)
    w_rec = w_rec / jnp.maximum(w_rec.sum(axis=1, keepdims=True), 1.0)
    return w_in, w_rec


def _to_f64(x):
    return np.asarray(jnp.asarray(x, jnp.float32), dtype=np.float64)


if __name__ == "__main__":
    N_AREAS = 16
    IN_FEATURES = 128
    OUT_FEATURES = 128

    key = jax.random.PRNGKey(0)
    k_w, k_x, k_y = jax.random.split(key, 3)

    w_in_list, w_rec_list = [], []
    for k_area in jax.random.split(k_w, N_AREAS):
        wi, wr = _make_area_weights(k_area, OUT_FEATURES, IN_FEATURES, P_SYNAPSE)
        w_in_list.append(wi)
        w_rec_list.append(wr)
    w_in = jnp.stack(w_in_list)       # (A, OUT, IN)
    w_rec = jnp.stack(w_rec_list)     # (A, OUT, OUT)
    w_packed = pack_area_stack_weights(w_in, w_rec)   # (A, OUT, IN+OUT) bf16

    xs_stim = jax.random.normal(k_x, (N_AREAS, IN_FEATURES), jnp.float32)
    y_latent = jax.random.bernoulli(
        k_y, 0.1, (N_AREAS, OUT_FEATURES)).astype(jnp.float32)

    # Both call patterns: with recurrence and the y_latent=None fast path.
    y_rec = jax.block_until_ready(
        area_stack_forward(w_packed, xs_stim, y_latent))
    y_norec = jax.block_until_ready(
        area_stack_forward(w_packed, xs_stim, None))

    # ---- correctness check against a float64 reference on the same
    # bf16-quantized operands (winner set checked via top-k threshold band,
    # since bf16 weights make bit-exact equality with an f32 torch ref moot).
    w64 = _to_f64(w_packed)                                     # (A, OUT, IN+OUT)
    v64_rec = _to_f64(jnp.concatenate(
        [xs_stim, RECURRENT_COEF * y_latent], axis=-1).astype(jnp.bfloat16))
    v64_norec = _to_f64(xs_stim.astype(jnp.bfloat16))

    def check(y_out, w64_slab, v64):
        y_np = np.asarray(y_out)
        for a in range(N_AREAS):
            winners = np.flatnonzero(y_np[a] == 1.0)
            assert winners.size == K_ACTIVE, "kWTA did not keep exactly k winners"
            assert np.all((y_np[a] == 0.0) | (y_np[a] == 1.0)), "non-binary output"
            z_ref = w64_slab[a] @ v64[a]
            kth = np.sort(z_ref)[::-1][K_ACTIVE - 1]
            assert z_ref[winners].min() >= kth - 1e-4, "winner outside top-k band"

    check(y_rec, w64, v64_rec)
    check(y_norec, w64[:, :, :IN_FEATURES], v64_norec)

    print("KERNEL_OK")
</pallas_src>

<mosaic_0001>
module attributes {stable_mosaic.version = 11 : i64} {
  func.func @_areas_kernel(%arg0: i32, %arg1: memref<8x128x256xbf16, #tpu.memory_space<vmem>>, %arg2: memref<8x1x256xbf16, #tpu.memory_space<vmem>>, %arg3: memref<8x128xf32, #tpu.memory_space<vmem>>) attributes {dimension_semantics = [#tpu.dimension_semantics<parallel>], iteration_bounds = array<i64: 2>, scalar_prefetch = 0 : i64, scratch_operands = 0 : i64, tpu.core_type = #tpu.core_type<tc>, window_params = [{transform_indices = @transform_0, window_bounds = array<i64: 8, 128, 256>}, {transform_indices = @transform_1, window_bounds = array<i64: 8, 1, 256>}, {transform_indices = @transform_2, window_bounds = array<i64: 8, 128>}]} {
    %0 = tpu.iota {dimensions = array<i32: 0>} : vector<128x128xi32>
    %1 = tpu.iota {dimensions = array<i32: 1>} : vector<128x128xi32>
    %2 = arith.cmpi slt, %0, %1 : vector<128x128xi32>
    %c0 = arith.constant 0 : index
    %c0_0 = arith.constant 0 : index
    %c0_1 = arith.constant 0 : index
    %3 = vector.load %arg2[%c0, %c0_0, %c0_1] : memref<8x1x256xbf16, #tpu.memory_space<vmem>>, vector<1x1x256xbf16>
    %4 = vector.shape_cast %3 : vector<1x1x256xbf16> to vector<1x256xbf16>
    %c0_2 = arith.constant 0 : index
    %c0_3 = arith.constant 0 : index
    %c0_4 = arith.constant 0 : index
    %5 = vector.load %arg1[%c0_2, %c0_3, %c0_4] : memref<8x128x256xbf16, #tpu.memory_space<vmem>>, vector<1x128x256xbf16>
    %6 = vector.shape_cast %5 : vector<1x128x256xbf16> to vector<128x256xbf16>
    %cst = arith.constant dense<0.000000e+00> : vector<1x128xf32>
    %7 = tpu.matmul %4, %6, %cst {dimension_numbers = #tpu.dot_dimension_numbers<[1], [1], [0], [0], [0, 0, 1, 0], [], []>} : vector<1x256xbf16>, vector<128x256xbf16>, vector<1x128xf32> -> vector<1x128xf32>
    %8 = tpu.transpose %7, [1, 0] : vector<1x128xf32> -> vector<128x1xf32>
    %9 = vector.broadcast %8 : vector<128x1xf32> to vector<128x128xf32>
    %10 = vector.broadcast %7 : vector<1x128xf32> to vector<128x128xf32>
    %11 = arith.cmpf ogt, %9, %10 : vector<128x128xf32>
    %12 = vector.broadcast %8 : vector<128x1xf32> to vector<128x128xf32>
    %13 = vector.broadcast %7 : vector<1x128xf32> to vector<128x128xf32>
    %14 = arith.cmpf oeq, %12, %13 : vector<128x128xf32>
    %15 = arith.andi %14, %2 : vector<128x128xi1>
    %16 = arith.ori %11, %15 : vector<128x128xi1>
    %17 = arith.extui %16 : vector<128x128xi1> to vector<128x128xi32>
    %cst_5 = arith.constant dense<0> : vector<128xi32>
    %18 = vector.multi_reduction <add>, %17, %cst_5 [0] : vector<128x128xi32> to vector<128xi32>
    %19 = vector.shape_cast %18 : vector<128xi32> to vector<1x128xi32>
    %c10_i32 = arith.constant 10 : i32
    %20 = vector.broadcast %c10_i32 : i32 to vector<1x128xi32>
    %21 = arith.cmpi slt, %19, %20 : vector<1x128xi32>
    %22 = arith.extui %21 : vector<1x128xi1> to vector<1x128xi32>
    %23 = arith.sitofp %22 : vector<1x128xi32> to vector<1x128xf32>
    %c1 = arith.constant 1 : index
    %c0_6 = arith.constant 0 : index
    %c0_7 = arith.constant 0 : index
    %24 = vector.load %arg2[%c1, %c0_6, %c0_7] : memref<8x1x256xbf16, #tpu.memory_space<vmem>>, vector<1x1x256xbf16>
    %25 = vector.shape_cast %24 : vector<1x1x256xbf16> to vector<1x256xbf16>
    %c1_8 = arith.constant 1 : index
    %c0_9 = arith.constant 0 : index
    %c0_10 = arith.constant 0 : index
    %26 = vector.load %arg1[%c1_8, %c0_9, %c0_10] : memref<8x128x256xbf16, #tpu.memory_space<vmem>>, vector<1x128x256xbf16>
    %27 = vector.shape_cast %26 : vector<1x128x256xbf16> to vector<128x256xbf16>
    %cst_11 = arith.constant dense<0.000000e+00> : vector<1x128xf32>
    %28 = tpu.matmul %25, %27, %cst_11 {dimension_numbers = #tpu.dot_dimension_numbers<[1], [1], [0], [0], [0, 0, 1, 0], [], []>} : vector<1x256xbf16>, vector<128x256xbf16>, vector<1x128xf32> -> vector<1x128xf32>
    %29 = tpu.transpose %28, [1, 0] : vector<1x128xf32> -> vector<128x1xf32>
    %30 = vector.broadcast %29 : vector<128x1xf32> to vector<128x128xf32>
    %31 = vector.broadcast %28 : vector<1x128xf32> to vector<128x128xf32>
    %32 = arith.cmpf ogt, %30, %31 : vector<128x128xf32>
    %33 = vector.broadcast %29 : vector<128x1xf32> to vector<128x128xf32>
    %34 = vector.broadcast %28 : vector<1x128xf32> to vector<128x128xf32>
    %35 = arith.cmpf oeq, %33, %34 : vector<128x128xf32>
    %36 = arith.andi %35, %2 : vector<128x128xi1>
    %37 = arith.ori %32, %36 : vector<128x128xi1>
    %38 = arith.extui %37 : vector<128x128xi1> to vector<128x128xi32>
    %cst_12 = arith.constant dense<0> : vector<128xi32>
    %39 = vector.multi_reduction <add>, %38, %cst_12 [0] : vector<128x128xi32> to vector<128xi32>
    %40 = vector.shape_cast %39 : vector<128xi32> to vector<1x128xi32>
    %c10_i32_13 = arith.constant 10 : i32
    %41 = vector.broadcast %c10_i32_13 : i32 to vector<1x128xi32>
    %42 = arith.cmpi slt, %40, %41 : vector<1x128xi32>
    %43 = arith.extui %42 : vector<1x128xi1> to vector<1x128xi32>
    %44 = arith.sitofp %43 : vector<1x128xi32> to vector<1x128xf32>
    %c2 = arith.constant 2 : index
    %c0_14 = arith.constant 0 : index
    %c0_15 = arith.constant 0 : index
    %45 = vector.load %arg2[%c2, %c0_14, %c0_15] : memref<8x1x256xbf16, #tpu.memory_space<vmem>>, vector<1x1x256xbf16>
    %46 = vector.shape_cast %45 : vector<1x1x256xbf16> to vector<1x256xbf16>
    %c2_16 = arith.constant 2 : index
    %c0_17 = arith.constant 0 : index
    %c0_18 = arith.constant 0 : index
    %47 = vector.load %arg1[%c2_16, %c0_17, %c0_18] : memref<8x128x256xbf16, #tpu.memory_space<vmem>>, vector<1x128x256xbf16>
    %48 = vector.shape_cast %47 : vector<1x128x256xbf16> to vector<128x256xbf16>
    %cst_19 = arith.constant dense<0.000000e+00> : vector<1x128xf32>
    %49 = tpu.matmul %46, %48, %cst_19 {dimension_numbers = #tpu.dot_dimension_numbers<[1], [1], [0], [0], [0, 0, 1, 0], [], []>} : vector<1x256xbf16>, vector<128x256xbf16>, vector<1x128xf32> -> vector<1x128xf32>
    %50 = tpu.transpose %49, [1, 0] : vector<1x128xf32> -> vector<128x1xf32>
    %51 = vector.broadcast %50 : vector<128x1xf32> to vector<128x128xf32>
    %52 = vector.broadcast %49 : vector<1x128xf32> to vector<128x128xf32>
    %53 = arith.cmpf ogt, %51, %52 : vector<128x128xf32>
    %54 = vector.broadcast %50 : vector<128x1xf32> to vector<128x128xf32>
    %55 = vector.broadcast %49 : vector<1x128xf32> to vector<128x128xf32>
    %56 = arith.cmpf oeq, %54, %55 : vector<128x128xf32>
    %57 = arith.andi %56, %2 : vector<128x128xi1>
    %58 = arith.ori %53, %57 : vector<128x128xi1>
    %59 = arith.extui %58 : vector<128x128xi1> to vector<128x128xi32>
    %cst_20 = arith.constant dense<0> : vector<128xi32>
    %60 = vector.multi_reduction <add>, %59, %cst_20 [0] : vector<128x128xi32> to vector<128xi32>
    %61 = vector.shape_cast %60 : vector<128xi32> to vector<1x128xi32>
    %c10_i32_21 = arith.constant 10 : i32
    %62 = vector.broadcast %c10_i32_21 : i32 to vector<1x128xi32>
    %63 = arith.cmpi slt, %61, %62 : vector<1x128xi32>
    %64 = arith.extui %63 : vector<1x128xi1> to vector<1x128xi32>
    %65 = arith.sitofp %64 : vector<1x128xi32> to vector<1x128xf32>
    %c3 = arith.constant 3 : index
    %c0_22 = arith.constant 0 : index
    %c0_23 = arith.constant 0 : index
    %66 = vector.load %arg2[%c3, %c0_22, %c0_23] : memref<8x1x256xbf16, #tpu.memory_space<vmem>>, vector<1x1x256xbf16>
    %67 = vector.shape_cast %66 : vector<1x1x256xbf16> to vector<1x256xbf16>
    %c3_24 = arith.constant 3 : index
    %c0_25 = arith.constant 0 : index
    %c0_26 = arith.constant 0 : index
    %68 = vector.load %arg1[%c3_24, %c0_25, %c0_26] : memref<8x128x256xbf16, #tpu.memory_space<vmem>>, vector<1x128x256xbf16>
    %69 = vector.shape_cast %68 : vector<1x128x256xbf16> to vector<128x256xbf16>
    %cst_27 = arith.constant dense<0.000000e+00> : vector<1x128xf32>
    %70 = tpu.matmul %67, %69, %cst_27 {dimension_numbers = #tpu.dot_dimension_numbers<[1], [1], [0], [0], [0, 0, 1, 0], [], []>} : vector<1x256xbf16>, vector<128x256xbf16>, vector<1x128xf32> -> vector<1x128xf32>
    %71 = tpu.transpose %70, [1, 0] : vector<1x128xf32> -> vector<128x1xf32>
    %72 = vector.broadcast %71 : vector<128x1xf32> to vector<128x128xf32>
    %73 = vector.broadcast %70 : vector<1x128xf32> to vector<128x128xf32>
    %74 = arith.cmpf ogt, %72, %73 : vector<128x128xf32>
    %75 = vector.broadcast %71 : vector<128x1xf32> to vector<128x128xf32>
    %76 = vector.broadcast %70 : vector<1x128xf32> to vector<128x128xf32>
    %77 = arith.cmpf oeq, %75, %76 : vector<128x128xf32>
    %78 = arith.andi %77, %2 : vector<128x128xi1>
    %79 = arith.ori %74, %78 : vector<128x128xi1>
    %80 = arith.extui %79 : vector<128x128xi1> to vector<128x128xi32>
    %cst_28 = arith.constant dense<0> : vector<128xi32>
    %81 = vector.multi_reduction <add>, %80, %cst_28 [0] : vector<128x128xi32> to vector<128xi32>
    %82 = vector.shape_cast %81 : vector<128xi32> to vector<1x128xi32>
    %c10_i32_29 = arith.constant 10 : i32
    %83 = vector.broadcast %c10_i32_29 : i32 to vector<1x128xi32>
    %84 = arith.cmpi slt, %82, %83 : vector<1x128xi32>
    %85 = arith.extui %84 : vector<1x128xi1> to vector<1x128xi32>
    %86 = arith.sitofp %85 : vector<1x128xi32> to vector<1x128xf32>
    %c4 = arith.constant 4 : index
    %c0_30 = arith.constant 0 : index
    %c0_31 = arith.constant 0 : index
    %87 = vector.load %arg2[%c4, %c0_30, %c0_31] : memref<8x1x256xbf16, #tpu.memory_space<vmem>>, vector<1x1x256xbf16>
    %88 = vector.shape_cast %87 : vector<1x1x256xbf16> to vector<1x256xbf16>
    %c4_32 = arith.constant 4 : index
    %c0_33 = arith.constant 0 : index
    %c0_34 = arith.constant 0 : index
    %89 = vector.load %arg1[%c4_32, %c0_33, %c0_34] : memref<8x128x256xbf16, #tpu.memory_space<vmem>>, vector<1x128x256xbf16>
    %90 = vector.shape_cast %89 : vector<1x128x256xbf16> to vector<128x256xbf16>
    %cst_35 = arith.constant dense<0.000000e+00> : vector<1x128xf32>
    %91 = tpu.matmul %88, %90, %cst_35 {dimension_numbers = #tpu.dot_dimension_numbers<[1], [1], [0], [0], [0, 0, 1, 0], [], []>} : vector<1x256xbf16>, vector<128x256xbf16>, vector<1x128xf32> -> vector<1x128xf32>
    %92 = tpu.transpose %91, [1, 0] : vector<1x128xf32> -> vector<128x1xf32>
    %93 = vector.broadcast %92 : vector<128x1xf32> to vector<128x128xf32>
    %94 = vector.broadcast %91 : vector<1x128xf32> to vector<128x128xf32>
    %95 = arith.cmpf ogt, %93, %94 : vector<128x128xf32>
    %96 = vector.broadcast %92 : vector<128x1xf32> to vector<128x128xf32>
    %97 = vector.broadcast %91 : vector<1x128xf32> to vector<128x128xf32>
    %98 = arith.cmpf oeq, %96, %97 : vector<128x128xf32>
    %99 = arith.andi %98, %2 : vector<128x128xi1>
    %100 = arith.ori %95, %99 : vector<128x128xi1>
    %101 = arith.extui %100 : vector<128x128xi1> to vector<128x128xi32>
    %cst_36 = arith.constant dense<0> : vector<128xi32>
    %102 = vector.multi_reduction <add>, %101, %cst_36 [0] : vector<128x128xi32> to vector<128xi32>
    %103 = vector.shape_cast %102 : vector<128xi32> to vector<1x128xi32>
    %c10_i32_37 = arith.constant 10 : i32
    %104 = vector.broadcast %c10_i32_37 : i32 to vector<1x128xi32>
    %105 = arith.cmpi slt, %103, %104 : vector<1x128xi32>
    %106 = arith.extui %105 : vector<1x128xi1> to vector<1x128xi32>
    %107 = arith.sitofp %106 : vector<1x128xi32> to vector<1x128xf32>
    %c5 = arith.constant 5 : index
    %c0_38 = arith.constant 0 : index
    %c0_39 = arith.constant 0 : index
    %108 = vector.load %arg2[%c5, %c0_38, %c0_39] : memref<8x1x256xbf16, #tpu.memory_space<vmem>>, vector<1x1x256xbf16>
    %109 = vector.shape_cast %108 : vector<1x1x256xbf16> to vector<1x256xbf16>
    %c5_40 = arith.constant 5 : index
    %c0_41 = arith.constant 0 : index
    %c0_42 = arith.constant 0 : index
    %110 = vector.load %arg1[%c5_40, %c0_41, %c0_42] : memref<8x128x256xbf16, #tpu.memory_space<vmem>>, vector<1x128x256xbf16>
    %111 = vector.shape_cast %110 : vector<1x128x256xbf16> to vector<128x256xbf16>
    %cst_43 = arith.constant dense<0.000000e+00> : vector<1x128xf32>
    %112 = tpu.matmul %109, %111, %cst_43 {dimension_numbers = #tpu.dot_dimension_numbers<[1], [1], [0], [0], [0, 0, 1, 0], [], []>} : vector<1x256xbf16>, vector<128x256xbf16>, vector<1x128xf32> -> vector<1x128xf32>
    %113 = tpu.transpose %112, [1, 0] : vector<1x128xf32> -> vector<128x1xf32>
    %114 = vector.broadcast %113 : vector<128x1xf32> to vector<128x128xf32>
    %115 = vector.broadcast %112 : vector<1x128xf32> to vector<128x128xf32>
    %116 = arith.cmpf ogt, %114, %115 : vector<128x128xf32>
    %117 = vector.broadcast %113 : vector<128x1xf32> to vector<128x128xf32>
    %118 = vector.broadcast %112 : vector<1x128xf32> to vector<128x128xf32>
    %119 = arith.cmpf oeq, %117, %118 : vector<128x128xf32>
    %120 = arith.andi %119, %2 : vector<128x128xi1>
    %121 = arith.ori %116, %120 : vector<128x128xi1>
    %122 = arith.extui %121 : vector<128x128xi1> to vector<128x128xi32>
    %cst_44 = arith.constant dense<0> : vector<128xi32>
    %123 = vector.multi_reduction <add>, %122, %cst_44 [0] : vector<128x128xi32> to vector<128xi32>
    %124 = vector.shape_cast %123 : vector<128xi32> to vector<1x128xi32>
    %c10_i32_45 = arith.constant 10 : i32
    %125 = vector.broadcast %c10_i32_45 : i32 to vector<1x128xi32>
    %126 = arith.cmpi slt, %124, %125 : vector<1x128xi32>
    %127 = arith.extui %126 : vector<1x128xi1> to vector<1x128xi32>
    %128 = arith.sitofp %127 : vector<1x128xi32> to vector<1x128xf32>
    %c6 = arith.constant 6 : index
    %c0_46 = arith.constant 0 : index
    %c0_47 = arith.constant 0 : index
    %129 = vector.load %arg2[%c6, %c0_46, %c0_47] : memref<8x1x256xbf16, #tpu.memory_space<vmem>>, vector<1x1x256xbf16>
    %130 = vector.shape_cast %129 : vector<1x1x256xbf16> to vector<1x256xbf16>
    %c6_48 = arith.constant 6 : index
    %c0_49 = arith.constant 0 : index
    %c0_50 = arith.constant 0 : index
    %131 = vector.load %arg1[%c6_48, %c0_49, %c0_50] : memref<8x128x256xbf16, #tpu.memory_space<vmem>>, vector<1x128x256xbf16>
    %132 = vector.shape_cast %131 : vector<1x128x256xbf16> to vector<128x256xbf16>
    %cst_51 = arith.constant dense<0.000000e+00> : vector<1x128xf32>
    %133 = tpu.matmul %130, %132, %cst_51 {dimension_numbers = #tpu.dot_dimension_numbers<[1], [1], [0], [0], [0, 0, 1, 0], [], []>} : vector<1x256xbf16>, vector<128x256xbf16>, vector<1x128xf32> -> vector<1x128xf32>
    %134 = tpu.transpose %133, [1, 0] : vector<1x128xf32> -> vector<128x1xf32>
    %135 = vector.broadcast %134 : vector<128x1xf32> to vector<128x128xf32>
    %136 = vector.broadcast %133 : vector<1x128xf32> to vector<128x128xf32>
    %137 = arith.cmpf ogt, %135, %136 : vector<128x128xf32>
    %138 = vector.broadcast %134 : vector<128x1xf32> to vector<128x128xf32>
    %139 = vector.broadcast %133 : vector<1x128xf32> to vector<128x128xf32>
    %140 = arith.cmpf oeq, %138, %139 : vector<128x128xf32>
    %141 = arith.andi %140, %2 : vector<128x128xi1>
    %142 = arith.ori %137, %141 : vector<128x128xi1>
    %143 = arith.extui %142 : vector<128x128xi1> to vector<128x128xi32>
    %cst_52 = arith.constant dense<0> : vector<128xi32>
    %144 = vector.multi_reduction <add>, %143, %cst_52 [0] : vector<128x128xi32> to vector<128xi32>
    %145 = vector.shape_cast %144 : vector<128xi32> to vector<1x128xi32>
    %c10_i32_53 = arith.constant 10 : i32
    %146 = vector.broadcast %c10_i32_53 : i32 to vector<1x128xi32>
    %147 = arith.cmpi slt, %145, %146 : vector<1x128xi32>
    %148 = arith.extui %147 : vector<1x128xi1> to vector<1x128xi32>
    %149 = arith.sitofp %148 : vector<1x128xi32> to vector<1x128xf32>
    %c7 = arith.constant 7 : index
    %c0_54 = arith.constant 0 : index
    %c0_55 = arith.constant 0 : index
    %150 = vector.load %arg2[%c7, %c0_54, %c0_55] : memref<8x1x256xbf16, #tpu.memory_space<vmem>>, vector<1x1x256xbf16>
    %151 = vector.shape_cast %150 : vector<1x1x256xbf16> to vector<1x256xbf16>
    %c7_56 = arith.constant 7 : index
    %c0_57 = arith.constant 0 : index
    %c0_58 = arith.constant 0 : index
    %152 = vector.load %arg1[%c7_56, %c0_57, %c0_58] : memref<8x128x256xbf16, #tpu.memory_space<vmem>>, vector<1x128x256xbf16>
    %153 = vector.shape_cast %152 : vector<1x128x256xbf16> to vector<128x256xbf16>
    %cst_59 = arith.constant dense<0.000000e+00> : vector<1x128xf32>
    %154 = tpu.matmul %151, %153, %cst_59 {dimension_numbers = #tpu.dot_dimension_numbers<[1], [1], [0], [0], [0, 0, 1, 0], [], []>} : vector<1x256xbf16>, vector<128x256xbf16>, vector<1x128xf32> -> vector<1x128xf32>
    %155 = tpu.transpose %154, [1, 0] : vector<1x128xf32> -> vector<128x1xf32>
    %156 = vector.broadcast %155 : vector<128x1xf32> to vector<128x128xf32>
    %157 = vector.broadcast %154 : vector<1x128xf32> to vector<128x128xf32>
    %158 = arith.cmpf ogt, %156, %157 : vector<128x128xf32>
    %159 = vector.broadcast %155 : vector<128x1xf32> to vector<128x128xf32>
    %160 = vector.broadcast %154 : vector<1x128xf32> to vector<128x128xf32>
    %161 = arith.cmpf oeq, %159, %160 : vector<128x128xf32>
    %162 = arith.andi %161, %2 : vector<128x128xi1>
    %163 = arith.ori %158, %162 : vector<128x128xi1>
    %164 = arith.extui %163 : vector<128x128xi1> to vector<128x128xi32>
    %cst_60 = arith.constant dense<0> : vector<128xi32>
    %165 = vector.multi_reduction <add>, %164, %cst_60 [0] : vector<128x128xi32> to vector<128xi32>
    %166 = vector.shape_cast %165 : vector<128xi32> to vector<1x128xi32>
    %c10_i32_61 = arith.constant 10 : i32
    %167 = vector.broadcast %c10_i32_61 : i32 to vector<1x128xi32>
    %168 = arith.cmpi slt, %166, %167 : vector<1x128xi32>
    %169 = arith.extui %168 : vector<1x128xi1> to vector<1x128xi32>
    %170 = arith.sitofp %169 : vector<1x128xi32> to vector<1x128xf32>
    %171 = tpu.concatenate %23, %44, %65, %86, %107, %128, %149, %170 in 0 : vector<1x128xf32>, vector<1x128xf32>, vector<1x128xf32>, vector<1x128xf32>, vector<1x128xf32>, vector<1x128xf32>, vector<1x128xf32>, vector<1x128xf32> -> vector<8x128xf32>
    %c0_62 = arith.constant 0 : index
    %c0_63 = arith.constant 0 : index
    %172 = vector.load %arg3[%c0_62, %c0_63] : memref<8x128xf32, #tpu.memory_space<vmem>>, vector<8x128xf32>
    tpu.vector_store %arg3[%c0_62, %c0_63], %171 {strides = array<i32>} : memref<8x128xf32, #tpu.memory_space<vmem>>, vector<8x128xf32>,
    return
  }
  func.func @transform_0(%arg0: i32) -> (i32, i32, i32) {
    %c0_i32 = arith.constant 0 : i32
    %c0_i32_0 = arith.constant 0 : i32
    %c0_i32_1 = arith.constant 0 : i32
    return %arg0, %c0_i32, %c0_i32_0 : i32, i32, i32
  }
  func.func @transform_1(%arg0: i32) -> (i32, i32, i32) {
    %c0_i32 = arith.constant 0 : i32
    %c0_i32_0 = arith.constant 0 : i32
    %c0_i32_1 = arith.constant 0 : i32
    return %arg0, %c0_i32, %c0_i32_0 : i32, i32, i32
  }
  func.func @transform_2(%arg0: i32) -> (i32, i32) {
    %c0_i32 = arith.constant 0 : i32
    %c0_i32_0 = arith.constant 0 : i32
    return %arg0, %c0_i32 : i32, i32
  }
}

</mosaic_0001>

<llo_original>
// kernel: tpu_custom_call.1
$region0: #{tpu_custom_call.1}
  #allocation0 [shape = 'u32[]', space=smem, size = 0x4, offset = 0x4, fixed_abs, tag = 'smem constant byte address 0x4 - core index']
  #allocation1 [shape = 'u32[144,128]{1,0:T(1,128)}', space=vmem, size = 0x12000, scoped, tag = 'internal scratch']
  %s0 = inlined_call_operand.hbm [shape: bf16[16,128,256], index: 0, kind: input, shape index: {}]
  %s1 = inlined_call_operand.vmem [shape: bf16[16,1,256], index: 1, kind: input, shape index: {}]
  %s2 = inlined_call_operand.hbm [shape: f32[16,128], index: 2, kind: output, shape index: {}]
  %s3 = sld [smem:[#allocation0]]
  $region45: #{tpu_custom_call.1} parent=0
    _
  %s5 = ssub.s32 1, %s3
  %s6 = scalar_select 0, %s5, %s3
  $region1: #{tpu_custom_call.1} parent=0
    #allocation2 [shape = 'u8[1048576]{0}', space=vmem, size = 0x100000, scoped, tag = 'input window, operand 0']
    #allocation3 [shape = 's32[2]{0}', space=sflag, size = 0x8, scoped, tag = 'scoped memory for tpu_custom_call.1']
    #allocation4 [shape = 's32[2]{0}', space=sflag, size = 0x8, scoped, tag = 'scoped memory for tpu_custom_call.1']
    #allocation5 [shape = 'u8[8192]{0}', space=vmem, size = 0x2000, scoped, tag = 'output window, operand 0']
    %7 = vsyncpa [#allocation3], 0
    %s8 = scalar_lea.sflag [#allocation3], 1
    %9 = vsyncpa %s8, 0
    %10 = vsyncpa [#allocation4], 0
    %s11 = scalar_lea.sflag [#allocation4], 1
    %12 = vsyncpa %s11, 0
    loop: start=0, step=1, limit=4
    $region2: #{tpu_custom_call.1} parent=1 // loop_pre_header
      _
    $region3: #{tpu_custom_call.1} parent=1 // loop_header
      %s14 = sphi 0, %s18
      %p15 = scmp.ge.s32.totalorder %s14, 4
      %s24 = sphi 0, %s26
      %s27 = sphi 0, %s24
      %s28 = sphi 0, %s27
      %s44 = sphi 0, %s28
      %s50 = sphi 0, %s52
      %s53 = sphi 0, %s50
      %s54 = sphi 0, %s53
      %s70 = sphi 0, %s54
      %s76 = sphi 0, %s78
      %s79 = sphi 0, %s76
      %s80 = sphi 0, %s79
      %s96 = sphi 0, %s80
    $region4: #{tpu_custom_call.1} parent=1 // loop_header_branch
      %17 = sbr.rel (%p15) target = $region8
    $region5: #{tpu_custom_call.1} parent=1 // loop_body
      %s19 = ssub.s32 %s14, 1
      %s20 = ssub.s32 %s14, 2
      %s21 = sadd.s32 %s14, 1
      %s22 = ssub.s32 %s14, %s21
      %p23 = scmp.eq.s32.totalorder %s22, 0
      %s25 = sadd.s32 %s24, 1
      %s26 = scalar_select %p23, %s24, %s25
      %p29 = pneg %p23
      %p30 = scmp.eq.s32.totalorder %s14, 1
      %p31 = por %p29, %p30
      %p32 = scmp.ne.s32.totalorder %s24, %s27
      %p33 = scmp.eq.s32.totalorder %s14, 0
      %p34 = por %p32, %p33
      %p35 = scmp.ne.s32.totalorder %s24, %s27
      %p36 = scmp.eq.s32.totalorder %s19, 1
      %p37 = por %p35, %p36
      %p38 = scmp.ne.s32.totalorder %s27, %s28
      %p39 = scmp.eq.s32.totalorder %s19, 0
      %p40 = por %p38, %p39
      %p41 = scmp.ne.s32.totalorder %s27, %s28
      %p42 = scmp.eq.s32.totalorder %s20, 1
      %p43 = por %p41, %p42
      %p45 = scmp.ne.s32.totalorder %s28, %s44
      %p46 = scmp.eq.s32.totalorder %s20, 0
      %p47 = por %p45, %p46
      %s48 = ssub.s32 %s14, %s21
      %p49 = scmp.eq.s32.totalorder %s48, 0
      %s51 = sadd.s32 %s50, 1
      %s52 = scalar_select %p49, %s50, %s51
      %p55 = pneg %p49
      %p56 = scmp.eq.s32.totalorder %s14, 1
      %p57 = por %p55, %p56
      %p58 = scmp.ne.s32.totalorder %s50, %s53
      %p59 = scmp.eq.s32.totalorder %s14, 0
      %p60 = por %p58, %p59
      %p61 = scmp.ne.s32.totalorder %s50, %s53
      %p62 = scmp.eq.s32.totalorder %s19, 1
      %p63 = por %p61, %p62
      %p64 = scmp.ne.s32.totalorder %s53, %s54
      %p65 = scmp.eq.s32.totalorder %s19, 0
      %p66 = por %p64, %p65
      %p67 = scmp.ne.s32.totalorder %s53, %s54
      %p68 = scmp.eq.s32.totalorder %s20, 1
      %p69 = por %p67, %p68
      %p71 = scmp.ne.s32.totalorder %s54, %s70
      %p72 = scmp.eq.s32.totalorder %s20, 0
      %p73 = por %p71, %p72
      %s74 = ssub.s32 %s14, %s21
      %p75 = scmp.eq.s32.totalorder %s74, 0
      %s77 = sadd.s32 %s76, 1
      %s78 = scalar_select %p75, %s76, %s77
      %p81 = pneg %p75
      %p82 = scmp.eq.s32.totalorder %s14, 1
      %p83 = por %p81, %p82
      %p84 = scmp.ne.s32.totalorder %s76, %s79
      %p85 = scmp.eq.s32.totalorder %s14, 0
      %p86 = por %p84, %p85
      %p87 = scmp.ne.s32.totalorder %s76, %s79
      %p88 = scmp.eq.s32.totalorder %s19, 1
      %p89 = por %p87, %p88
      %p90 = scmp.ne.s32.totalorder %s79, %s80
      %p91 = scmp.eq.s32.totalorder %s19, 0
      %p92 = por %p90, %p91
      %p93 = scmp.ne.s32.totalorder %s79, %s80
      %p94 = scmp.eq.s32.totalorder %s20, 1
      %p95 = por %p93, %p94
      %p97 = scmp.ne.s32.totalorder %s80, %s96
      %p98 = scmp.eq.s32.totalorder %s20, 0
      %p99 = por %p97, %p98
      %p100 = scmp.le.s32.totalorder 1, %s14
      %p101 = scmp.lt.s32.totalorder %s14, 3
      %p102 = pnand %p100, %p101
      %p103 = pneg %p102
      // Predicated region
      $region9: #{tpu_custom_call.1} parent=5 // pred_check
        _
      $region10: #{tpu_custom_call.1} parent=5 // pred_check_branch
        %105 = sbr.rel (%p102) target = $region12
      $region11: #{tpu_custom_call.1} parent=5 // pred_region
        %s106 = ssub.s32 %s14, 1
      $region12: #{tpu_custom_call.1} parent=5 // pred_fallthru
        _
      %p107 = scmp.lt.s32.totalorder %s14, 2
      // Predicated region
      $region13: #{tpu_custom_call.1} parent=5 // pred_check
        %p108 = pneg %p107
      $region14: #{tpu_custom_call.1} parent=5 // pred_check_branch
        %110 = sbr.rel (%p108) target = $region16
      $region15: #{tpu_custom_call.1} parent=5 // pred_region
        // Predicated region
        $region17: #{tpu_custom_call.1} parent=15 // pred_check
          %p111 = pneg %p34
        $region18: #{tpu_custom_call.1} parent=15 // pred_check_branch
          %113 = sbr.rel (%p111) target = $region20
        $region19: #{tpu_custom_call.1} parent=15 // pred_region
          %s114 = sand.u32 %s24, 1
          %s115 = scalar_lea.sflag [#allocation3], %s114
          %s116 = sand.u32 %s24, 1
          %s117 = smul.addr %s116, 1024
          %s118 = scalar_lea.vmem [#allocation2], %s117
          %s119 = smul.u32 8, %s14
          %s121 = ssub.s32 16384, 16384
          %122 = vsyncadd %s115, %s121
          %s123 = smul.addr %s119, 32
          %s124 = smul.addr %s123, 64
          %s125 = scalar_lea.hbm %s0, %s124
          %s126 = sshll.u32 %s118, 4
          %s127 = int_to_ptr.vmem [resolvable:$true] %s126
          %132 = dma.hbm_to_vmem [thread:$0]  %s125, 16384, %s127, %s115, 128, 128, 8
        $region20: #{tpu_custom_call.1} parent=15 // pred_fallthru
          _
        // Predicated region
        $region21: #{tpu_custom_call.1} parent=15 // pred_check
          %p133 = pneg %p60
        $region22: #{tpu_custom_call.1} parent=15 // pred_check_branch
          %135 = sbr.rel (%p133) target = $region24
        $region23: #{tpu_custom_call.1} parent=15 // pred_region
          %s136 = smul.u32 8, %s14
          %p137 = scmp.lt.s32.totalorder %s136, 15
          %s138 = scalar_select %p137, %s136, 15
          %s139 = smul.addr %s138, 2
          %s140 = scalar_lea.vmem %s1, %s139
          %s141 = smul.u32 8, %s14
        $region24: #{tpu_custom_call.1} parent=15 // pred_fallthru
          _
      $region16: #{tpu_custom_call.1} parent=5 // pred_fallthru
        _
      %p142 = scmp.le.s32.totalorder 1, %s14
      %p143 = scmp.lt.s32.totalorder %s14, 3
      %p144 = pnand %p142, %p143
      %p145 = pneg %p144
      // Predicated region
      $region25: #{tpu_custom_call.1} parent=5 // pred_check
        _
      $region26: #{tpu_custom_call.1} parent=5 // pred_check_branch
        %147 = sbr.rel (%p144) target = $region28
      $region27: #{tpu_custom_call.1} parent=5 // pred_region
        %s148 = ssub.s32 %s14, 1
        %s149 = sand.u32 %s27, 1
        %s150 = scalar_lea.sflag [#allocation3], %s149
        %s151 = sand.u32 %s27, 1
        %s152 = smul.addr %s151, 1024
        %s153 = scalar_lea.vmem [#allocation2], %s152
        // Predicated region
        $region29: #{tpu_custom_call.1} parent=27 // pred_check
          %p154 = pneg %p40
        $region30: #{tpu_custom_call.1} parent=27 // pred_check_branch
          %156 = sbr.rel (%p154) target = $region32
        $region31: #{tpu_custom_call.1} parent=27 // pred_region
          %157 = dma.done %s150, 16384
        $region32: #{tpu_custom_call.1} parent=27 // pred_fallthru
          _
        %s158 = sand.u32 %s27, 1
        %s159 = scalar_lea.sflag [#allocation3], %s158
        %s160 = sand.u32 %s27, 1
        %s161 = smul.addr %s160, 1024
        %s162 = scalar_lea.vmem [#allocation2], %s161
        %p163 = pneg %p40
        %p164 = pneg %p37
        %s165 = smul.u32 8, %s19
        %p166 = scmp.lt.s32.totalorder %s165, 15
        %s167 = scalar_select %p166, %s165, 15
        %s168 = smul.addr %s167, 2
        %s169 = scalar_lea.vmem %s1, %s168
        %p170 = pneg %p66
        %p171 = pneg %p63
        %p172 = pneg %p92
        %p173 = pneg %p89
        %s174 = sand.u32 %s79, 1
        %s175 = scalar_lea.sflag [#allocation4], %s174
        %s176 = sand.u32 %s79, 1
        %s177 = smul.addr %s176, 8
        %s178 = scalar_lea.vmem [#allocation5], %s177
        %s179 = smul.u32 8, %s19
        %s180 = smul.u32 8, %s19
        %p181 = scmp.lt.s32.totalorder %s180, 15
        %s182 = scalar_select %p181, %s180, 15
        %s183 = smul.addr %s182, 2
        %s184 = scalar_lea.vmem %s1, %s183
        %s185 = smul.u32 8, %s19
        %v187 = vlaneseq
        %v188 = vshrl.u32 %v187, 7
        %v189 = vadd.s32 %v188, 8
        %v190 = vadd.s32 %v188, 16
        %v191 = vadd.s32 %v188, 24
        %v192 = vadd.s32 %v188, 32
        %v193 = vadd.s32 %v188, 40
        %v194 = vadd.s32 %v188, 48
        %v195 = vadd.s32 %v188, 56
        %v196 = vadd.s32 %v188, 64
        %v197 = vadd.s32 %v188, 72
        %v198 = vadd.s32 %v188, 80
        %v199 = vadd.s32 %v188, 88
        %v200 = vadd.s32 %v188, 96
        %v201 = vadd.s32 %v188, 104
        %v202 = vadd.s32 %v188, 112
        %v203 = vadd.s32 %v188, 120
        %v204 = vlaneseq
        %v205 = vand.u32 %v204, 127
        %vm206 = vcmp.lt.s32.totalorder %v188, %v205
        %vm207 = vcmp.lt.s32.totalorder %v189, %v205
        %vm208 = vcmp.lt.s32.totalorder %v190, %v205
        %vm209 = vcmp.lt.s32.totalorder %v191, %v205
        %vm210 = vcmp.lt.s32.totalorder %v192, %v205
        %vm211 = vcmp.lt.s32.totalorder %v193, %v205
        %vm212 = vcmp.lt.s32.totalorder %v194, %v205
        %vm213 = vcmp.lt.s32.totalorder %v195, %v205
        %vm214 = vcmp.lt.s32.totalorder %v196, %v205
        %vm215 = vcmp.lt.s32.totalorder %v197, %v205
        %vm216 = vcmp.lt.s32.totalorder %v198, %v205
        %vm217 = vcmp.lt.s32.totalorder %v199, %v205
        %vm218 = vcmp.lt.s32.totalorder %v200, %v205
        %vm219 = vcmp.lt.s32.totalorder %v201, %v205
        %vm220 = vcmp.lt.s32.totalorder %v202, %v205
        %vm221 = vcmp.lt.s32.totalorder %v203, %v205
        %v222 = vld [vmem:[%s184] sm:$0x3]
        %v223 = vld [vmem:[%s153] sm:$0xff]
        %v224 = vld [vmem:[%s153 + $0x8] sm:$0xff]
        %v225 = vld [vmem:[%s153 + $0x10] sm:$0xff]
        %v226 = vld [vmem:[%s153 + $0x18] sm:$0xff]
        %v227 = vld [vmem:[%s153 + $0x20] sm:$0xff]
        %v228 = vld [vmem:[%s153 + $0x28] sm:$0xff]
        %v229 = vld [vmem:[%s153 + $0x30] sm:$0xff]
        %v230 = vld [vmem:[%s153 + $0x38] sm:$0xff]
        %v231 = vld [vmem:[%s153 + $0x40] sm:$0xff]
        %v232 = vld [vmem:[%s153 + $0x48] sm:$0xff]
        %v233 = vld [vmem:[%s153 + $0x50] sm:$0xff]
        %v234 = vld [vmem:[%s153 + $0x58] sm:$0xff]
        %v235 = vld [vmem:[%s153 + $0x60] sm:$0xff]
        %v236 = vld [vmem:[%s153 + $0x68] sm:$0xff]
        %v237 = vld [vmem:[%s153 + $0x70] sm:$0xff]
        %v238 = vld [vmem:[%s153 + $0x78] sm:$0xff]
        %v241 = vunpack.c.l.s4 1966171168
        %v242 = vunpack.c.0.s8 %v241
        %v243 = vlaneseq
        %v244 = vshrl.u32 %v243, 7
        %v245 = vsub.s32 %v242, %v244
        %v246 = vrot.slane %v222, %v245
        %v247 = vcombine.high %v246, %v246
        %v249 = vunpack.c.l.s4 1966171168
        %v250 = vunpack.c.0.s8 %v249
        %v251 = vlaneseq
        %v252 = vshrl.u32 %v251, 7
        %v253 = vsub.s32 %v250, %v252
        %v254 = vrot.slane %v246, %v253
        %v256 = vunpack.c.l.s4 1966171168
        %v257 = vunpack.c.0.s8 %v256
        %v258 = vlaneseq
        %v259 = vshrl.u32 %v258, 7
        %v260 = vsub.s32 %v257, %v259
        %v261 = vrot.slane %v247, %v260
        %v280 = vunpack.c.l.b16 %v223
        %v281 = vunpack.c.h.b16 %v223
        %v282 = vunpack.c.l.b16 %v224
        %v283 = vunpack.c.h.b16 %v224
        %v284 = vunpack.c.l.b16 %v225
        %v285 = vunpack.c.h.b16 %v225
        %v286 = vunpack.c.l.b16 %v226
        %v287 = vunpack.c.h.b16 %v226
        %v288 = vunpack.c.l.b16 %v227
        %v289 = vunpack.c.h.b16 %v227
        %v290 = vunpack.c.l.b16 %v228
        %v291 = vunpack.c.h.b16 %v228
        %v292 = vunpack.c.l.b16 %v229
        %v293 = vunpack.c.h.b16 %v229
        %v294 = vunpack.c.l.b16 %v230
        %v295 = vunpack.c.h.b16 %v230
        %v296 = vunpack.c.l.b16 %v231
        %v297 = vunpack.c.h.b16 %v231
        %v298 = vunpack.c.l.b16 %v232
        %v299 = vunpack.c.h.b16 %v232
        %v300 = vunpack.c.l.b16 %v233
        %v301 = vunpack.c.h.b16 %v233
        %v302 = vunpack.c.l.b16 %v234
        %v303 = vunpack.c.h.b16 %v234
        %v304 = vunpack.c.l.b16 %v235
        %v305 = vunpack.c.h.b16 %v235
        %v306 = vunpack.c.l.b16 %v236
        %v307 = vunpack.c.h.b16 %v236
        %v308 = vunpack.c.l.b16 %v237
        %v309 = vunpack.c.h.b16 %v237
        %v310 = vunpack.c.l.b16 %v238
        %v311 = vunpack.c.h.b16 %v238
        %v312 = vpack.c.b16 %v282, %v280
        %v313 = vpack.c.b16 %v283, %v281
        %v314 = vpack.c.b16 %v286, %v284
        %v315 = vpack.c.b16 %v287, %v285
        %v316 = vpack.c.b16 %v290, %v288
        %v317 = vpack.c.b16 %v291, %v289
        %v318 = vpack.c.b16 %v294, %v292
        %v319 = vpack.c.b16 %v295, %v293
        %v320 = vpack.c.b16 %v298, %v296
        %v321 = vpack.c.b16 %v299, %v297
        %v322 = vpack.c.b16 %v302, %v300
        %v323 = vpack.c.b16 %v303, %v301
        %v324 = vpack.c.b16 %v306, %v304
        %v325 = vpack.c.b16 %v307, %v305
        %v326 = vpack.c.b16 %v310, %v308
        %v327 = vpack.c.b16 %v311, %v309
        %344 = vmatprep.subr.bf16.mxu0 %v313
        %345 = vmatpush1.bf16.xpose.msra.mxu0 %v312
        %346 = vmatprep.subr.bf16.mxu0 %v315
        %347 = vmatpush1.bf16.xpose.msra.mxu0 %v314
        %348 = vmatprep.subr.bf16.mxu0 %v317
        %349 = vmatpush1.bf16.xpose.msra.mxu0 %v316
        %350 = vmatprep.subr.bf16.mxu0 %v319
        %351 = vmatpush1.bf16.xpose.msra.mxu0 %v318
        %352 = vmatprep.subr.bf16.mxu0 %v321
        %353 = vmatpush1.bf16.xpose.msra.mxu0 %v320
        %354 = vmatprep.subr.bf16.mxu0 %v323
        %355 = vmatpush1.bf16.xpose.msra.mxu0 %v322
        %356 = vmatprep.subr.bf16.mxu0 %v325
        %357 = vmatpush1.bf16.xpose.msra.mxu0 %v324
        %358 = vmatprep.subr.bf16.mxu0 %v327
        %359 = vmatpush1.bf16.xpose.msra.mxu0 %v326
        %360 = vmatprep.subr.bf16.mxu0 0
        %361 = vmatpush1.bf16.xpose.msra.mxu0 0
        %362 = vmatprep.subr.bf16.mxu0 0
        %363 = vmatpush1.bf16.xpose.msra.mxu0 0
        %364 = vmatprep.subr.bf16.mxu0 0
        %365 = vmatpush1.bf16.xpose.msra.mxu0 0
        %366 = vmatprep.subr.bf16.mxu0 0
        %367 = vmatpush1.bf16.xpose.msra.mxu0 0
        %368 = vmatprep.subr.bf16.mxu0 0
        %369 = vmatpush1.bf16.xpose.msra.mxu0 0
        %370 = vmatprep.subr.bf16.mxu0 0
        %371 = vmatpush1.bf16.xpose.msra.mxu0 0
        %372 = vmatprep.subr.bf16.mxu0 0
        %373 = vmatpush1.bf16.xpose.msra.mxu0 0
        %374 = vmatprep.subr.bf16.mxu0 0
        %375 = vmatpush1.bf16.xpose.msra.mxu0 0
        %376 = vmatprep.mubr.bf16.mxu0 %v261
        %377 = vmatmul.mubr.bf16.gmra.mrb[0].mxu0 %v254
        %v378 = vpop.f32.mrb[0].mxu0
        %v379 = vadd.f32 0.0, %v378
        %v380 = vpop.f32.mrb[0].mxu0
        %v381 = vpop.f32.mrb[0].mxu0
        %v382 = vpop.f32.mrb[0].mxu0
        %383 = vdwg.mxu0
        %384 = vxpose.xlu0.b32.start [1/16] %v379, 128
        %385 = vxpose.xlu0.b32.cont [2/16] 0.0, 128
        %386 = vxpose.xlu0.b32.cont [3/16] 0.0, 128
        %387 = vxpose.xlu0.b32.cont [4/16] 0.0, 128
        %388 = vxpose.xlu0.b32.cont [5/16] 0.0, 128
        %389 = vxpose.xlu0.b32.cont [6/16] 0.0, 128
        %390 = vxpose.xlu0.b32.cont [7/16] 0.0, 128
        %391 = vxpose.xlu0.b32.cont [8/16] 0.0, 128
        %392 = vxpose.xlu0.b32.cont [9/16] 0.0, 128
        %393 = vxpose.xlu0.b32.cont [10/16] 0.0, 128
        %394 = vxpose.xlu0.b32.cont [11/16] 0.0, 128
        %395 = vxpose.xlu0.b32.cont [12/16] 0.0, 128
        %396 = vxpose.xlu0.b32.cont [13/16] 0.0, 128
        %397 = vxpose.xlu0.b32.cont [14/16] 0.0, 128
        %398 = vxpose.xlu0.b32.cont [15/16] 0.0, 128
        %399 = vxpose.xlu0.b32.end [16/16] 0.0, 128
        %v400 = vpop.trf.xlu0
        %v401 = vpop.trf.xlu0
        %v402 = vpop.trf.xlu0
        %v403 = vpop.trf.xlu0
        %v404 = vpop.trf.xlu0
        %v405 = vpop.trf.xlu0
        %v406 = vpop.trf.xlu0
        %v407 = vpop.trf.xlu0
        %v408 = vpop.trf.xlu0
        %v409 = vpop.trf.xlu0
        %v410 = vpop.trf.xlu0
        %v411 = vpop.trf.xlu0
        %v412 = vpop.trf.xlu0
        %v413 = vpop.trf.xlu0
        %v414 = vpop.trf.xlu0
        %v415 = vpop.trf.xlu0
        %417 = vset.pattern.permute.xlu0 0
        %418 = vperm.xlu0 %417, %v400
        %v419 = vpop.permute.xlu0 %418
        %422 = vset.pattern.permute.xlu0 0
        %423 = vperm.xlu0 %422, %v401
        %v424 = vpop.permute.xlu0 %423
        %427 = vset.pattern.permute.xlu0 0
        %428 = vperm.xlu0 %427, %v402
        %v429 = vpop.permute.xlu0 %428
        %432 = vset.pattern.permute.xlu0 0
        %433 = vperm.xlu0 %432, %v403
        %v434 = vpop.permute.xlu0 %433
        %437 = vset.pattern.permute.xlu0 0
        %438 = vperm.xlu0 %437, %v404
        %v439 = vpop.permute.xlu0 %438
        %442 = vset.pattern.permute.xlu0 0
        %443 = vperm.xlu0 %442, %v405
        %v444 = vpop.permute.xlu0 %443
        %447 = vset.pattern.permute.xlu0 0
        %448 = vperm.xlu0 %447, %v406
        %v449 = vpop.permute.xlu0 %448
        %452 = vset.pattern.permute.xlu0 0
        %453 = vperm.xlu0 %452, %v407
        %v454 = vpop.permute.xlu0 %453
        %457 = vset.pattern.permute.xlu0 0
        %458 = vperm.xlu0 %457, %v408
        %v459 = vpop.permute.xlu0 %458
        %462 = vset.pattern.permute.xlu0 0
        %463 = vperm.xlu0 %462, %v409
        %v464 = vpop.permute.xlu0 %463
        %467 = vset.pattern.permute.xlu0 0
        %468 = vperm.xlu0 %467, %v410
        %v469 = vpop.permute.xlu0 %468
        %472 = vset.pattern.permute.xlu0 0
        %473 = vperm.xlu0 %472, %v411
        %v474 = vpop.permute.xlu0 %473
        %477 = vset.pattern.permute.xlu0 0
        %478 = vperm.xlu0 %477, %v412
        %v479 = vpop.permute.xlu0 %478
        %482 = vset.pattern.permute.xlu0 0
        %483 = vperm.xlu0 %482, %v413
        %v484 = vpop.permute.xlu0 %483
        %487 = vset.pattern.permute.xlu0 0
        %488 = vperm.xlu0 %487, %v414
        %v489 = vpop.permute.xlu0 %488
        %492 = vset.pattern.permute.xlu0 0
        %493 = vperm.xlu0 %492, %v415
        %v494 = vpop.permute.xlu0 %493
        %v496 = vlaneseq
        %v497 = vshrl.u32 %v496, 7
        %v498 = vsub.s32 0, %v497
        %v499 = vrot.slane %v379, %v498
        %vm500 = vcmp.gt.f32.partialorder %v419, %v499
        %vm501 = vcmp.gt.f32.partialorder %v424, %v499
        %vm502 = vcmp.gt.f32.partialorder %v429, %v499
        %vm503 = vcmp.gt.f32.partialorder %v434, %v499
        %vm504 = vcmp.gt.f32.partialorder %v439, %v499
        %vm505 = vcmp.gt.f32.partialorder %v444, %v499
        %vm506 = vcmp.gt.f32.partialorder %v449, %v499
        %vm507 = vcmp.gt.f32.partialorder %v454, %v499
        %vm508 = vcmp.gt.f32.partialorder %v459, %v499
        %vm509 = vcmp.gt.f32.partialorder %v464, %v499
        %vm510 = vcmp.gt.f32.partialorder %v469, %v499
        %vm511 = vcmp.gt.f32.partialorder %v474, %v499
        %vm512 = vcmp.gt.f32.partialorder %v479, %v499
        %vm513 = vcmp.gt.f32.partialorder %v484, %v499
        %vm514 = vcmp.gt.f32.partialorder %v489, %v499
        %vm515 = vcmp.gt.f32.partialorder %v494, %v499
        %vm516 = vcmp.eq.f32.partialorder %v419, %v499
        %vm517 = vcmp.eq.f32.partialorder %v424, %v499
        %vm518 = vcmp.eq.f32.partialorder %v429, %v499
        %vm519 = vcmp.eq.f32.partialorder %v434, %v499
        %vm520 = vcmp.eq.f32.partialorder %v439, %v499
        %vm521 = vcmp.eq.f32.partialorder %v444, %v499
        %vm522 = vcmp.eq.f32.partialorder %v449, %v499
        %vm523 = vcmp.eq.f32.partialorder %v454, %v499
        %vm524 = vcmp.eq.f32.partialorder %v459, %v499
        %vm525 = vcmp.eq.f32.partialorder %v464, %v499
        %vm526 = vcmp.eq.f32.partialorder %v469, %v499
        %vm527 = vcmp.eq.f32.partialorder %v474, %v499
        %vm528 = vcmp.eq.f32.partialorder %v479, %v499
        %vm529 = vcmp.eq.f32.partialorder %v484, %v499
        %vm530 = vcmp.eq.f32.partialorder %v489, %v499
        %vm531 = vcmp.eq.f32.partialorder %v494, %v499
        %vm532 = vmand %vm516, %vm206
        %vm533 = vmand %vm517, %vm207
        %vm534 = vmand %vm518, %vm208
        %vm535 = vmand %vm519, %vm209
        %vm536 = vmand %vm520, %vm210
        %vm537 = vmand %vm521, %vm211
        %vm538 = vmand %vm522, %vm212
        %vm539 = vmand %vm523, %vm213
        %vm540 = vmand %vm524, %vm214
        %vm541 = vmand %vm525, %vm215
        %vm542 = vmand %vm526, %vm216
        %vm543 = vmand %vm527, %vm217
        %vm544 = vmand %vm528, %vm218
        %vm545 = vmand %vm529, %vm219
        %vm546 = vmand %vm530, %vm220
        %vm547 = vmand %vm531, %vm221
        %vm548 = vmor %vm500, %vm532
        %vm549 = vmor %vm501, %vm533
        %vm550 = vmor %vm502, %vm534
        %vm551 = vmor %vm503, %vm535
        %vm552 = vmor %vm504, %vm536
        %vm553 = vmor %vm505, %vm537
        %vm554 = vmor %vm506, %vm538
        %vm555 = vmor %vm507, %vm539
        %vm556 = vmor %vm508, %vm540
        %vm557 = vmor %vm509, %vm541
        %vm558 = vmor %vm510, %vm542
        %vm559 = vmor %vm511, %vm543
        %vm560 = vmor %vm512, %vm544
        %vm561 = vmor %vm513, %vm545
        %vm562 = vmor %vm514, %vm546
        %vm563 = vmor %vm515, %vm547
        %v564 = vsel %vm548, 1, 0
        %v565 = vsel %vm549, 1, 0
        %v566 = vsel %vm550, 1, 0
        %v567 = vsel %vm551, 1, 0
        %v568 = vsel %vm552, 1, 0
        %v569 = vsel %vm553, 1, 0
        %v570 = vsel %vm554, 1, 0
        %v571 = vsel %vm555, 1, 0
        %v572 = vsel %vm556, 1, 0
        %v573 = vsel %vm557, 1, 0
        %v574 = vsel %vm558, 1, 0
        %v575 = vsel %vm559, 1, 0
        %v576 = vsel %vm560, 1, 0
        %v577 = vsel %vm561, 1, 0
        %v578 = vsel %vm562, 1, 0
        %v579 = vsel %vm563, 1, 0
        %v580 = vadd.s32 %v564, %v568
        %v581 = vadd.s32 %v565, %v569
        %v582 = vadd.s32 %v566, %v570
        %v583 = vadd.s32 %v567, %v571
        %v584 = vadd.s32 %v580, %v572
        %v585 = vadd.s32 %v581, %v573
        %v586 = vadd.s32 %v582, %v574
        %v587 = vadd.s32 %v583, %v575
        %v588 = vadd.s32 %v584, %v576
        %v589 = vadd.s32 %v585, %v577
        %v590 = vadd.s32 %v586, %v578
        %v591 = vadd.s32 %v587, %v579
        %v592 = vadd.s32 %v588, %v589
        %v593 = vadd.s32 %v590, %v591
        %v594 = vadd.s32 %v592, %v593
        %v595 = vrot.slane %v594, 4
        %v596 = vadd.s32 %v594, %v595
        %v597 = vrot.slane %v596, 2
        %v598 = vadd.s32 %v596, %v597
        %v599 = vrot.slane %v598, 1
        %v600 = vadd.s32 %v598, %v599
        %vm601 = vcmp.lt.s32.totalorder %v600, 10
        %v602 = vsel %vm601, 1, 0
        %v603 = vcvt.s32.f32 %v602
        %s604 = scalar_lea.vmem %s184, 2
        %v605 = vld [vmem:[%s604] sm:$0x3]
        %s606 = scalar_lea.vmem %s153, 128 [#allocation2]
        %v607 = vld [vmem:[%s606] sm:$0xff]
        %v608 = vld [vmem:[%s606 + $0x8] sm:$0xff]
        %v609 = vld [vmem:[%s606 + $0x10] sm:$0xff]
        %v610 = vld [vmem:[%s606 + $0x18] sm:$0xff]
        %v611 = vld [vmem:[%s606 + $0x20] sm:$0xff]
        %v612 = vld [vmem:[%s606 + $0x28] sm:$0xff]
        %v613 = vld [vmem:[%s606 + $0x30] sm:$0xff]
        %v614 = vld [vmem:[%s606 + $0x38] sm:$0xff]
        %v615 = vld [vmem:[%s606 + $0x40] sm:$0xff]
        %v616 = vld [vmem:[%s606 + $0x48] sm:$0xff]
        %v617 = vld [vmem:[%s606 + $0x50] sm:$0xff]
        %v618 = vld [vmem:[%s606 + $0x58] sm:$0xff]
        %v619 = vld [vmem:[%s606 + $0x60] sm:$0xff]
        %v620 = vld [vmem:[%s606 + $0x68] sm:$0xff]
        %v621 = vld [vmem:[%s606 + $0x70] sm:$0xff]
        %v622 = vld [vmem:[%s606 + $0x78] sm:$0xff]
        %v625 = vunpack.c.l.s4 1966171168
        %v626 = vunpack.c.0.s8 %v625
        %v627 = vlaneseq
        %v628 = vshrl.u32 %v627, 7
        %v629 = vsub.s32 %v626, %v628
        %v630 = vrot.slane %v605, %v629
        %v631 = vcombine.high %v630, %v630
        %v633 = vunpack.c.l.s4 1966171168
        %v634 = vunpack.c.0.s8 %v633
        %v635 = vlaneseq
        %v636 = vshrl.u32 %v635, 7
        %v637 = vsub.s32 %v634, %v636
        %v638 = vrot.slane %v630, %v637
        %v640 = vunpack.c.l.s4 1966171168
        %v641 = vunpack.c.0.s8 %v640
        %v642 = vlaneseq
        %v643 = vshrl.u32 %v642, 7
        %v644 = vsub.s32 %v641, %v643
        %v645 = vrot.slane %v631, %v644
        %v664 = vunpack.c.l.b16 %v607
        %v665 = vunpack.c.h.b16 %v607
        %v666 = vunpack.c.l.b16 %v608
        %v667 = vunpack.c.h.b16 %v608
        %v668 = vunpack.c.l.b16 %v609
        %v669 = vunpack.c.h.b16 %v609
        %v670 = vunpack.c.l.b16 %v610
        %v671 = vunpack.c.h.b16 %v610
        %v672 = vunpack.c.l.b16 %v611
        %v673 = vunpack.c.h.b16 %v611
        %v674 = vunpack.c.l.b16 %v612
        %v675 = vunpack.c.h.b16 %v612
        %v676 = vunpack.c.l.b16 %v613
        %v677 = vunpack.c.h.b16 %v613
        %v678 = vunpack.c.l.b16 %v614
        %v679 = vunpack.c.h.b16 %v614
        %v680 = vunpack.c.l.b16 %v615
        %v681 = vunpack.c.h.b16 %v615
        %v682 = vunpack.c.l.b16 %v616
        %v683 = vunpack.c.h.b16 %v616
        %v684 = vunpack.c.l.b16 %v617
        %v685 = vunpack.c.h.b16 %v617
        %v686 = vunpack.c.l.b16 %v618
        %v687 = vunpack.c.h.b16 %v618
        %v688 = vunpack.c.l.b16 %v619
        %v689 = vunpack.c.h.b16 %v619
        %v690 = vunpack.c.l.b16 %v620
        %v691 = vunpack.c.h.b16 %v620
        %v692 = vunpack.c.l.b16 %v621
        %v693 = vunpack.c.h.b16 %v621
        %v694 = vunpack.c.l.b16 %v622
        %v695 = vunpack.c.h.b16 %v622
        %v696 = vpack.c.b16 %v666, %v664
        %v697 = vpack.c.b16 %v667, %v665
        %v698 = vpack.c.b16 %v670, %v668
        %v699 = vpack.c.b16 %v671, %v669
        %v700 = vpack.c.b16 %v674, %v672
        %v701 = vpack.c.b16 %v675, %v673
        %v702 = vpack.c.b16 %v678, %v676
        %v703 = vpack.c.b16 %v679, %v677
        %v704 = vpack.c.b16 %v682, %v680
        %v705 = vpack.c.b16 %v683, %v681
        %v706 = vpack.c.b16 %v686, %v684
        %v707 = vpack.c.b16 %v687, %v685
        %v708 = vpack.c.b16 %v690, %v688
        %v709 = vpack.c.b16 %v691, %v689
        %v710 = vpack.c.b16 %v694, %v692
        %v711 = vpack.c.b16 %v695, %v693
        %728 = vmatprep.subr.bf16.mxu0 %v697
        %729 = vmatpush1.bf16.xpose.msra.mxu0 %v696
        %730 = vmatprep.subr.bf16.mxu0 %v699
        %731 = vmatpush1.bf16.xpose.msra.mxu0 %v698
        %732 = vmatprep.subr.bf16.mxu0 %v701
        %733 = vmatpush1.bf16.xpose.msra.mxu0 %v700
        %734 = vmatprep.subr.bf16.mxu0 %v703
        %735 = vmatpush1.bf16.xpose.msra.mxu0 %v702
        %736 = vmatprep.subr.bf16.mxu0 %v705
        %737 = vmatpush1.bf16.xpose.msra.mxu0 %v704
        %738 = vmatprep.subr.bf16.mxu0 %v707
        %739 = vmatpush1.bf16.xpose.msra.mxu0 %v706
        %740 = vmatprep.subr.bf16.mxu0 %v709
        %741 = vmatpush1.bf16.xpose.msra.mxu0 %v708
        %742 = vmatprep.subr.bf16.mxu0 %v711
        %743 = vmatpush1.bf16.xpose.msra.mxu0 %v710
        %744 = vmatprep.subr.bf16.mxu0 0
        %745 = vmatpush1.bf16.xpose.msra.mxu0 0
        %746 = vmatprep.subr.bf16.mxu0 0
        %747 = vmatpush1.bf16.xpose.msra.mxu0 0
        %748 = vmatprep.subr.bf16.mxu0 0
        %749 = vmatpush1.bf16.xpose.msra.mxu0 0
        %750 = vmatprep.subr.bf16.mxu0 0
        %751 = vmatpush1.bf16.xpose.msra.mxu0 0
        %752 = vmatprep.subr.bf16.mxu0 0
        %753 = vmatpush1.bf16.xpose.msra.mxu0 0
        %754 = vmatprep.subr.bf16.mxu0 0
        %755 = vmatpush1.bf16.xpose.msra.mxu0 0
        %756 = vmatprep.subr.bf16.mxu0 0
        %757 = vmatpush1.bf16.xpose.msra.mxu0 0
        %758 = vmatprep.subr.bf16.mxu0 0
        %759 = vmatpush1.bf16.xpose.msra.mxu0 0
        %760 = vmatprep.mubr.bf16.mxu0 %v645
        %761 = vmatmul.mubr.bf16.gmra.mrb[0].mxu0 %v638
        %v762 = vpop.f32.mrb[0].mxu0
        %v763 = vadd.f32 0.0, %v762
        %v764 = vpop.f32.mrb[0].mxu0
        %v765 = vpop.f32.mrb[0].mxu0
        %v766 = vpop.f32.mrb[0].mxu0
        %767 = vdwg.mxu0
        %768 = vxpose.xlu0.b32.start [1/16] %v763, 128
        %769 = vxpose.xlu0.b32.cont [2/16] 0.0, 128
        %770 = vxpose.xlu0.b32.cont [3/16] 0.0, 128
        %771 = vxpose.xlu0.b32.cont [4/16] 0.0, 128
        %772 = vxpose.xlu0.b32.cont [5/16] 0.0, 128
        %773 = vxpose.xlu0.b32.cont [6/16] 0.0, 128
        %774 = vxpose.xlu0.b32.cont [7/16] 0.0, 128
        %775 = vxpose.xlu0.b32.cont [8/16] 0.0, 128
        %776 = vxpose.xlu0.b32.cont [9/16] 0.0, 128
        %777 = vxpose.xlu0.b32.cont [10/16] 0.0, 128
        %778 = vxpose.xlu0.b32.cont [11/16] 0.0, 128
        %779 = vxpose.xlu0.b32.cont [12/16] 0.0, 128
        %780 = vxpose.xlu0.b32.cont [13/16] 0.0, 128
        %781 = vxpose.xlu0.b32.cont [14/16] 0.0, 128
        %782 = vxpose.xlu0.b32.cont [15/16] 0.0, 128
        %783 = vxpose.xlu0.b32.end [16/16] 0.0, 128
        %v784 = vpop.trf.xlu0
        %v785 = vpop.trf.xlu0
        %v786 = vpop.trf.xlu0
        %v787 = vpop.trf.xlu0
        %v788 = vpop.trf.xlu0
        %v789 = vpop.trf.xlu0
        %v790 = vpop.trf.xlu0
        %v791 = vpop.trf.xlu0
        %v792 = vpop.trf.xlu0
        %v793 = vpop.trf.xlu0
        %v794 = vpop.trf.xlu0
        %v795 = vpop.trf.xlu0
        %v796 = vpop.trf.xlu0
        %v797 = vpop.trf.xlu0
        %v798 = vpop.trf.xlu0
        %v799 = vpop.trf.xlu0
        %801 = vset.pattern.permute.xlu0 0
        %802 = vperm.xlu0 %801, %v784
        %v803 = vpop.permute.xlu0 %802
        %806 = vset.pattern.permute.xlu0 0
        %807 = vperm.xlu0 %806, %v785
        %v808 = vpop.permute.xlu0 %807
        %811 = vset.pattern.permute.xlu0 0
        %812 = vperm.xlu0 %811, %v786
        %v813 = vpop.permute.xlu0 %812
        %816 = vset.pattern.permute.xlu0 0
        %817 = vperm.xlu0 %816, %v787
        %v818 = vpop.permute.xlu0 %817
        %821 = vset.pattern.permute.xlu0 0
        %822 = vperm.xlu0 %821, %v788
        %v823 = vpop.permute.xlu0 %822
        %826 = vset.pattern.permute.xlu0 0
        %827 = vperm.xlu0 %826, %v789
        %v828 = vpop.permute.xlu0 %827
        %831 = vset.pattern.permute.xlu0 0
        %832 = vperm.xlu0 %831, %v790
        %v833 = vpop.permute.xlu0 %832
        %836 = vset.pattern.permute.xlu0 0
        %837 = vperm.xlu0 %836, %v791
        %v838 = vpop.permute.xlu0 %837
        %841 = vset.pattern.permute.xlu0 0
        %842 = vperm.xlu0 %841, %v792
        %v843 = vpop.permute.xlu0 %842
        %846 = vset.pattern.permute.xlu0 0
        %847 = vperm.xlu0 %846, %v793
        %v848 = vpop.permute.xlu0 %847
        %851 = vset.pattern.permute.xlu0 0
        %852 = vperm.xlu0 %851, %v794
        %v853 = vpop.permute.xlu0 %852
        %856 = vset.pattern.permute.xlu0 0
        %857 = vperm.xlu0 %856, %v795
        %v858 = vpop.permute.xlu0 %857
        %861 = vset.pattern.permute.xlu0 0
        %862 = vperm.xlu0 %861, %v796
        %v863 = vpop.permute.xlu0 %862
        %866 = vset.pattern.permute.xlu0 0
        %867 = vperm.xlu0 %866, %v797
        %v868 = vpop.permute.xlu0 %867
        %871 = vset.pattern.permute.xlu0 0
        %872 = vperm.xlu0 %871, %v798
        %v873 = vpop.permute.xlu0 %872
        %876 = vset.pattern.permute.xlu0 0
        %877 = vperm.xlu0 %876, %v799
        %v878 = vpop.permute.xlu0 %877
        %v880 = vlaneseq
        %v881 = vshrl.u32 %v880, 7
        %v882 = vsub.s32 0, %v881
        %v883 = vrot.slane %v763, %v882
        %vm884 = vcmp.gt.f32.partialorder %v803, %v883
        %vm885 = vcmp.gt.f32.partialorder %v808, %v883
        %vm886 = vcmp.gt.f32.partialorder %v813, %v883
        %vm887 = vcmp.gt.f32.partialorder %v818, %v883
        %vm888 = vcmp.gt.f32.partialorder %v823, %v883
        %vm889 = vcmp.gt.f32.partialorder %v828, %v883
        %vm890 = vcmp.gt.f32.partialorder %v833, %v883
        %vm891 = vcmp.gt.f32.partialorder %v838, %v883
        %vm892 = vcmp.gt.f32.partialorder %v843, %v883
        %vm893 = vcmp.gt.f32.partialorder %v848, %v883
        %vm894 = vcmp.gt.f32.partialorder %v853, %v883
        %vm895 = vcmp.gt.f32.partialorder %v858, %v883
        %vm896 = vcmp.gt.f32.partialorder %v863, %v883
        %vm897 = vcmp.gt.f32.partialorder %v868, %v883
        %vm898 = vcmp.gt.f32.partialorder %v873, %v883
        %vm899 = vcmp.gt.f32.partialorder %v878, %v883
        %vm900 = vcmp.eq.f32.partialorder %v803, %v883
        %vm901 = vcmp.eq.f32.partialorder %v808, %v883
        %vm902 = vcmp.eq.f32.partialorder %v813, %v883
        %vm903 = vcmp.eq.f32.partialorder %v818, %v883
        %vm904 = vcmp.eq.f32.partialorder %v823, %v883
        %vm905 = vcmp.eq.f32.partialorder %v828, %v883
        %vm906 = vcmp.eq.f32.partialorder %v833, %v883
        %vm907 = vcmp.eq.f32.partialorder %v838, %v883
        %vm908 = vcmp.eq.f32.partialorder %v843, %v883
        %vm909 = vcmp.eq.f32.partialorder %v848, %v883
        %vm910 = vcmp.eq.f32.partialorder %v853, %v883
        %vm911 = vcmp.eq.f32.partialorder %v858, %v883
        %vm912 = vcmp.eq.f32.partialorder %v863, %v883
        %vm913 = vcmp.eq.f32.partialorder %v868, %v883
        %vm914 = vcmp.eq.f32.partialorder %v873, %v883
        %vm915 = vcmp.eq.f32.partialorder %v878, %v883
        %vm916 = vmand %vm900, %vm206
        %vm917 = vmand %vm901, %vm207
        %vm918 = vmand %vm902, %vm208
        %vm919 = vmand %vm903, %vm209
        %vm920 = vmand %vm904, %vm210
        %vm921 = vmand %vm905, %vm211
        %vm922 = vmand %vm906, %vm212
        %vm923 = vmand %vm907, %vm213
        %vm924 = vmand %vm908, %vm214
        %vm925 = vmand %vm909, %vm215
        %vm926 = vmand %vm910, %vm216
        %vm927 = vmand %vm911, %vm217
        %vm928 = vmand %vm912, %vm218
        %vm929 = vmand %vm913, %vm219
        %vm930 = vmand %vm914, %vm220
        %vm931 = vmand %vm915, %vm221
        %vm932 = vmor %vm884, %vm916
        %vm933 = vmor %vm885, %vm917
        %vm934 = vmor %vm886, %vm918
        %vm935 = vmor %vm887, %vm919
        %vm936 = vmor %vm888, %vm920
        %vm937 = vmor %vm889, %vm921
        %vm938 = vmor %vm890, %vm922
        %vm939 = vmor %vm891, %vm923
        %vm940 = vmor %vm892, %vm924
        %vm941 = vmor %vm893, %vm925
        %vm942 = vmor %vm894, %vm926
        %vm943 = vmor %vm895, %vm927
        %vm944 = vmor %vm896, %vm928
        %vm945 = vmor %vm897, %vm929
        %vm946 = vmor %vm898, %vm930
        %vm947 = vmor %vm899, %vm931
        %v948 = vsel %vm932, 1, 0
        %v949 = vsel %vm933, 1, 0
        %v950 = vsel %vm934, 1, 0
        %v951 = vsel %vm935, 1, 0
        %v952 = vsel %vm936, 1, 0
        %v953 = vsel %vm937, 1, 0
        %v954 = vsel %vm938, 1, 0
        %v955 = vsel %vm939, 1, 0
        %v956 = vsel %vm940, 1, 0
        %v957 = vsel %vm941, 1, 0
        %v958 = vsel %vm942, 1, 0
        %v959 = vsel %vm943, 1, 0
        %v960 = vsel %vm944, 1, 0
        %v961 = vsel %vm945, 1, 0
        %v962 = vsel %vm946, 1, 0
        %v963 = vsel %vm947, 1, 0
        %v964 = vadd.s32 %v948, %v952
        %v965 = vadd.s32 %v949, %v953
        %v966 = vadd.s32 %v950, %v954
        %v967 = vadd.s32 %v951, %v955
        %v968 = vadd.s32 %v964, %v956
        %v969 = vadd.s32 %v965, %v957
        %v970 = vadd.s32 %v966, %v958
        %v971 = vadd.s32 %v967, %v959
        %v972 = vadd.s32 %v968, %v960
        %v973 = vadd.s32 %v969, %v961
        %v974 = vadd.s32 %v970, %v962
        %v975 = vadd.s32 %v971, %v963
        %v976 = vadd.s32 %v972, %v973
        %v977 = vadd.s32 %v974, %v975
        %v978 = vadd.s32 %v976, %v977
        %v979 = vrot.slane %v978, 4
        %v980 = vadd.s32 %v978, %v979
        %v981 = vrot.slane %v980, 2
        %v982 = vadd.s32 %v980, %v981
        %v983 = vrot.slane %v982, 1
        %v984 = vadd.s32 %v982, %v983
        %vm985 = vcmp.lt.s32.totalorder %v984, 10
        %v986 = vsel %vm985, 1, 0
        %v987 = vcvt.s32.f32 %v986
        %s988 = scalar_lea.vmem %s184, 4
        %v989 = vld [vmem:[%s988] sm:$0x3]
        %s990 = scalar_lea.vmem %s153, 256 [#allocation2]
        %v991 = vld [vmem:[%s990] sm:$0xff]
        %v992 = vld [vmem:[%s990 + $0x8] sm:$0xff]
        %v993 = vld [vmem:[%s990 + $0x10] sm:$0xff]
        %v994 = vld [vmem:[%s990 + $0x18] sm:$0xff]
        %v995 = vld [vmem:[%s990 + $0x20] sm:$0xff]
        %v996 = vld [vmem:[%s990 + $0x28] sm:$0xff]
        %v997 = vld [vmem:[%s990 + $0x30] sm:$0xff]
        %v998 = vld [vmem:[%s990 + $0x38] sm:$0xff]
        %v999 = vld [vmem:[%s990 + $0x40] sm:$0xff]
        %v1000 = vld [vmem:[%s990 + $0x48] sm:$0xff]
        %v1001 = vld [vmem:[%s990 + $0x50] sm:$0xff]
        %v1002 = vld [vmem:[%s990 + $0x58] sm:$0xff]
        %v1003 = vld [vmem:[%s990 + $0x60] sm:$0xff]
        %v1004 = vld [vmem:[%s990 + $0x68] sm:$0xff]
        %v1005 = vld [vmem:[%s990 + $0x70] sm:$0xff]
        %v1006 = vld [vmem:[%s990 + $0x78] sm:$0xff]
        %v1009 = vunpack.c.l.s4 1966171168
        %v1010 = vunpack.c.0.s8 %v1009
        %v1011 = vlaneseq
        %v1012 = vshrl.u32 %v1011, 7
        %v1013 = vsub.s32 %v1010, %v1012
        %v1014 = vrot.slane %v989, %v1013
        %v1015 = vcombine.high %v1014, %v1014
        %v1017 = vunpack.c.l.s4 1966171168
        %v1018 = vunpack.c.0.s8 %v1017
        %v1019 = vlaneseq
        %v1020 = vshrl.u32 %v1019, 7
        %v1021 = vsub.s32 %v1018, %v1020
        %v1022 = vrot.slane %v1014, %v1021
        %v1024 = vunpack.c.l.s4 1966171168
        %v1025 = vunpack.c.0.s8 %v1024
        %v1026 = vlaneseq
        %v1027 = vshrl.u32 %v1026, 7
        %v1028 = vsub.s32 %v1025, %v1027
        %v1029 = vrot.slane %v1015, %v1028
        %v1048 = vunpack.c.l.b16 %v991
        %v1049 = vunpack.c.h.b16 %v991
        %v1050 = vunpack.c.l.b16 %v992
        %v1051 = vunpack.c.h.b16 %v992
        %v1052 = vunpack.c.l.b16 %v993
        %v1053 = vunpack.c.h.b16 %v993
        %v1054 = vunpack.c.l.b16 %v994
        %v1055 = vunpack.c.h.b16 %v994
        %v1056 = vunpack.c.l.b16 %v995
        %v1057 = vunpack.c.h.b16 %v995
        %v1058 = vunpack.c.l.b16 %v996
        %v1059 = vunpack.c.h.b16 %v996
        %v1060 = vunpack.c.l.b16 %v997
        %v1061 = vunpack.c.h.b16 %v997
        %v1062 = vunpack.c.l.b16 %v998
        %v1063 = vunpack.c.h.b16 %v998
        %v1064 = vunpack.c.l.b16 %v999
        %v1065 = vunpack.c.h.b16 %v999
        %v1066 = vunpack.c.l.b16 %v1000
        %v1067 = vunpack.c.h.b16 %v1000
        %v1068 = vunpack.c.l.b16 %v1001
        %v1069 = vunpack.c.h.b16 %v1001
        %v1070 = vunpack.c.l.b16 %v1002
        %v1071 = vunpack.c.h.b16 %v1002
        %v1072 = vunpack.c.l.b16 %v1003
        %v1073 = vunpack.c.h.b16 %v1003
        %v1074 = vunpack.c.l.b16 %v1004
        %v1075 = vunpack.c.h.b16 %v1004
        %v1076 = vunpack.c.l.b16 %v1005
        %v1077 = vunpack.c.h.b16 %v1005
        %v1078 = vunpack.c.l.b16 %v1006
        %v1079 = vunpack.c.h.b16 %v1006
        %v1080 = vpack.c.b16 %v1050, %v1048
        %v1081 = vpack.c.b16 %v1051, %v1049
        %v1082 = vpack.c.b16 %v1054, %v1052
        %v1083 = vpack.c.b16 %v1055, %v1053
        %v1084 = vpack.c.b16 %v1058, %v1056
        %v1085 = vpack.c.b16 %v1059, %v1057
        %v1086 = vpack.c.b16 %v1062, %v1060
        %v1087 = vpack.c.b16 %v1063, %v1061
        %v1088 = vpack.c.b16 %v1066, %v1064
        %v1089 = vpack.c.b16 %v1067, %v1065
        %v1090 = vpack.c.b16 %v1070, %v1068
        %v1091 = vpack.c.b16 %v1071, %v1069
        %v1092 = vpack.c.b16 %v1074, %v1072
        %v1093 = vpack.c.b16 %v1075, %v1073
        %v1094 = vpack.c.b16 %v1078, %v1076
        %v1095 = vpack.c.b16 %v1079, %v1077
        %1112 = vmatprep.subr.bf16.mxu0 %v1081
        %1113 = vmatpush1.bf16.xpose.msra.mxu0 %v1080
        %1114 = vmatprep.subr.bf16.mxu0 %v1083
        %1115 = vmatpush1.bf16.xpose.msra.mxu0 %v1082
        %1116 = vmatprep.subr.bf16.mxu0 %v1085
        %1117 = vmatpush1.bf16.xpose.msra.mxu0 %v1084
        %1118 = vmatprep.subr.bf16.mxu0 %v1087
        %1119 = vmatpush1.bf16.xpose.msra.mxu0 %v1086
        %1120 = vmatprep.subr.bf16.mxu0 %v1089
        %1121 = vmatpush1.bf16.xpose.msra.mxu0 %v1088
        %1122 = vmatprep.subr.bf16.mxu0 %v1091
        %1123 = vmatpush1.bf16.xpose.msra.mxu0 %v1090
        %1124 = vmatprep.subr.bf16.mxu0 %v1093
        %1125 = vmatpush1.bf16.xpose.msra.mxu0 %v1092
        %1126 = vmatprep.subr.bf16.mxu0 %v1095
        %1127 = vmatpush1.bf16.xpose.msra.mxu0 %v1094
        %1128 = vmatprep.subr.bf16.mxu0 0
        %1129 = vmatpush1.bf16.xpose.msra.mxu0 0
        %1130 = vmatprep.subr.bf16.mxu0 0
        %1131 = vmatpush1.bf16.xpose.msra.mxu0 0
        %1132 = vmatprep.subr.bf16.mxu0 0
        %1133 = vmatpush1.bf16.xpose.msra.mxu0 0
        %1134 = vmatprep.subr.bf16.mxu0 0
        %1135 = vmatpush1.bf16.xpose.msra.mxu0 0
        %1136 = vmatprep.subr.bf16.mxu0 0
        %1137 = vmatpush1.bf16.xpose.msra.mxu0 0
        %1138 = vmatprep.subr.bf16.mxu0 0
        %1139 = vmatpush1.bf16.xpose.msra.mxu0 0
        %1140 = vmatprep.subr.bf16.mxu0 0
        %1141 = vmatpush1.bf16.xpose.msra.mxu0 0
        %1142 = vmatprep.subr.bf16.mxu0 0
        %1143 = vmatpush1.bf16.xpose.msra.mxu0 0
        %1144 = vmatprep.mubr.bf16.mxu0 %v1029
        %1145 = vmatmul.mubr.bf16.gmra.mrb[0].mxu0 %v1022
        %v1146 = vpop.f32.mrb[0].mxu0
        %v1147 = vadd.f32 0.0, %v1146
        %v1148 = vpop.f32.mrb[0].mxu0
        %v1149 = vpop.f32.mrb[0].mxu0
        %v1150 = vpop.f32.mrb[0].mxu0
        %1151 = vdwg.mxu0
        %1152 = vxpose.xlu0.b32.start [1/16] %v1147, 128
        %1153 = vxpose.xlu0.b32.cont [2/16] 0.0, 128
        %1154 = vxpose.xlu0.b32.cont [3/16] 0.0, 128
        %1155 = vxpose.xlu0.b32.cont [4/16] 0.0, 128
        %1156 = vxpose.xlu0.b32.cont [5/16] 0.0, 128
        %1157 = vxpose.xlu0.b32.cont [6/16] 0.0, 128
        %1158 = vxpose.xlu0.b32.cont [7/16] 0.0, 128
        %1159 = vxpose.xlu0.b32.cont [8/16] 0.0, 128
        %1160 = vxpose.xlu0.b32.cont [9/16] 0.0, 128
        %1161 = vxpose.xlu0.b32.cont [10/16] 0.0, 128
        %1162 = vxpose.xlu0.b32.cont [11/16] 0.0, 128
        %1163 = vxpose.xlu0.b32.cont [12/16] 0.0, 128
        %1164 = vxpose.xlu0.b32.cont [13/16] 0.0, 128
        %1165 = vxpose.xlu0.b32.cont [14/16] 0.0, 128
        %1166 = vxpose.xlu0.b32.cont [15/16] 0.0, 128
        %1167 = vxpose.xlu0.b32.end [16/16] 0.0, 128
        %v1168 = vpop.trf.xlu0
        %v1169 = vpop.trf.xlu0
        %v1170 = vpop.trf.xlu0
        %v1171 = vpop.trf.xlu0
        %v1172 = vpop.trf.xlu0
        %v1173 = vpop.trf.xlu0
        %v1174 = vpop.trf.xlu0
        %v1175 = vpop.trf.xlu0
        %v1176 = vpop.trf.xlu0
        %v1177 = vpop.trf.xlu0
        %v1178 = vpop.trf.xlu0
        %v1179 = vpop.trf.xlu0
        %v1180 = vpop.trf.xlu0
        %v1181 = vpop.trf.xlu0
        %v1182 = vpop.trf.xlu0
        %v1183 = vpop.trf.xlu0
        %1185 = vset.pattern.permute.xlu0 0
        %1186 = vperm.xlu0 %1185, %v1168
        %v1187 = vpop.permute.xlu0 %1186
        %1190 = vset.pattern.permute.xlu0 0
        %1191 = vperm.xlu0 %1190, %v1169
        %v1192 = vpop.permute.xlu0 %1191
        %1195 = vset.pattern.permute.xlu0 0
        %1196 = vperm.xlu0 %1195, %v1170
        %v1197 = vpop.permute.xlu0 %1196
        %1200 = vset.pattern.permute.xlu0 0
        %1201 = vperm.xlu0 %1200, %v1171
        %v1202 = vpop.permute.xlu0 %1201
        %1205 = vset.pattern.permute.xlu0 0
        %1206 = vperm.xlu0 %1205, %v1172
        %v1207 = vpop.permute.xlu0 %1206
        %1210 = vset.pattern.permute.xlu0 0
        %1211 = vperm.xlu0 %1210, %v1173
        %v1212 = vpop.permute.xlu0 %1211
        %1215 = vset.pattern.permute.xlu0 0
        %1216 = vperm.xlu0 %1215, %v1174
        %v1217 = vpop.permute.xlu0 %1216
        %1220 = vset.pattern.permute.xlu0 0
        %1221 = vperm.xlu0 %1220, %v1175
        %v1222 = vpop.permute.xlu0 %1221
        %1225 = vset.pattern.permute.xlu0 0
        %1226 = vperm.xlu0 %1225, %v1176
        %v1227 = vpop.permute.xlu0 %1226
        %1230 = vset.pattern.permute.xlu0 0
        %1231 = vperm.xlu0 %1230, %v1177
        %v1232 = vpop.permute.xlu0 %1231
        %1235 = vset.pattern.permute.xlu0 0
        %1236 = vperm.xlu0 %1235, %v1178
        %v1237 = vpop.permute.xlu0 %1236
        %1240 = vset.pattern.permute.xlu0 0
        %1241 = vperm.xlu0 %1240, %v1179
        %v1242 = vpop.permute.xlu0 %1241
        %1245 = vset.pattern.permute.xlu0 0
        %1246 = vperm.xlu0 %1245, %v1180
        %v1247 = vpop.permute.xlu0 %1246
        %1250 = vset.pattern.permute.xlu0 0
        %1251 = vperm.xlu0 %1250, %v1181
        %v1252 = vpop.permute.xlu0 %1251
        %1255 = vset.pattern.permute.xlu0 0
        %1256 = vperm.xlu0 %1255, %v1182
        %v1257 = vpop.permute.xlu0 %1256
        %1260 = vset.pattern.permute.xlu0 0
        %1261 = vperm.xlu0 %1260, %v1183
        %v1262 = vpop.permute.xlu0 %1261
        %v1264 = vlaneseq
        %v1265 = vshrl.u32 %v1264, 7
        %v1266 = vsub.s32 0, %v1265
        %v1267 = vrot.slane %v1147, %v1266
        %vm1268 = vcmp.gt.f32.partialorder %v1187, %v1267
        %vm1269 = vcmp.gt.f32.partialorder %v1192, %v1267
        %vm1270 = vcmp.gt.f32.partialorder %v1197, %v1267
        %vm1271 = vcmp.gt.f32.partialorder %v1202, %v1267
        %vm1272 = vcmp.gt.f32.partialorder %v1207, %v1267
        %vm1273 = vcmp.gt.f32.partialorder %v1212, %v1267
        %vm1274 = vcmp.gt.f32.partialorder %v1217, %v1267
        %vm1275 = vcmp.gt.f32.partialorder %v1222, %v1267
        %vm1276 = vcmp.gt.f32.partialorder %v1227, %v1267
        %vm1277 = vcmp.gt.f32.partialorder %v1232, %v1267
        %vm1278 = vcmp.gt.f32.partialorder %v1237, %v1267
        %vm1279 = vcmp.gt.f32.partialorder %v1242, %v1267
        %vm1280 = vcmp.gt.f32.partialorder %v1247, %v1267
        %vm1281 = vcmp.gt.f32.partialorder %v1252, %v1267
        %vm1282 = vcmp.gt.f32.partialorder %v1257, %v1267
        %vm1283 = vcmp.gt.f32.partialorder %v1262, %v1267
        %vm1284 = vcmp.eq.f32.partialorder %v1187, %v1267
        %vm1285 = vcmp.eq.f32.partialorder %v1192, %v1267
        %vm1286 = vcmp.eq.f32.partialorder %v1197, %v1267
        %vm1287 = vcmp.eq.f32.partialorder %v1202, %v1267
        %vm1288 = vcmp.eq.f32.partialorder %v1207, %v1267
        %vm1289 = vcmp.eq.f32.partialorder %v1212, %v1267
        %vm1290 = vcmp.eq.f32.partialorder %v1217, %v1267
        %vm1291 = vcmp.eq.f32.partialorder %v1222, %v1267
        %vm1292 = vcmp.eq.f32.partialorder %v1227, %v1267
        %vm1293 = vcmp.eq.f32.partialorder %v1232, %v1267
        %vm1294 = vcmp.eq.f32.partialorder %v1237, %v1267
        %vm1295 = vcmp.eq.f32.partialorder %v1242, %v1267
        %vm1296 = vcmp.eq.f32.partialorder %v1247, %v1267
        %vm1297 = vcmp.eq.f32.partialorder %v1252, %v1267
        %vm1298 = vcmp.eq.f32.partialorder %v1257, %v1267
        %vm1299 = vcmp.eq.f32.partialorder %v1262, %v1267
        %vm1300 = vmand %vm1284, %vm206
        %vm1301 = vmand %vm1285, %vm207
        %vm1302 = vmand %vm1286, %vm208
        %vm1303 = vmand %vm1287, %vm209
        %vm1304 = vmand %vm1288, %vm210
        %vm1305 = vmand %vm1289, %vm211
        %vm1306 = vmand %vm1290, %vm212
        %vm1307 = vmand %vm1291, %vm213
        %vm1308 = vmand %vm1292, %vm214
        %vm1309 = vmand %vm1293, %vm215
        %vm1310 = vmand %vm1294, %vm216
        %vm1311 = vmand %vm1295, %vm217
        %vm1312 = vmand %vm1296, %vm218
        %vm1313 = vmand %vm1297, %vm219
        %vm1314 = vmand %vm1298, %vm220
        %vm1315 = vmand %vm1299, %vm221
        %vm1316 = vmor %vm1268, %vm1300
        %vm1317 = vmor %vm1269, %vm1301
        %vm1318 = vmor %vm1270, %vm1302
        %vm1319 = vmor %vm1271, %vm1303
        %vm1320 = vmor %vm1272, %vm1304
        %vm1321 = vmor %vm1273, %vm1305
        %vm1322 = vmor %vm1274, %vm1306
        %vm1323 = vmor %vm1275, %vm1307
        %vm1324 = vmor %vm1276, %vm1308
        %vm1325 = vmor %vm1277, %vm1309
        %vm1326 = vmor %vm1278, %vm1310
        %vm1327 = vmor %vm1279, %vm1311
        %vm1328 = vmor %vm1280, %vm1312
        %vm1329 = vmor %vm1281, %vm1313
        %vm1330 = vmor %vm1282, %vm1314
        %vm1331 = vmor %vm1283, %vm1315
        %v1332 = vsel %vm1316, 1, 0
        %v1333 = vsel %vm1317, 1, 0
        %v1334 = vsel %vm1318, 1, 0
        %v1335 = vsel %vm1319, 1, 0
        %v1336 = vsel %vm1320, 1, 0
        %v1337 = vsel %vm1321, 1, 0
        %v1338 = vsel %vm1322, 1, 0
        %v1339 = vsel %vm1323, 1, 0
        %v1340 = vsel %vm1324, 1, 0
        %v1341 = vsel %vm1325, 1, 0
        %v1342 = vsel %vm1326, 1, 0
        %v1343 = vsel %vm1327, 1, 0
        %v1344 = vsel %vm1328, 1, 0
        %v1345 = vsel %vm1329, 1, 0
        %v1346 = vsel %vm1330, 1, 0
        %v1347 = vsel %vm1331, 1, 0
        %v1348 = vadd.s32 %v1332, %v1336
        %v1349 = vadd.s32 %v1333, %v1337
        %v1350 = vadd.s32 %v1334, %v1338
        %v1351 = vadd.s32 %v1335, %v1339
        %v1352 = vadd.s32 %v1348, %v1340
        %v1353 = vadd.s32 %v1349, %v1341
        %v1354 = vadd.s32 %v1350, %v1342
        %v1355 = vadd.s32 %v1351, %v1343
        %v1356 = vadd.s32 %v1352, %v1344
        %v1357 = vadd.s32 %v1353, %v1345
        %v1358 = vadd.s32 %v1354, %v1346
        %v1359 = vadd.s32 %v1355, %v1347
        %v1360 = vadd.s32 %v1356, %v1357
        %v1361 = vadd.s32 %v1358, %v1359
        %v1362 = vadd.s32 %v1360, %v1361
        %v1363 = vrot.slane %v1362, 4
        %v1364 = vadd.s32 %v1362, %v1363
        %v1365 = vrot.slane %v1364, 2
        %v1366 = vadd.s32 %v1364, %v1365
        %v1367 = vrot.slane %v1366, 1
        %v1368 = vadd.s32 %v1366, %v1367
        %vm1369 = vcmp.lt.s32.totalorder %v1368, 10
        %v1370 = vsel %vm1369, 1, 0
        %v1371 = vcvt.s32.f32 %v1370
        %s1372 = scalar_lea.vmem %s184, 6
        %v1373 = vld [vmem:[%s1372] sm:$0x3]
        %s1374 = scalar_lea.vmem %s153, 384 [#allocation2]
        %v1375 = vld [vmem:[%s1374] sm:$0xff]
        %v1376 = vld [vmem:[%s1374 + $0x8] sm:$0xff]
        %v1377 = vld [vmem:[%s1374 + $0x10] sm:$0xff]
        %v1378 = vld [vmem:[%s1374 + $0x18] sm:$0xff]
        %v1379 = vld [vmem:[%s1374 + $0x20] sm:$0xff]
        %v1380 = vld [vmem:[%s1374 + $0x28] sm:$0xff]
        %v1381 = vld [vmem:[%s1374 + $0x30] sm:$0xff]
        %v1382 = vld [vmem:[%s1374 + $0x38] sm:$0xff]
        %v1383 = vld [vmem:[%s1374 + $0x40] sm:$0xff]
        %v1384 = vld [vmem:[%s1374 + $0x48] sm:$0xff]
        %v1385 = vld [vmem:[%s1374 + $0x50] sm:$0xff]
        %v1386 = vld [vmem:[%s1374 + $0x58] sm:$0xff]
        %v1387 = vld [vmem:[%s1374 + $0x60] sm:$0xff]
        %v1388 = vld [vmem:[%s1374 + $0x68] sm:$0xff]
        %v1389 = vld [vmem:[%s1374 + $0x70] sm:$0xff]
        %v1390 = vld [vmem:[%s1374 + $0x78] sm:$0xff]
        %v1393 = vunpack.c.l.s4 1966171168
        %v1394 = vunpack.c.0.s8 %v1393
        %v1395 = vlaneseq
        %v1396 = vshrl.u32 %v1395, 7
        %v1397 = vsub.s32 %v1394, %v1396
        %v1398 = vrot.slane %v1373, %v1397
        %v1399 = vcombine.high %v1398, %v1398
        %v1401 = vunpack.c.l.s4 1966171168
        %v1402 = vunpack.c.0.s8 %v1401
        %v1403 = vlaneseq
        %v1404 = vshrl.u32 %v1403, 7
        %v1405 = vsub.s32 %v1402, %v1404
        %v1406 = vrot.slane %v1398, %v1405
        %v1408 = vunpack.c.l.s4 1966171168
        %v1409 = vunpack.c.0.s8 %v1408
        %v1410 = vlaneseq
        %v1411 = vshrl.u32 %v1410, 7
        %v1412 = vsub.s32 %v1409, %v1411
        %v1413 = vrot.slane %v1399, %v1412
        %v1432 = vunpack.c.l.b16 %v1375
        %v1433 = vunpack.c.h.b16 %v1375
        %v1434 = vunpack.c.l.b16 %v1376
        %v1435 = vunpack.c.h.b16 %v1376
        %v1436 = vunpack.c.l.b16 %v1377
        %v1437 = vunpack.c.h.b16 %v1377
        %v1438 = vunpack.c.l.b16 %v1378
        %v1439 = vunpack.c.h.b16 %v1378
        %v1440 = vunpack.c.l.b16 %v1379
        %v1441 = vunpack.c.h.b16 %v1379
        %v1442 = vunpack.c.l.b16 %v1380
        %v1443 = vunpack.c.h.b16 %v1380
        %v1444 = vunpack.c.l.b16 %v1381
        %v1445 = vunpack.c.h.b16 %v1381
        %v1446 = vunpack.c.l.b16 %v1382
        %v1447 = vunpack.c.h.b16 %v1382
        %v1448 = vunpack.c.l.b16 %v1383
        %v1449 = vunpack.c.h.b16 %v1383
        %v1450 = vunpack.c.l.b16 %v1384
        %v1451 = vunpack.c.h.b16 %v1384
        %v1452 = vunpack.c.l.b16 %v1385
        %v1453 = vunpack.c.h.b16 %v1385
        %v1454 = vunpack.c.l.b16 %v1386
        %v1455 = vunpack.c.h.b16 %v1386
        %v1456 = vunpack.c.l.b16 %v1387
        %v1457 = vunpack.c.h.b16 %v1387
        %v1458 = vunpack.c.l.b16 %v1388
        %v1459 = vunpack.c.h.b16 %v1388
        %v1460 = vunpack.c.l.b16 %v1389
        %v1461 = vunpack.c.h.b16 %v1389
        %v1462 = vunpack.c.l.b16 %v1390
        %v1463 = vunpack.c.h.b16 %v1390
        %v1464 = vpack.c.b16 %v1434, %v1432
        %v1465 = vpack.c.b16 %v1435, %v1433
        %v1466 = vpack.c.b16 %v1438, %v1436
        %v1467 = vpack.c.b16 %v1439, %v1437
        %v1468 = vpack.c.b16 %v1442, %v1440
        %v1469 = vpack.c.b16 %v1443, %v1441
        %v1470 = vpack.c.b16 %v1446, %v1444
        %v1471 = vpack.c.b16 %v1447, %v1445
        %v1472 = vpack.c.b16 %v1450, %v1448
        %v1473 = vpack.c.b16 %v1451, %v1449
        %v1474 = vpack.c.b16 %v1454, %v1452
        %v1475 = vpack.c.b16 %v1455, %v1453
        %v1476 = vpack.c.b16 %v1458, %v1456
        %v1477 = vpack.c.b16 %v1459, %v1457
        %v1478 = vpack.c.b16 %v1462, %v1460
        %v1479 = vpack.c.b16 %v1463, %v1461
        %1496 = vmatprep.subr.bf16.mxu0 %v1465
        %1497 = vmatpush1.bf16.xpose.msra.mxu0 %v1464
        %1498 = vmatprep.subr.bf16.mxu0 %v1467
        %1499 = vmatpush1.bf16.xpose.msra.mxu0 %v1466
        %1500 = vmatprep.subr.bf16.mxu0 %v1469
        %1501 = vmatpush1.bf16.xpose.msra.mxu0 %v1468
        %1502 = vmatprep.subr.bf16.mxu0 %v1471
        %1503 = vmatpush1.bf16.xpose.msra.mxu0 %v1470
        %1504 = vmatprep.subr.bf16.mxu0 %v1473
        %1505 = vmatpush1.bf16.xpose.msra.mxu0 %v1472
        %1506 = vmatprep.subr.bf16.mxu0 %v1475
        %1507 = vmatpush1.bf16.xpose.msra.mxu0 %v1474
        %1508 = vmatprep.subr.bf16.mxu0 %v1477
        %1509 = vmatpush1.bf16.xpose.msra.mxu0 %v1476
        %1510 = vmatprep.subr.bf16.mxu0 %v1479
        %1511 = vmatpush1.bf16.xpose.msra.mxu0 %v1478
        %1512 = vmatprep.subr.bf16.mxu0 0
        %1513 = vmatpush1.bf16.xpose.msra.mxu0 0
        %1514 = vmatprep.subr.bf16.mxu0 0
        %1515 = vmatpush1.bf16.xpose.msra.mxu0 0
        %1516 = vmatprep.subr.bf16.mxu0 0
        %1517 = vmatpush1.bf16.xpose.msra.mxu0 0
        %1518 = vmatprep.subr.bf16.mxu0 0
        %1519 = vmatpush1.bf16.xpose.msra.mxu0 0
        %1520 = vmatprep.subr.bf16.mxu0 0
        %1521 = vmatpush1.bf16.xpose.msra.mxu0 0
        %1522 = vmatprep.subr.bf16.mxu0 0
        %1523 = vmatpush1.bf16.xpose.msra.mxu0 0
        %1524 = vmatprep.subr.bf16.mxu0 0
        %1525 = vmatpush1.bf16.xpose.msra.mxu0 0
        %1526 = vmatprep.subr.bf16.mxu0 0
        %1527 = vmatpush1.bf16.xpose.msra.mxu0 0
        %1528 = vmatprep.mubr.bf16.mxu0 %v1413
        %1529 = vmatmul.mubr.bf16.gmra.mrb[0].mxu0 %v1406
        %v1530 = vpop.f32.mrb[0].mxu0
        %v1531 = vadd.f32 0.0, %v1530
        %v1532 = vpop.f32.mrb[0].mxu0
        %v1533 = vpop.f32.mrb[0].mxu0
        %v1534 = vpop.f32.mrb[0].mxu0
        %1535 = vdwg.mxu0
        %1536 = vxpose.xlu0.b32.start [1/16] %v1531, 128
        %1537 = vxpose.xlu0.b32.cont [2/16] 0.0, 128
        %1538 = vxpose.xlu0.b32.cont [3/16] 0.0, 128
        %1539 = vxpose.xlu0.b32.cont [4/16] 0.0, 128
        %1540 = vxpose.xlu0.b32.cont [5/16] 0.0, 128
        %1541 = vxpose.xlu0.b32.cont [6/16] 0.0, 128
        %1542 = vxpose.xlu0.b32.cont [7/16] 0.0, 128
        %1543 = vxpose.xlu0.b32.cont [8/16] 0.0, 128
        %1544 = vxpose.xlu0.b32.cont [9/16] 0.0, 128
        %1545 = vxpose.xlu0.b32.cont [10/16] 0.0, 128
        %1546 = vxpose.xlu0.b32.cont [11/16] 0.0, 128
        %1547 = vxpose.xlu0.b32.cont [12/16] 0.0, 128
        %1548 = vxpose.xlu0.b32.cont [13/16] 0.0, 128
        %1549 = vxpose.xlu0.b32.cont [14/16] 0.0, 128
        %1550 = vxpose.xlu0.b32.cont [15/16] 0.0, 128
        %1551 = vxpose.xlu0.b32.end [16/16] 0.0, 128
        %v1552 = vpop.trf.xlu0
        %v1553 = vpop.trf.xlu0
        %v1554 = vpop.trf.xlu0
        %v1555 = vpop.trf.xlu0
        %v1556 = vpop.trf.xlu0
        %v1557 = vpop.trf.xlu0
        %v1558 = vpop.trf.xlu0
        %v1559 = vpop.trf.xlu0
        %v1560 = vpop.trf.xlu0
        %v1561 = vpop.trf.xlu0
        %v1562 = vpop.trf.xlu0
        %v1563 = vpop.trf.xlu0
        %v1564 = vpop.trf.xlu0
        %v1565 = vpop.trf.xlu0
        %v1566 = vpop.trf.xlu0
        %v1567 = vpop.trf.xlu0
        %1569 = vset.pattern.permute.xlu0 0
        %1570 = vperm.xlu0 %1569, %v1552
        %v1571 = vpop.permute.xlu0 %1570
        %1574 = vset.pattern.permute.xlu0 0
        %1575 = vperm.xlu0 %1574, %v1553
        %v1576 = vpop.permute.xlu0 %1575
        %1579 = vset.pattern.permute.xlu0 0
        %1580 = vperm.xlu0 %1579, %v1554
        %v1581 = vpop.permute.xlu0 %1580
        %1584 = vset.pattern.permute.xlu0 0
        %1585 = vperm.xlu0 %1584, %v1555
        %v1586 = vpop.permute.xlu0 %1585
        %1589 = vset.pattern.permute.xlu0 0
        %1590 = vperm.xlu0 %1589, %v1556
        %v1591 = vpop.permute.xlu0 %1590
        %1594 = vset.pattern.permute.xlu0 0
        %1595 = vperm.xlu0 %1594, %v1557
        %v1596 = vpop.permute.xlu0 %1595
        %1599 = vset.pattern.permute.xlu0 0
        %1600 = vperm.xlu0 %1599, %v1558
        %v1601 = vpop.permute.xlu0 %1600
        %1604 = vset.pattern.permute.xlu0 0
        %1605 = vperm.xlu0 %1604, %v1559
        %v1606 = vpop.permute.xlu0 %1605
        %1609 = vset.pattern.permute.xlu0 0
        %1610 = vperm.xlu0 %1609, %v1560
        %v1611 = vpop.permute.xlu0 %1610
        %1614 = vset.pattern.permute.xlu0 0
        %1615 = vperm.xlu0 %1614, %v1561
        %v1616 = vpop.permute.xlu0 %1615
        %1619 = vset.pattern.permute.xlu0 0
        %1620 = vperm.xlu0 %1619, %v1562
        %v1621 = vpop.permute.xlu0 %1620
        %1624 = vset.pattern.permute.xlu0 0
        %1625 = vperm.xlu0 %1624, %v1563
        %v1626 = vpop.permute.xlu0 %1625
        %1629 = vset.pattern.permute.xlu0 0
        %1630 = vperm.xlu0 %1629, %v1564
        %v1631 = vpop.permute.xlu0 %1630
        %1634 = vset.pattern.permute.xlu0 0
        %1635 = vperm.xlu0 %1634, %v1565
        %v1636 = vpop.permute.xlu0 %1635
        %1639 = vset.pattern.permute.xlu0 0
        %1640 = vperm.xlu0 %1639, %v1566
        %v1641 = vpop.permute.xlu0 %1640
        %1644 = vset.pattern.permute.xlu0 0
        %1645 = vperm.xlu0 %1644, %v1567
        %v1646 = vpop.permute.xlu0 %1645
        %v1648 = vlaneseq
        %v1649 = vshrl.u32 %v1648, 7
        %v1650 = vsub.s32 0, %v1649
        %v1651 = vrot.slane %v1531, %v1650
        %vm1652 = vcmp.gt.f32.partialorder %v1571, %v1651
        %vm1653 = vcmp.gt.f32.partialorder %v1576, %v1651
        %vm1654 = vcmp.gt.f32.partialorder %v1581, %v1651
        %vm1655 = vcmp.gt.f32.partialorder %v1586, %v1651
        %vm1656 = vcmp.gt.f32.partialorder %v1591, %v1651
        %vm1657 = vcmp.gt.f32.partialorder %v1596, %v1651
        %vm1658 = vcmp.gt.f32.partialorder %v1601, %v1651
        %vm1659 = vcmp.gt.f32.partialorder %v1606, %v1651
        %vm1660 = vcmp.gt.f32.partialorder %v1611, %v1651
        %vm1661 = vcmp.gt.f32.partialorder %v1616, %v1651
        %vm1662 = vcmp.gt.f32.partialorder %v1621, %v1651
        %vm1663 = vcmp.gt.f32.partialorder %v1626, %v1651
        %vm1664 = vcmp.gt.f32.partialorder %v1631, %v1651
        %vm1665 = vcmp.gt.f32.partialorder %v1636, %v1651
        %vm1666 = vcmp.gt.f32.partialorder %v1641, %v1651
        %vm1667 = vcmp.gt.f32.partialorder %v1646, %v1651
        %vm1668 = vcmp.eq.f32.partialorder %v1571, %v1651
        %vm1669 = vcmp.eq.f32.partialorder %v1576, %v1651
        %vm1670 = vcmp.eq.f32.partialorder %v1581, %v1651
        %vm1671 = vcmp.eq.f32.partialorder %v1586, %v1651
        %vm1672 = vcmp.eq.f32.partialorder %v1591, %v1651
        %vm1673 = vcmp.eq.f32.partialorder %v1596, %v1651
        %vm1674 = vcmp.eq.f32.partialorder %v1601, %v1651
        %vm1675 = vcmp.eq.f32.partialorder %v1606, %v1651
        %vm1676 = vcmp.eq.f32.partialorder %v1611, %v1651
        %vm1677 = vcmp.eq.f32.partialorder %v1616, %v1651
        %vm1678 = vcmp.eq.f32.partialorder %v1621, %v1651
        %vm1679 = vcmp.eq.f32.partialorder %v1626, %v1651
        %vm1680 = vcmp.eq.f32.partialorder %v1631, %v1651
        %vm1681 = vcmp.eq.f32.partialorder %v1636, %v1651
        %vm1682 = vcmp.eq.f32.partialorder %v1641, %v1651
        %vm1683 = vcmp.eq.f32.partialorder %v1646, %v1651
        %vm1684 = vmand %vm1668, %vm206
        %vm1685 = vmand %vm1669, %vm207
        %vm1686 = vmand %vm1670, %vm208
        %vm1687 = vmand %vm1671, %vm209
        %vm1688 = vmand %vm1672, %vm210
        %vm1689 = vmand %vm1673, %vm211
        %vm1690 = vmand %vm1674, %vm212
        %vm1691 = vmand %vm1675, %vm213
        %vm1692 = vmand %vm1676, %vm214
        %vm1693 = vmand %vm1677, %vm215
        %vm1694 = vmand %vm1678, %vm216
        %vm1695 = vmand %vm1679, %vm217
        %vm1696 = vmand %vm1680, %vm218
        %vm1697 = vmand %vm1681, %vm219
        %vm1698 = vmand %vm1682, %vm220
        %vm1699 = vmand %vm1683, %vm221
        %vm1700 = vmor %vm1652, %vm1684
        %vm1701 = vmor %vm1653, %vm1685
        %vm1702 = vmor %vm1654, %vm1686
        %vm1703 = vmor %vm1655, %vm1687
        %vm1704 = vmor %vm1656, %vm1688
        %vm1705 = vmor %vm1657, %vm1689
        %vm1706 = vmor %vm1658, %vm1690
        %vm1707 = vmor %vm1659, %vm1691
        %vm1708 = vmor %vm1660, %vm1692
        %vm1709 = vmor %vm1661, %vm1693
        %vm1710 = vmor %vm1662, %vm1694
        %vm1711 = vmor %vm1663, %vm1695
        %vm1712 = vmor %vm1664, %vm1696
        %vm1713 = vmor %vm1665, %vm1697
        %vm1714 = vmor %vm1666, %vm1698
        %vm1715 = vmor %vm1667, %vm1699
        %v1716 = vsel %vm1700, 1, 0
        %v1717 = vsel %vm1701, 1, 0
        %v1718 = vsel %vm1702, 1, 0
        %v1719 = vsel %vm1703, 1, 0
        %v1720 = vsel %vm1704, 1, 0
        %v1721 = vsel %vm1705, 1, 0
        %v1722 = vsel %vm1706, 1, 0
        %v1723 = vsel %vm1707, 1, 0
        %v1724 = vsel %vm1708, 1, 0
        %v1725 = vsel %vm1709, 1, 0
        %v1726 = vsel %vm1710, 1, 0
        %v1727 = vsel %vm1711, 1, 0
        %v1728 = vsel %vm1712, 1, 0
        %v1729 = vsel %vm1713, 1, 0
        %v1730 = vsel %vm1714, 1, 0
        %v1731 = vsel %vm1715, 1, 0
        %v1732 = vadd.s32 %v1716, %v1720
        %v1733 = vadd.s32 %v1717, %v1721
        %v1734 = vadd.s32 %v1718, %v1722
        %v1735 = vadd.s32 %v1719, %v1723
        %v1736 = vadd.s32 %v1732, %v1724
        %v1737 = vadd.s32 %v1733, %v1725
        %v1738 = vadd.s32 %v1734, %v1726
        %v1739 = vadd.s32 %v1735, %v1727
        %v1740 = vadd.s32 %v1736, %v1728
        %v1741 = vadd.s32 %v1737, %v1729
        %v1742 = vadd.s32 %v1738, %v1730
        %v1743 = vadd.s32 %v1739, %v1731
        %v1744 = vadd.s32 %v1740, %v1741
        %v1745 = vadd.s32 %v1742, %v1743
        %v1746 = vadd.s32 %v1744, %v1745
        %v1747 = vrot.slane %v1746, 4
        %v1748 = vadd.s32 %v1746, %v1747
        %v1749 = vrot.slane %v1748, 2
        %v1750 = vadd.s32 %v1748, %v1749
        %v1751 = vrot.slane %v1750, 1
        %v1752 = vadd.s32 %v1750, %v1751
        %vm1753 = vcmp.lt.s32.totalorder %v1752, 10
        %v1754 = vsel %vm1753, 1, 0
        %v1755 = vcvt.s32.f32 %v1754
        %s1756 = scalar_lea.vmem %s184, 8
        %v1757 = vld [vmem:[%s1756] sm:$0x3]
        %s1758 = scalar_lea.vmem %s153, 512 [#allocation2]
        %v1759 = vld [vmem:[%s1758] sm:$0xff]
        %v1760 = vld [vmem:[%s1758 + $0x8] sm:$0xff]
        %v1761 = vld [vmem:[%s1758 + $0x10] sm:$0xff]
        %v1762 = vld [vmem:[%s1758 + $0x18] sm:$0xff]
        %v1763 = vld [vmem:[%s1758 + $0x20] sm:$0xff]
        %v1764 = vld [vmem:[%s1758 + $0x28] sm:$0xff]
        %v1765 = vld [vmem:[%s1758 + $0x30] sm:$0xff]
        %v1766 = vld [vmem:[%s1758 + $0x38] sm:$0xff]
        %v1767 = vld [vmem:[%s1758 + $0x40] sm:$0xff]
        %v1768 = vld [vmem:[%s1758 + $0x48] sm:$0xff]
        %v1769 = vld [vmem:[%s1758 + $0x50] sm:$0xff]
        %v1770 = vld [vmem:[%s1758 + $0x58] sm:$0xff]
        %v1771 = vld [vmem:[%s1758 + $0x60] sm:$0xff]
        %v1772 = vld [vmem:[%s1758 + $0x68] sm:$0xff]
        %v1773 = vld [vmem:[%s1758 + $0x70] sm:$0xff]
        %v1774 = vld [vmem:[%s1758 + $0x78] sm:$0xff]
        %v1777 = vunpack.c.l.s4 1966171168
        %v1778 = vunpack.c.0.s8 %v1777
        %v1779 = vlaneseq
        %v1780 = vshrl.u32 %v1779, 7
        %v1781 = vsub.s32 %v1778, %v1780
        %v1782 = vrot.slane %v1757, %v1781
        %v1783 = vcombine.high %v1782, %v1782
        %v1785 = vunpack.c.l.s4 1966171168
        %v1786 = vunpack.c.0.s8 %v1785
        %v1787 = vlaneseq
        %v1788 = vshrl.u32 %v1787, 7
        %v1789 = vsub.s32 %v1786, %v1788
        %v1790 = vrot.slane %v1782, %v1789
        %v1792 = vunpack.c.l.s4 1966171168
        %v1793 = vunpack.c.0.s8 %v1792
        %v1794 = vlaneseq
        %v1795 = vshrl.u32 %v1794, 7
        %v1796 = vsub.s32 %v1793, %v1795
        %v1797 = vrot.slane %v1783, %v1796
        %v1816 = vunpack.c.l.b16 %v1759
        %v1817 = vunpack.c.h.b16 %v1759
        %v1818 = vunpack.c.l.b16 %v1760
        %v1819 = vunpack.c.h.b16 %v1760
        %v1820 = vunpack.c.l.b16 %v1761
        %v1821 = vunpack.c.h.b16 %v1761
        %v1822 = vunpack.c.l.b16 %v1762
        %v1823 = vunpack.c.h.b16 %v1762
        %v1824 = vunpack.c.l.b16 %v1763
        %v1825 = vunpack.c.h.b16 %v1763
        %v1826 = vunpack.c.l.b16 %v1764
        %v1827 = vunpack.c.h.b16 %v1764
        %v1828 = vunpack.c.l.b16 %v1765
        %v1829 = vunpack.c.h.b16 %v1765
        %v1830 = vunpack.c.l.b16 %v1766
        %v1831 = vunpack.c.h.b16 %v1766
        %v1832 = vunpack.c.l.b16 %v1767
        %v1833 = vunpack.c.h.b16 %v1767
        %v1834 = vunpack.c.l.b16 %v1768
        %v1835 = vunpack.c.h.b16 %v1768
        %v1836 = vunpack.c.l.b16 %v1769
        %v1837 = vunpack.c.h.b16 %v1769
        %v1838 = vunpack.c.l.b16 %v1770
        %v1839 = vunpack.c.h.b16 %v1770
        %v1840 = vunpack.c.l.b16 %v1771
        %v1841 = vunpack.c.h.b16 %v1771
        %v1842 = vunpack.c.l.b16 %v1772
        %v1843 = vunpack.c.h.b16 %v1772
        %v1844 = vunpack.c.l.b16 %v1773
        %v1845 = vunpack.c.h.b16 %v1773
        %v1846 = vunpack.c.l.b16 %v1774
        %v1847 = vunpack.c.h.b16 %v1774
        %v1848 = vpack.c.b16 %v1818, %v1816
        %v1849 = vpack.c.b16 %v1819, %v1817
        %v1850 = vpack.c.b16 %v1822, %v1820
        %v1851 = vpack.c.b16 %v1823, %v1821
        %v1852 = vpack.c.b16 %v1826, %v1824
        %v1853 = vpack.c.b16 %v1827, %v1825
        %v1854 = vpack.c.b16 %v1830, %v1828
        %v1855 = vpack.c.b16 %v1831, %v1829
        %v1856 = vpack.c.b16 %v1834, %v1832
        %v1857 = vpack.c.b16 %v1835, %v1833
        %v1858 = vpack.c.b16 %v1838, %v1836
        %v1859 = vpack.c.b16 %v1839, %v1837
        %v1860 = vpack.c.b16 %v1842, %v1840
        %v1861 = vpack.c.b16 %v1843, %v1841
        %v1862 = vpack.c.b16 %v1846, %v1844
        %v1863 = vpack.c.b16 %v1847, %v1845
        %1880 = vmatprep.subr.bf16.mxu0 %v1849
        %1881 = vmatpush1.bf16.xpose.msra.mxu0 %v1848
        %1882 = vmatprep.subr.bf16.mxu0 %v1851
        %1883 = vmatpush1.bf16.xpose.msra.mxu0 %v1850
        %1884 = vmatprep.subr.bf16.mxu0 %v1853
        %1885 = vmatpush1.bf16.xpose.msra.mxu0 %v1852
        %1886 = vmatprep.subr.bf16.mxu0 %v1855
        %1887 = vmatpush1.bf16.xpose.msra.mxu0 %v1854
        %1888 = vmatprep.subr.bf16.mxu0 %v1857
        %1889 = vmatpush1.bf16.xpose.msra.mxu0 %v1856
        %1890 = vmatprep.subr.bf16.mxu0 %v1859
        %1891 = vmatpush1.bf16.xpose.msra.mxu0 %v1858
        %1892 = vmatprep.subr.bf16.mxu0 %v1861
        %1893 = vmatpush1.bf16.xpose.msra.mxu0 %v1860
        %1894 = vmatprep.subr.bf16.mxu0 %v1863
        %1895 = vmatpush1.bf16.xpose.msra.mxu0 %v1862
        %1896 = vmatprep.subr.bf16.mxu0 0
        %1897 = vmatpush1.bf16.xpose.msra.mxu0 0
        %1898 = vmatprep.subr.bf16.mxu0 0
        %1899 = vmatpush1.bf16.xpose.msra.mxu0 0
        %1900 = vmatprep.subr.bf16.mxu0 0
        %1901 = vmatpush1.bf16.xpose.msra.mxu0 0
        %1902 = vmatprep.subr.bf16.mxu0 0
        %1903 = vmatpush1.bf16.xpose.msra.mxu0 0
        %1904 = vmatprep.subr.bf16.mxu0 0
        %1905 = vmatpush1.bf16.xpose.msra.mxu0 0
        %1906 = vmatprep.subr.bf16.mxu0 0
        %1907 = vmatpush1.bf16.xpose.msra.mxu0 0
        %1908 = vmatprep.subr.bf16.mxu0 0
        %1909 = vmatpush1.bf16.xpose.msra.mxu0 0
        %1910 = vmatprep.subr.bf16.mxu0 0
        %1911 = vmatpush1.bf16.xpose.msra.mxu0 0
        %1912 = vmatprep.mubr.bf16.mxu0 %v1797
        %1913 = vmatmul.mubr.bf16.gmra.mrb[0].mxu0 %v1790
        %v1914 = vpop.f32.mrb[0].mxu0
        %v1915 = vadd.f32 0.0, %v1914
        %v1916 = vpop.f32.mrb[0].mxu0
        %v1917 = vpop.f32.mrb[0].mxu0
        %v1918 = vpop.f32.mrb[0].mxu0
        %1919 = vdwg.mxu0
        %1920 = vxpose.xlu0.b32.start [1/16] %v1915, 128
        %1921 = vxpose.xlu0.b32.cont [2/16] 0.0, 128
        %1922 = vxpose.xlu0.b32.cont [3/16] 0.0, 128
        %1923 = vxpose.xlu0.b32.cont [4/16] 0.0, 128
        %1924 = vxpose.xlu0.b32.cont [5/16] 0.0, 128
        %1925 = vxpose.xlu0.b32.cont [6/16] 0.0, 128
        %1926 = vxpose.xlu0.b32.cont [7/16] 0.0, 128
        %1927 = vxpose.xlu0.b32.cont [8/16] 0.0, 128
        %1928 = vxpose.xlu0.b32.cont [9/16] 0.0, 128
        %1929 = vxpose.xlu0.b32.cont [10/16] 0.0, 128
        %1930 = vxpose.xlu0.b32.cont [11/16] 0.0, 128
        %1931 = vxpose.xlu0.b32.cont [12/16] 0.0, 128
        %1932 = vxpose.xlu0.b32.cont [13/16] 0.0, 128
        %1933 = vxpose.xlu0.b32.cont [14/16] 0.0, 128
        %1934 = vxpose.xlu0.b32.cont [15/16] 0.0, 128
        %1935 = vxpose.xlu0.b32.end [16/16] 0.0, 128
        %v1936 = vpop.trf.xlu0
        %v1937 = vpop.trf.xlu0
        %v1938 = vpop.trf.xlu0
        %v1939 = vpop.trf.xlu0
        %v1940 = vpop.trf.xlu0
        %v1941 = vpop.trf.xlu0
        %v1942 = vpop.trf.xlu0
        %v1943 = vpop.trf.xlu0
        %v1944 = vpop.trf.xlu0
        %v1945 = vpop.trf.xlu0
        %v1946 = vpop.trf.xlu0
        %v1947 = vpop.trf.xlu0
        %v1948 = vpop.trf.xlu0
        %v1949 = vpop.trf.xlu0
        %v1950 = vpop.trf.xlu0
        %v1951 = vpop.trf.xlu0
        %1953 = vset.pattern.permute.xlu0 0
        %1954 = vperm.xlu0 %1953, %v1936
        %v1955 = vpop.permute.xlu0 %1954
        %1958 = vset.pattern.permute.xlu0 0
        %1959 = vperm.xlu0 %1958, %v1937
        %v1960 = vpop.permute.xlu0 %1959
        %1963 = vset.pattern.permute.xlu0 0
        %1964 = vperm.xlu0 %1963, %v1938
        %v1965 = vpop.permute.xlu0 %1964
        %1968 = vset.pattern.permute.xlu0 0
        %1969 = vperm.xlu0 %1968, %v1939
        %v1970 = vpop.permute.xlu0 %1969
        %1973 = vset.pattern.permute.xlu0 0
        %1974 = vperm.xlu0 %1973, %v1940
        %v1975 = vpop.permute.xlu0 %1974
        %1978 = vset.pattern.permute.xlu0 0
        %1979 = vperm.xlu0 %1978, %v1941
        %v1980 = vpop.permute.xlu0 %1979
        %1983 = vset.pattern.permute.xlu0 0
        %1984 = vperm.xlu0 %1983, %v1942
        %v1985 = vpop.permute.xlu0 %1984
        %1988 = vset.pattern.permute.xlu0 0
        %1989 = vperm.xlu0 %1988, %v1943
        %v1990 = vpop.permute.xlu0 %1989
        %1993 = vset.pattern.permute.xlu0 0
        %1994 = vperm.xlu0 %1993, %v1944
        %v1995 = vpop.permute.xlu0 %1994
        %1998 = vset.pattern.permute.xlu0 0
        %1999 = vperm.xlu0 %1998, %v1945
        %v2000 = vpop.permute.xlu0 %1999
        %2003 = vset.pattern.permute.xlu0 0
        %2004 = vperm.xlu0 %2003, %v1946
        %v2005 = vpop.permute.xlu0 %2004
        %2008 = vset.pattern.permute.xlu0 0
        %2009 = vperm.xlu0 %2008, %v1947
        %v2010 = vpop.permute.xlu0 %2009
        %2013 = vset.pattern.permute.xlu0 0
        %2014 = vperm.xlu0 %2013, %v1948
        %v2015 = vpop.permute.xlu0 %2014
        %2018 = vset.pattern.permute.xlu0 0
        %2019 = vperm.xlu0 %2018, %v1949
        %v2020 = vpop.permute.xlu0 %2019
        %2023 = vset.pattern.permute.xlu0 0
        %2024 = vperm.xlu0 %2023, %v1950
        %v2025 = vpop.permute.xlu0 %2024
        %2028 = vset.pattern.permute.xlu0 0
        %2029 = vperm.xlu0 %2028, %v1951
        %v2030 = vpop.permute.xlu0 %2029
        %v2032 = vlaneseq
        %v2033 = vshrl.u32 %v2032, 7
        %v2034 = vsub.s32 0, %v2033
        %v2035 = vrot.slane %v1915, %v2034
        %vm2036 = vcmp.gt.f32.partialorder %v1955, %v2035
        %vm2037 = vcmp.gt.f32.partialorder %v1960, %v2035
        %vm2038 = vcmp.gt.f32.partialorder %v1965, %v2035
        %vm2039 = vcmp.gt.f32.partialorder %v1970, %v2035
        %vm2040 = vcmp.gt.f32.partialorder %v1975, %v2035
        %vm2041 = vcmp.gt.f32.partialorder %v1980, %v2035
        %vm2042 = vcmp.gt.f32.partialorder %v1985, %v2035
        %vm2043 = vcmp.gt.f32.partialorder %v1990, %v2035
        %vm2044 = vcmp.gt.f32.partialorder %v1995, %v2035
        %vm2045 = vcmp.gt.f32.partialorder %v2000, %v2035
        %vm2046 = vcmp.gt.f32.partialorder %v2005, %v2035
        %vm2047 = vcmp.gt.f32.partialorder %v2010, %v2035
        %vm2048 = vcmp.gt.f32.partialorder %v2015, %v2035
        %vm2049 = vcmp.gt.f32.partialorder %v2020, %v2035
        %vm2050 = vcmp.gt.f32.partialorder %v2025, %v2035
        %vm2051 = vcmp.gt.f32.partialorder %v2030, %v2035
        %vm2052 = vcmp.eq.f32.partialorder %v1955, %v2035
        %vm2053 = vcmp.eq.f32.partialorder %v1960, %v2035
        %vm2054 = vcmp.eq.f32.partialorder %v1965, %v2035
        %vm2055 = vcmp.eq.f32.partialorder %v1970, %v2035
        %vm2056 = vcmp.eq.f32.partialorder %v1975, %v2035
        %vm2057 = vcmp.eq.f32.partialorder %v1980, %v2035
        %vm2058 = vcmp.eq.f32.partialorder %v1985, %v2035
        %vm2059 = vcmp.eq.f32.partialorder %v1990, %v2035
        %vm2060 = vcmp.eq.f32.partialorder %v1995, %v2035
        %vm2061 = vcmp.eq.f32.partialorder %v2000, %v2035
        %vm2062 = vcmp.eq.f32.partialorder %v2005, %v2035
        %vm2063 = vcmp.eq.f32.partialorder %v2010, %v2035
        %vm2064 = vcmp.eq.f32.partialorder %v2015, %v2035
        %vm2065 = vcmp.eq.f32.partialorder %v2020, %v2035
        %vm2066 = vcmp.eq.f32.partialorder %v2025, %v2035
        %vm2067 = vcmp.eq.f32.partialorder %v2030, %v2035
        %vm2068 = vmand %vm2052, %vm206
        %vm2069 = vmand %vm2053, %vm207
        %vm2070 = vmand %vm2054, %vm208
        %vm2071 = vmand %vm2055, %vm209
        %vm2072 = vmand %vm2056, %vm210
        %vm2073 = vmand %vm2057, %vm211
        %vm2074 = vmand %vm2058, %vm212
        %vm2075 = vmand %vm2059, %vm213
        %vm2076 = vmand %vm2060, %vm214
        %vm2077 = vmand %vm2061, %vm215
        %vm2078 = vmand %vm2062, %vm216
        %vm2079 = vmand %vm2063, %vm217
        %vm2080 = vmand %vm2064, %vm218
        %vm2081 = vmand %vm2065, %vm219
        %vm2082 = vmand %vm2066, %vm220
        %vm2083 = vmand %vm2067, %vm221
        %vm2084 = vmor %vm2036, %vm2068
        %vm2085 = vmor %vm2037, %vm2069
        %vm2086 = vmor %vm2038, %vm2070
        %vm2087 = vmor %vm2039, %vm2071
        %vm2088 = vmor %vm2040, %vm2072
        %vm2089 = vmor %vm2041, %vm2073
        %vm2090 = vmor %vm2042, %vm2074
        %vm2091 = vmor %vm2043, %vm2075
        %vm2092 = vmor %vm2044, %vm2076
        %vm2093 = vmor %vm2045, %vm2077
        %vm2094 = vmor %vm2046, %vm2078
        %vm2095 = vmor %vm2047, %vm2079
        %vm2096 = vmor %vm2048, %vm2080
        %vm2097 = vmor %vm2049, %vm2081
        %vm2098 = vmor %vm2050, %vm2082
        %vm2099 = vmor %vm2051, %vm2083
        %v2100 = vsel %vm2084, 1, 0
        %v2101 = vsel %vm2085, 1, 0
        %v2102 = vsel %vm2086, 1, 0
        %v2103 = vsel %vm2087, 1, 0
        %v2104 = vsel %vm2088, 1, 0
        %v2105 = vsel %vm2089, 1, 0
        %v2106 = vsel %vm2090, 1, 0
        %v2107 = vsel %vm2091, 1, 0
        %v2108 = vsel %vm2092, 1, 0
        %v2109 = vsel %vm2093, 1, 0
        %v2110 = vsel %vm2094, 1, 0
        %v2111 = vsel %vm2095, 1, 0
        %v2112 = vsel %vm2096, 1, 0
        %v2113 = vsel %vm2097, 1, 0
        %v2114 = vsel %vm2098, 1, 0
        %v2115 = vsel %vm2099, 1, 0
        %v2116 = vadd.s32 %v2100, %v2104
        %v2117 = vadd.s32 %v2101, %v2105
        %v2118 = vadd.s32 %v2102, %v2106
        %v2119 = vadd.s32 %v2103, %v2107
        %v2120 = vadd.s32 %v2116, %v2108
        %v2121 = vadd.s32 %v2117, %v2109
        %v2122 = vadd.s32 %v2118, %v2110
        %v2123 = vadd.s32 %v2119, %v2111
        %v2124 = vadd.s32 %v2120, %v2112
        %v2125 = vadd.s32 %v2121, %v2113
        %v2126 = vadd.s32 %v2122, %v2114
        %v2127 = vadd.s32 %v2123, %v2115
        %v2128 = vadd.s32 %v2124, %v2125
        %v2129 = vadd.s32 %v2126, %v2127
        %v2130 = vadd.s32 %v2128, %v2129
        %v2131 = vrot.slane %v2130, 4
        %v2132 = vadd.s32 %v2130, %v2131
        %v2133 = vrot.slane %v2132, 2
        %v2134 = vadd.s32 %v2132, %v2133
        %v2135 = vrot.slane %v2134, 1
        %v2136 = vadd.s32 %v2134, %v2135
        %vm2137 = vcmp.lt.s32.totalorder %v2136, 10
        %v2138 = vsel %vm2137, 1, 0
        %v2139 = vcvt.s32.f32 %v2138
        %s2140 = scalar_lea.vmem %s184, 10
        %v2141 = vld [vmem:[%s2140] sm:$0x3]
        %s2142 = scalar_lea.vmem %s153, 640 [#allocation2]
        %v2143 = vld [vmem:[%s2142] sm:$0xff]
        %v2144 = vld [vmem:[%s2142 + $0x8] sm:$0xff]
        %v2145 = vld [vmem:[%s2142 + $0x10] sm:$0xff]
        %v2146 = vld [vmem:[%s2142 + $0x18] sm:$0xff]
        %v2147 = vld [vmem:[%s2142 + $0x20] sm:$0xff]
        %v2148 = vld [vmem:[%s2142 + $0x28] sm:$0xff]
        %v2149 = vld [vmem:[%s2142 + $0x30] sm:$0xff]
        %v2150 = vld [vmem:[%s2142 + $0x38] sm:$0xff]
        %v2151 = vld [vmem:[%s2142 + $0x40] sm:$0xff]
        %v2152 = vld [vmem:[%s2142 + $0x48] sm:$0xff]
        %v2153 = vld [vmem:[%s2142 + $0x50] sm:$0xff]
        %v2154 = vld [vmem:[%s2142 + $0x58] sm:$0xff]
        %v2155 = vld [vmem:[%s2142 + $0x60] sm:$0xff]
        %v2156 = vld [vmem:[%s2142 + $0x68] sm:$0xff]
        %v2157 = vld [vmem:[%s2142 + $0x70] sm:$0xff]
        %v2158 = vld [vmem:[%s2142 + $0x78] sm:$0xff]
        %v2161 = vunpack.c.l.s4 1966171168
        %v2162 = vunpack.c.0.s8 %v2161
        %v2163 = vlaneseq
        %v2164 = vshrl.u32 %v2163, 7
        %v2165 = vsub.s32 %v2162, %v2164
        %v2166 = vrot.slane %v2141, %v2165
        %v2167 = vcombine.high %v2166, %v2166
        %v2169 = vunpack.c.l.s4 1966171168
        %v2170 = vunpack.c.0.s8 %v2169
        %v2171 = vlaneseq
        %v2172 = vshrl.u32 %v2171, 7
        %v2173 = vsub.s32 %v2170, %v2172
        %v2174 = vrot.slane %v2166, %v2173
        %v2176 = vunpack.c.l.s4 1966171168
        %v2177 = vunpack.c.0.s8 %v2176
        %v2178 = vlaneseq
        %v2179 = vshrl.u32 %v2178, 7
        %v2180 = vsub.s32 %v2177, %v2179
        %v2181 = vrot.slane %v2167, %v2180
        %v2200 = vunpack.c.l.b16 %v2143
        %v2201 = vunpack.c.h.b16 %v2143
        %v2202 = vunpack.c.l.b16 %v2144
        %v2203 = vunpack.c.h.b16 %v2144
        %v2204 = vunpack.c.l.b16 %v2145
        %v2205 = vunpack.c.h.b16 %v2145
        %v2206 = vunpack.c.l.b16 %v2146
        %v2207 = vunpack.c.h.b16 %v2146
        %v2208 = vunpack.c.l.b16 %v2147
        %v2209 = vunpack.c.h.b16 %v2147
        %v2210 = vunpack.c.l.b16 %v2148
        %v2211 = vunpack.c.h.b16 %v2148
        %v2212 = vunpack.c.l.b16 %v2149
        %v2213 = vunpack.c.h.b16 %v2149
        %v2214 = vunpack.c.l.b16 %v2150
        %v2215 = vunpack.c.h.b16 %v2150
        %v2216 = vunpack.c.l.b16 %v2151
        %v2217 = vunpack.c.h.b16 %v2151
        %v2218 = vunpack.c.l.b16 %v2152
        %v2219 = vunpack.c.h.b16 %v2152
        %v2220 = vunpack.c.l.b16 %v2153
        %v2221 = vunpack.c.h.b16 %v2153
        %v2222 = vunpack.c.l.b16 %v2154
        %v2223 = vunpack.c.h.b16 %v2154
        %v2224 = vunpack.c.l.b16 %v2155
        %v2225 = vunpack.c.h.b16 %v2155
        %v2226 = vunpack.c.l.b16 %v2156
        %v2227 = vunpack.c.h.b16 %v2156
        %v2228 = vunpack.c.l.b16 %v2157
        %v2229 = vunpack.c.h.b16 %v2157
        %v2230 = vunpack.c.l.b16 %v2158
        %v2231 = vunpack.c.h.b16 %v2158
        %v2232 = vpack.c.b16 %v2202, %v2200
        %v2233 = vpack.c.b16 %v2203, %v2201
        %v2234 = vpack.c.b16 %v2206, %v2204
        %v2235 = vpack.c.b16 %v2207, %v2205
        %v2236 = vpack.c.b16 %v2210, %v2208
        %v2237 = vpack.c.b16 %v2211, %v2209
        %v2238 = vpack.c.b16 %v2214, %v2212
        %v2239 = vpack.c.b16 %v2215, %v2213
        %v2240 = vpack.c.b16 %v2218, %v2216
        %v2241 = vpack.c.b16 %v2219, %v2217
        %v2242 = vpack.c.b16 %v2222, %v2220
        %v2243 = vpack.c.b16 %v2223, %v2221
        %v2244 = vpack.c.b16 %v2226, %v2224
        %v2245 = vpack.c.b16 %v2227, %v2225
        %v2246 = vpack.c.b16 %v2230, %v2228
        %v2247 = vpack.c.b16 %v2231, %v2229
        %2264 = vmatprep.subr.bf16.mxu0 %v2233
        %2265 = vmatpush1.bf16.xpose.msra.mxu0 %v2232
        %2266 = vmatprep.subr.bf16.mxu0 %v2235
        %2267 = vmatpush1.bf16.xpose.msra.mxu0 %v2234
        %2268 = vmatprep.subr.bf16.mxu0 %v2237
        %2269 = vmatpush1.bf16.xpose.msra.mxu0 %v2236
        %2270 = vmatprep.subr.bf16.mxu0 %v2239
        %2271 = vmatpush1.bf16.xpose.msra.mxu0 %v2238
        %2272 = vmatprep.subr.bf16.mxu0 %v2241
        %2273 = vmatpush1.bf16.xpose.msra.mxu0 %v2240
        %2274 = vmatprep.subr.bf16.mxu0 %v2243
        %2275 = vmatpush1.bf16.xpose.msra.mxu0 %v2242
        %2276 = vmatprep.subr.bf16.mxu0 %v2245
        %2277 = vmatpush1.bf16.xpose.msra.mxu0 %v2244
        %2278 = vmatprep.subr.bf16.mxu0 %v2247
        %2279 = vmatpush1.bf16.xpose.msra.mxu0 %v2246
        %2280 = vmatprep.subr.bf16.mxu0 0
        %2281 = vmatpush1.bf16.xpose.msra.mxu0 0
        %2282 = vmatprep.subr.bf16.mxu0 0
        %2283 = vmatpush1.bf16.xpose.msra.mxu0 0
        %2284 = vmatprep.subr.bf16.mxu0 0
        %2285 = vmatpush1.bf16.xpose.msra.mxu0 0
        %2286 = vmatprep.subr.bf16.mxu0 0
        %2287 = vmatpush1.bf16.xpose.msra.mxu0 0
        %2288 = vmatprep.subr.bf16.mxu0 0
        %2289 = vmatpush1.bf16.xpose.msra.mxu0 0
        %2290 = vmatprep.subr.bf16.mxu0 0
        %2291 = vmatpush1.bf16.xpose.msra.mxu0 0
        %2292 = vmatprep.subr.bf16.mxu0 0
        %2293 = vmatpush1.bf16.xpose.msra.mxu0 0
        %2294 = vmatprep.subr.bf16.mxu0 0
        %2295 = vmatpush1.bf16.xpose.msra.mxu0 0
        %2296 = vmatprep.mubr.bf16.mxu0 %v2181
        %2297 = vmatmul.mubr.bf16.gmra.mrb[0].mxu0 %v2174
        %v2298 = vpop.f32.mrb[0].mxu0
        %v2299 = vadd.f32 0.0, %v2298
        %v2300 = vpop.f32.mrb[0].mxu0
        %v2301 = vpop.f32.mrb[0].mxu0
        %v2302 = vpop.f32.mrb[0].mxu0
        %2303 = vdwg.mxu0
        %2304 = vxpose.xlu0.b32.start [1/16] %v2299, 128
        %2305 = vxpose.xlu0.b32.cont [2/16] 0.0, 128
        %2306 = vxpose.xlu0.b32.cont [3/16] 0.0, 128
        %2307 = vxpose.xlu0.b32.cont [4/16] 0.0, 128
        %2308 = vxpose.xlu0.b32.cont [5/16] 0.0, 128
        %2309 = vxpose.xlu0.b32.cont [6/16] 0.0, 128
        %2310 = vxpose.xlu0.b32.cont [7/16] 0.0, 128
        %2311 = vxpose.xlu0.b32.cont [8/16] 0.0, 128
        %2312 = vxpose.xlu0.b32.cont [9/16] 0.0, 128
        %2313 = vxpose.xlu0.b32.cont [10/16] 0.0, 128
        %2314 = vxpose.xlu0.b32.cont [11/16] 0.0, 128
        %2315 = vxpose.xlu0.b32.cont [12/16] 0.0, 128
        %2316 = vxpose.xlu0.b32.cont [13/16] 0.0, 128
        %2317 = vxpose.xlu0.b32.cont [14/16] 0.0, 128
        %2318 = vxpose.xlu0.b32.cont [15/16] 0.0, 128
        %2319 = vxpose.xlu0.b32.end [16/16] 0.0, 128
        %v2320 = vpop.trf.xlu0
        %v2321 = vpop.trf.xlu0
        %v2322 = vpop.trf.xlu0
        %v2323 = vpop.trf.xlu0
        %v2324 = vpop.trf.xlu0
        %v2325 = vpop.trf.xlu0
        %v2326 = vpop.trf.xlu0
        %v2327 = vpop.trf.xlu0
        %v2328 = vpop.trf.xlu0
        %v2329 = vpop.trf.xlu0
        %v2330 = vpop.trf.xlu0
        %v2331 = vpop.trf.xlu0
        %v2332 = vpop.trf.xlu0
        %v2333 = vpop.trf.xlu0
        %v2334 = vpop.trf.xlu0
        %v2335 = vpop.trf.xlu0
        %2337 = vset.pattern.permute.xlu0 0
        %2338 = vperm.xlu0 %2337, %v2320
        %v2339 = vpop.permute.xlu0 %2338
        %2342 = vset.pattern.permute.xlu0 0
        %2343 = vperm.xlu0 %2342, %v2321
        %v2344 = vpop.permute.xlu0 %2343
        %2347 = vset.pattern.permute.xlu0 0
        %2348 = vperm.xlu0 %2347, %v2322
        %v2349 = vpop.permute.xlu0 %2348
        %2352 = vset.pattern.permute.xlu0 0
        %2353 = vperm.xlu0 %2352, %v2323
        %v2354 = vpop.permute.xlu0 %2353
        %2357 = vset.pattern.permute.xlu0 0
        %2358 = vperm.xlu0 %2357, %v2324
        %v2359 = vpop.permute.xlu0 %2358
        %2362 = vset.pattern.permute.xlu0 0
        %2363 = vperm.xlu0 %2362, %v2325
        %v2364 = vpop.permute.xlu0 %2363
        %2367 = vset.pattern.permute.xlu0 0
        %2368 = vperm.xlu0 %2367, %v2326
        %v2369 = vpop.permute.xlu0 %2368
        %2372 = vset.pattern.permute.xlu0 0
        %2373 = vperm.xlu0 %2372, %v2327
        %v2374 = vpop.permute.xlu0 %2373
        %2377 = vset.pattern.permute.xlu0 0
        %2378 = vperm.xlu0 %2377, %v2328
        %v2379 = vpop.permute.xlu0 %2378
        %2382 = vset.pattern.permute.xlu0 0
        %2383 = vperm.xlu0 %2382, %v2329
        %v2384 = vpop.permute.xlu0 %2383
        %2387 = vset.pattern.permute.xlu0 0
        %2388 = vperm.xlu0 %2387, %v2330
        %v2389 = vpop.permute.xlu0 %2388
        %2392 = vset.pattern.permute.xlu0 0
        %2393 = vperm.xlu0 %2392, %v2331
        %v2394 = vpop.permute.xlu0 %2393
        %2397 = vset.pattern.permute.xlu0 0
        %2398 = vperm.xlu0 %2397, %v2332
        %v2399 = vpop.permute.xlu0 %2398
        %2402 = vset.pattern.permute.xlu0 0
        %2403 = vperm.xlu0 %2402, %v2333
        %v2404 = vpop.permute.xlu0 %2403
        %2407 = vset.pattern.permute.xlu0 0
        %2408 = vperm.xlu0 %2407, %v2334
        %v2409 = vpop.permute.xlu0 %2408
        %2412 = vset.pattern.permute.xlu0 0
        %2413 = vperm.xlu0 %2412, %v2335
        %v2414 = vpop.permute.xlu0 %2413
        %v2416 = vlaneseq
        %v2417 = vshrl.u32 %v2416, 7
        %v2418 = vsub.s32 0, %v2417
        %v2419 = vrot.slane %v2299, %v2418
        %vm2420 = vcmp.gt.f32.partialorder %v2339, %v2419
        %vm2421 = vcmp.gt.f32.partialorder %v2344, %v2419
        %vm2422 = vcmp.gt.f32.partialorder %v2349, %v2419
        %vm2423 = vcmp.gt.f32.partialorder %v2354, %v2419
        %vm2424 = vcmp.gt.f32.partialorder %v2359, %v2419
        %vm2425 = vcmp.gt.f32.partialorder %v2364, %v2419
        %vm2426 = vcmp.gt.f32.partialorder %v2369, %v2419
        %vm2427 = vcmp.gt.f32.partialorder %v2374, %v2419
        %vm2428 = vcmp.gt.f32.partialorder %v2379, %v2419
        %vm2429 = vcmp.gt.f32.partialorder %v2384, %v2419
        %vm2430 = vcmp.gt.f32.partialorder %v2389, %v2419
        %vm2431 = vcmp.gt.f32.partialorder %v2394, %v2419
        %vm2432 = vcmp.gt.f32.partialorder %v2399, %v2419
        %vm2433 = vcmp.gt.f32.partialorder %v2404, %v2419
        %vm2434 = vcmp.gt.f32.partialorder %v2409, %v2419
        %vm2435 = vcmp.gt.f32.partialorder %v2414, %v2419
        %vm2436 = vcmp.eq.f32.partialorder %v2339, %v2419
        %vm2437 = vcmp.eq.f32.partialorder %v2344, %v2419
        %vm2438 = vcmp.eq.f32.partialorder %v2349, %v2419
        %vm2439 = vcmp.eq.f32.partialorder %v2354, %v2419
        %vm2440 = vcmp.eq.f32.partialorder %v2359, %v2419
        %vm2441 = vcmp.eq.f32.partialorder %v2364, %v2419
        %vm2442 = vcmp.eq.f32.partialorder %v2369, %v2419
        %vm2443 = vcmp.eq.f32.partialorder %v2374, %v2419
        %vm2444 = vcmp.eq.f32.partialorder %v2379, %v2419
        %vm2445 = vcmp.eq.f32.partialorder %v2384, %v2419
        %vm2446 = vcmp.eq.f32.partialorder %v2389, %v2419
        %vm2447 = vcmp.eq.f32.partialorder %v2394, %v2419
        %vm2448 = vcmp.eq.f32.partialorder %v2399, %v2419
        %vm2449 = vcmp.eq.f32.partialorder %v2404, %v2419
        %vm2450 = vcmp.eq.f32.partialorder %v2409, %v2419
        %vm2451 = vcmp.eq.f32.partialorder %v2414, %v2419
        %vm2452 = vmand %vm2436, %vm206
        %vm2453 = vmand %vm2437, %vm207
        %vm2454 = vmand %vm2438, %vm208
        %vm2455 = vmand %vm2439, %vm209
        %vm2456 = vmand %vm2440, %vm210
        %vm2457 = vmand %vm2441, %vm211
        %vm2458 = vmand %vm2442, %vm212
        %vm2459 = vmand %vm2443, %vm213
        %vm2460 = vmand %vm2444, %vm214
        %vm2461 = vmand %vm2445, %vm215
        %vm2462 = vmand %vm2446, %vm216
        %vm2463 = vmand %vm2447, %vm217
        %vm2464 = vmand %vm2448, %vm218
        %vm2465 = vmand %vm2449, %vm219
        %vm2466 = vmand %vm2450, %vm220
        %vm2467 = vmand %vm2451, %vm221
        %vm2468 = vmor %vm2420, %vm2452
        %vm2469 = vmor %vm2421, %vm2453
        %vm2470 = vmor %vm2422, %vm2454
        %vm2471 = vmor %vm2423, %vm2455
        %vm2472 = vmor %vm2424, %vm2456
        %vm2473 = vmor %vm2425, %vm2457
        %vm2474 = vmor %vm2426, %vm2458
        %vm2475 = vmor %vm2427, %vm2459
        %vm2476 = vmor %vm2428, %vm2460
        %vm2477 = vmor %vm2429, %vm2461
        %vm2478 = vmor %vm2430, %vm2462
        %vm2479 = vmor %vm2431, %vm2463
        %vm2480 = vmor %vm2432, %vm2464
        %vm2481 = vmor %vm2433, %vm2465
        %vm2482 = vmor %vm2434, %vm2466
        %vm2483 = vmor %vm2435, %vm2467
        %v2484 = vsel %vm2468, 1, 0
        %v2485 = vsel %vm2469, 1, 0
        %v2486 = vsel %vm2470, 1, 0
        %v2487 = vsel %vm2471, 1, 0
        %v2488 = vsel %vm2472, 1, 0
        %v2489 = vsel %vm2473, 1, 0
        %v2490 = vsel %vm2474, 1, 0
        %v2491 = vsel %vm2475, 1, 0
        %v2492 = vsel %vm2476, 1, 0
        %v2493 = vsel %vm2477, 1, 0
        %v2494 = vsel %vm2478, 1, 0
        %v2495 = vsel %vm2479, 1, 0
        %v2496 = vsel %vm2480, 1, 0
        %v2497 = vsel %vm2481, 1, 0
        %v2498 = vsel %vm2482, 1, 0
        %v2499 = vsel %vm2483, 1, 0
        %v2500 = vadd.s32 %v2484, %v2488
        %v2501 = vadd.s32 %v2485, %v2489
        %v2502 = vadd.s32 %v2486, %v2490
        %v2503 = vadd.s32 %v2487, %v2491
        %v2504 = vadd.s32 %v2500, %v2492
        %v2505 = vadd.s32 %v2501, %v2493
        %v2506 = vadd.s32 %v2502, %v2494
        %v2507 = vadd.s32 %v2503, %v2495
        %v2508 = vadd.s32 %v2504, %v2496
        %v2509 = vadd.s32 %v2505, %v2497
        %v2510 = vadd.s32 %v2506, %v2498
        %v2511 = vadd.s32 %v2507, %v2499
        %v2512 = vadd.s32 %v2508, %v2509
        %v2513 = vadd.s32 %v2510, %v2511
        %v2514 = vadd.s32 %v2512, %v2513
        %v2515 = vrot.slane %v2514, 4
        %v2516 = vadd.s32 %v2514, %v2515
        %v2517 = vrot.slane %v2516, 2
        %v2518 = vadd.s32 %v2516, %v2517
        %v2519 = vrot.slane %v2518, 1
        %v2520 = vadd.s32 %v2518, %v2519
        %vm2521 = vcmp.lt.s32.totalorder %v2520, 10
        %v2522 = vsel %vm2521, 1, 0
        %v2523 = vcvt.s32.f32 %v2522
        %s2524 = scalar_lea.vmem %s184, 12
        %v2525 = vld [vmem:[%s2524] sm:$0x3]
        %s2526 = scalar_lea.vmem %s153, 768 [#allocation2]
        %v2527 = vld [vmem:[%s2526] sm:$0xff]
        %v2528 = vld [vmem:[%s2526 + $0x8] sm:$0xff]
        %v2529 = vld [vmem:[%s2526 + $0x10] sm:$0xff]
        %v2530 = vld [vmem:[%s2526 + $0x18] sm:$0xff]
        %v2531 = vld [vmem:[%s2526 + $0x20] sm:$0xff]
        %v2532 = vld [vmem:[%s2526 + $0x28] sm:$0xff]
        %v2533 = vld [vmem:[%s2526 + $0x30] sm:$0xff]
        %v2534 = vld [vmem:[%s2526 + $0x38] sm:$0xff]
        %v2535 = vld [vmem:[%s2526 + $0x40] sm:$0xff]
        %v2536 = vld [vmem:[%s2526 + $0x48] sm:$0xff]
        %v2537 = vld [vmem:[%s2526 + $0x50] sm:$0xff]
        %v2538 = vld [vmem:[%s2526 + $0x58] sm:$0xff]
        %v2539 = vld [vmem:[%s2526 + $0x60] sm:$0xff]
        %v2540 = vld [vmem:[%s2526 + $0x68] sm:$0xff]
        %v2541 = vld [vmem:[%s2526 + $0x70] sm:$0xff]
        %v2542 = vld [vmem:[%s2526 + $0x78] sm:$0xff]
        %v2545 = vunpack.c.l.s4 1966171168
        %v2546 = vunpack.c.0.s8 %v2545
        %v2547 = vlaneseq
        %v2548 = vshrl.u32 %v2547, 7
        %v2549 = vsub.s32 %v2546, %v2548
        %v2550 = vrot.slane %v2525, %v2549
        %v2551 = vcombine.high %v2550, %v2550
        %v2553 = vunpack.c.l.s4 1966171168
        %v2554 = vunpack.c.0.s8 %v2553
        %v2555 = vlaneseq
        %v2556 = vshrl.u32 %v2555, 7
        %v2557 = vsub.s32 %v2554, %v2556
        %v2558 = vrot.slane %v2550, %v2557
        %v2560 = vunpack.c.l.s4 1966171168
        %v2561 = vunpack.c.0.s8 %v2560
        %v2562 = vlaneseq
        %v2563 = vshrl.u32 %v2562, 7
        %v2564 = vsub.s32 %v2561, %v2563
        %v2565 = vrot.slane %v2551, %v2564
        %v2584 = vunpack.c.l.b16 %v2527
        %v2585 = vunpack.c.h.b16 %v2527
        %v2586 = vunpack.c.l.b16 %v2528
        %v2587 = vunpack.c.h.b16 %v2528
        %v2588 = vunpack.c.l.b16 %v2529
        %v2589 = vunpack.c.h.b16 %v2529
        %v2590 = vunpack.c.l.b16 %v2530
        %v2591 = vunpack.c.h.b16 %v2530
        %v2592 = vunpack.c.l.b16 %v2531
        %v2593 = vunpack.c.h.b16 %v2531
        %v2594 = vunpack.c.l.b16 %v2532
        %v2595 = vunpack.c.h.b16 %v2532
        %v2596 = vunpack.c.l.b16 %v2533
        %v2597 = vunpack.c.h.b16 %v2533
        %v2598 = vunpack.c.l.b16 %v2534
        %v2599 = vunpack.c.h.b16 %v2534
        %v2600 = vunpack.c.l.b16 %v2535
        %v2601 = vunpack.c.h.b16 %v2535
        %v2602 = vunpack.c.l.b16 %v2536
        %v2603 = vunpack.c.h.b16 %v2536
        %v2604 = vunpack.c.l.b16 %v2537
        %v2605 = vunpack.c.h.b16 %v2537
        %v2606 = vunpack.c.l.b16 %v2538
        %v2607 = vunpack.c.h.b16 %v2538
        %v2608 = vunpack.c.l.b16 %v2539
        %v2609 = vunpack.c.h.b16 %v2539
        %v2610 = vunpack.c.l.b16 %v2540
        %v2611 = vunpack.c.h.b16 %v2540
        %v2612 = vunpack.c.l.b16 %v2541
        %v2613 = vunpack.c.h.b16 %v2541
        %v2614 = vunpack.c.l.b16 %v2542
        %v2615 = vunpack.c.h.b16 %v2542
        %v2616 = vpack.c.b16 %v2586, %v2584
        %v2617 = vpack.c.b16 %v2587, %v2585
        %v2618 = vpack.c.b16 %v2590, %v2588
        %v2619 = vpack.c.b16 %v2591, %v2589
        %v2620 = vpack.c.b16 %v2594, %v2592
        %v2621 = vpack.c.b16 %v2595, %v2593
        %v2622 = vpack.c.b16 %v2598, %v2596
        %v2623 = vpack.c.b16 %v2599, %v2597
        %v2624 = vpack.c.b16 %v2602, %v2600
        %v2625 = vpack.c.b16 %v2603, %v2601
        %v2626 = vpack.c.b16 %v2606, %v2604
        %v2627 = vpack.c.b16 %v2607, %v2605
        %v2628 = vpack.c.b16 %v2610, %v2608
        %v2629 = vpack.c.b16 %v2611, %v2609
        %v2630 = vpack.c.b16 %v2614, %v2612
        %v2631 = vpack.c.b16 %v2615, %v2613
        %2648 = vmatprep.subr.bf16.mxu0 %v2617
        %2649 = vmatpush1.bf16.xpose.msra.mxu0 %v2616
        %2650 = vmatprep.subr.bf16.mxu0 %v2619
        %2651 = vmatpush1.bf16.xpose.msra.mxu0 %v2618
        %2652 = vmatprep.subr.bf16.mxu0 %v2621
        %2653 = vmatpush1.bf16.xpose.msra.mxu0 %v2620
        %2654 = vmatprep.subr.bf16.mxu0 %v2623
        %2655 = vmatpush1.bf16.xpose.msra.mxu0 %v2622
        %2656 = vmatprep.subr.bf16.mxu0 %v2625
        %2657 = vmatpush1.bf16.xpose.msra.mxu0 %v2624
        %2658 = vmatprep.subr.bf16.mxu0 %v2627
        %2659 = vmatpush1.bf16.xpose.msra.mxu0 %v2626
        %2660 = vmatprep.subr.bf16.mxu0 %v2629
        %2661 = vmatpush1.bf16.xpose.msra.mxu0 %v2628
        %2662 = vmatprep.subr.bf16.mxu0 %v2631
        %2663 = vmatpush1.bf16.xpose.msra.mxu0 %v2630
        %2664 = vmatprep.subr.bf16.mxu0 0
        %2665 = vmatpush1.bf16.xpose.msra.mxu0 0
        %2666 = vmatprep.subr.bf16.mxu0 0
        %2667 = vmatpush1.bf16.xpose.msra.mxu0 0
        %2668 = vmatprep.subr.bf16.mxu0 0
        %2669 = vmatpush1.bf16.xpose.msra.mxu0 0
        %2670 = vmatprep.subr.bf16.mxu0 0
        %2671 = vmatpush1.bf16.xpose.msra.mxu0 0
        %2672 = vmatprep.subr.bf16.mxu0 0
        %2673 = vmatpush1.bf16.xpose.msra.mxu0 0
        %2674 = vmatprep.subr.bf16.mxu0 0
        %2675 = vmatpush1.bf16.xpose.msra.mxu0 0
        %2676 = vmatprep.subr.bf16.mxu0 0
        %2677 = vmatpush1.bf16.xpose.msra.mxu0 0
        %2678 = vmatprep.subr.bf16.mxu0 0
        %2679 = vmatpush1.bf16.xpose.msra.mxu0 0
        %2680 = vmatprep.mubr.bf16.mxu0 %v2565
        %2681 = vmatmul.mubr.bf16.gmra.mrb[0].mxu0 %v2558
        %v2682 = vpop.f32.mrb[0].mxu0
        %v2683 = vadd.f32 0.0, %v2682
        %v2684 = vpop.f32.mrb[0].mxu0
        %v2685 = vpop.f32.mrb[0].mxu0
        %v2686 = vpop.f32.mrb[0].mxu0
        %2687 = vdwg.mxu0
        %2688 = vxpose.xlu0.b32.start [1/16] %v2683, 128
        %2689 = vxpose.xlu0.b32.cont [2/16] 0.0, 128
        %2690 = vxpose.xlu0.b32.cont [3/16] 0.0, 128
        %2691 = vxpose.xlu0.b32.cont [4/16] 0.0, 128
        %2692 = vxpose.xlu0.b32.cont [5/16] 0.0, 128
        %2693 = vxpose.xlu0.b32.cont [6/16] 0.0, 128
        %2694 = vxpose.xlu0.b32.cont [7/16] 0.0, 128
        %2695 = vxpose.xlu0.b32.cont [8/16] 0.0, 128
        %2696 = vxpose.xlu0.b32.cont [9/16] 0.0, 128
        %2697 = vxpose.xlu0.b32.cont [10/16] 0.0, 128
        %2698 = vxpose.xlu0.b32.cont [11/16] 0.0, 128
        %2699 = vxpose.xlu0.b32.cont [12/16] 0.0, 128
        %2700 = vxpose.xlu0.b32.cont [13/16] 0.0, 128
        %2701 = vxpose.xlu0.b32.cont [14/16] 0.0, 128
        %2702 = vxpose.xlu0.b32.cont [15/16] 0.0, 128
        %2703 = vxpose.xlu0.b32.end [16/16] 0.0, 128
        %v2704 = vpop.trf.xlu0
        %v2705 = vpop.trf.xlu0
        %v2706 = vpop.trf.xlu0
        %v2707 = vpop.trf.xlu0
        %v2708 = vpop.trf.xlu0
        %v2709 = vpop.trf.xlu0
        %v2710 = vpop.trf.xlu0
        %v2711 = vpop.trf.xlu0
        %v2712 = vpop.trf.xlu0
        %v2713 = vpop.trf.xlu0
        %v2714 = vpop.trf.xlu0
        %v2715 = vpop.trf.xlu0
        %v2716 = vpop.trf.xlu0
        %v2717 = vpop.trf.xlu0
        %v2718 = vpop.trf.xlu0
        %v2719 = vpop.trf.xlu0
        %2721 = vset.pattern.permute.xlu0 0
        %2722 = vperm.xlu0 %2721, %v2704
        %v2723 = vpop.permute.xlu0 %2722
        %2726 = vset.pattern.permute.xlu0 0
        %2727 = vperm.xlu0 %2726, %v2705
        %v2728 = vpop.permute.xlu0 %2727
        %2731 = vset.pattern.permute.xlu0 0
        %2732 = vperm.xlu0 %2731, %v2706
        %v2733 = vpop.permute.xlu0 %2732
        %2736 = vset.pattern.permute.xlu0 0
        %2737 = vperm.xlu0 %2736, %v2707
        %v2738 = vpop.permute.xlu0 %2737
        %2741 = vset.pattern.permute.xlu0 0
        %2742 = vperm.xlu0 %2741, %v2708
        %v2743 = vpop.permute.xlu0 %2742
        %2746 = vset.pattern.permute.xlu0 0
        %2747 = vperm.xlu0 %2746, %v2709
        %v2748 = vpop.permute.xlu0 %2747
        %2751 = vset.pattern.permute.xlu0 0
        %2752 = vperm.xlu0 %2751, %v2710
        %v2753 = vpop.permute.xlu0 %2752
        %2756 = vset.pattern.permute.xlu0 0
        %2757 = vperm.xlu0 %2756, %v2711
        %v2758 = vpop.permute.xlu0 %2757
        %2761 = vset.pattern.permute.xlu0 0
        %2762 = vperm.xlu0 %2761, %v2712
        %v2763 = vpop.permute.xlu0 %2762
        %2766 = vset.pattern.permute.xlu0 0
        %2767 = vperm.xlu0 %2766, %v2713
        %v2768 = vpop.permute.xlu0 %2767
        %2771 = vset.pattern.permute.xlu0 0
        %2772 = vperm.xlu0 %2771, %v2714
        %v2773 = vpop.permute.xlu0 %2772
        %2776 = vset.pattern.permute.xlu0 0
        %2777 = vperm.xlu0 %2776, %v2715
        %v2778 = vpop.permute.xlu0 %2777
        %2781 = vset.pattern.permute.xlu0 0
        %2782 = vperm.xlu0 %2781, %v2716
        %v2783 = vpop.permute.xlu0 %2782
        %2786 = vset.pattern.permute.xlu0 0
        %2787 = vperm.xlu0 %2786, %v2717
        %v2788 = vpop.permute.xlu0 %2787
        %2791 = vset.pattern.permute.xlu0 0
        %2792 = vperm.xlu0 %2791, %v2718
        %v2793 = vpop.permute.xlu0 %2792
        %2796 = vset.pattern.permute.xlu0 0
        %2797 = vperm.xlu0 %2796, %v2719
        %v2798 = vpop.permute.xlu0 %2797
        %v2800 = vlaneseq
        %v2801 = vshrl.u32 %v2800, 7
        %v2802 = vsub.s32 0, %v2801
        %v2803 = vrot.slane %v2683, %v2802
        %vm2804 = vcmp.gt.f32.partialorder %v2723, %v2803
        %vm2805 = vcmp.gt.f32.partialorder %v2728, %v2803
        %vm2806 = vcmp.gt.f32.partialorder %v2733, %v2803
        %vm2807 = vcmp.gt.f32.partialorder %v2738, %v2803
        %vm2808 = vcmp.gt.f32.partialorder %v2743, %v2803
        %vm2809 = vcmp.gt.f32.partialorder %v2748, %v2803
        %vm2810 = vcmp.gt.f32.partialorder %v2753, %v2803
        %vm2811 = vcmp.gt.f32.partialorder %v2758, %v2803
        %vm2812 = vcmp.gt.f32.partialorder %v2763, %v2803
        %vm2813 = vcmp.gt.f32.partialorder %v2768, %v2803
        %vm2814 = vcmp.gt.f32.partialorder %v2773, %v2803
        %vm2815 = vcmp.gt.f32.partialorder %v2778, %v2803
        %vm2816 = vcmp.gt.f32.partialorder %v2783, %v2803
        %vm2817 = vcmp.gt.f32.partialorder %v2788, %v2803
        %vm2818 = vcmp.gt.f32.partialorder %v2793, %v2803
        %vm2819 = vcmp.gt.f32.partialorder %v2798, %v2803
        %vm2820 = vcmp.eq.f32.partialorder %v2723, %v2803
        %vm2821 = vcmp.eq.f32.partialorder %v2728, %v2803
        %vm2822 = vcmp.eq.f32.partialorder %v2733, %v2803
        %vm2823 = vcmp.eq.f32.partialorder %v2738, %v2803
        %vm2824 = vcmp.eq.f32.partialorder %v2743, %v2803
        %vm2825 = vcmp.eq.f32.partialorder %v2748, %v2803
        %vm2826 = vcmp.eq.f32.partialorder %v2753, %v2803
        %vm2827 = vcmp.eq.f32.partialorder %v2758, %v2803
        %vm2828 = vcmp.eq.f32.partialorder %v2763, %v2803
        %vm2829 = vcmp.eq.f32.partialorder %v2768, %v2803
        %vm2830 = vcmp.eq.f32.partialorder %v2773, %v2803
        %vm2831 = vcmp.eq.f32.partialorder %v2778, %v2803
        %vm2832 = vcmp.eq.f32.partialorder %v2783, %v2803
        %vm2833 = vcmp.eq.f32.partialorder %v2788, %v2803
        %vm2834 = vcmp.eq.f32.partialorder %v2793, %v2803
        %vm2835 = vcmp.eq.f32.partialorder %v2798, %v2803
        %vm2836 = vmand %vm2820, %vm206
        %vm2837 = vmand %vm2821, %vm207
        %vm2838 = vmand %vm2822, %vm208
        %vm2839 = vmand %vm2823, %vm209
        %vm2840 = vmand %vm2824, %vm210
        %vm2841 = vmand %vm2825, %vm211
        %vm2842 = vmand %vm2826, %vm212
        %vm2843 = vmand %vm2827, %vm213
        %vm2844 = vmand %vm2828, %vm214
        %vm2845 = vmand %vm2829, %vm215
        %vm2846 = vmand %vm2830, %vm216
        %vm2847 = vmand %vm2831, %vm217
        %vm2848 = vmand %vm2832, %vm218
        %vm2849 = vmand %vm2833, %vm219
        %vm2850 = vmand %vm2834, %vm220
        %vm2851 = vmand %vm2835, %vm221
        %vm2852 = vmor %vm2804, %vm2836
        %vm2853 = vmor %vm2805, %vm2837
        %vm2854 = vmor %vm2806, %vm2838
        %vm2855 = vmor %vm2807, %vm2839
        %vm2856 = vmor %vm2808, %vm2840
        %vm2857 = vmor %vm2809, %vm2841
        %vm2858 = vmor %vm2810, %vm2842
        %vm2859 = vmor %vm2811, %vm2843
        %vm2860 = vmor %vm2812, %vm2844
        %vm2861 = vmor %vm2813, %vm2845
        %vm2862 = vmor %vm2814, %vm2846
        %vm2863 = vmor %vm2815, %vm2847
        %vm2864 = vmor %vm2816, %vm2848
        %vm2865 = vmor %vm2817, %vm2849
        %vm2866 = vmor %vm2818, %vm2850
        %vm2867 = vmor %vm2819, %vm2851
        %v2868 = vsel %vm2852, 1, 0
        %v2869 = vsel %vm2853, 1, 0
        %v2870 = vsel %vm2854, 1, 0
        %v2871 = vsel %vm2855, 1, 0
        %v2872 = vsel %vm2856, 1, 0
        %v2873 = vsel %vm2857, 1, 0
        %v2874 = vsel %vm2858, 1, 0
        %v2875 = vsel %vm2859, 1, 0
        %v2876 = vsel %vm2860, 1, 0
        %v2877 = vsel %vm2861, 1, 0
        %v2878 = vsel %vm2862, 1, 0
        %v2879 = vsel %vm2863, 1, 0
        %v2880 = vsel %vm2864, 1, 0
        %v2881 = vsel %vm2865, 1, 0
        %v2882 = vsel %vm2866, 1, 0
        %v2883 = vsel %vm2867, 1, 0
        %v2884 = vadd.s32 %v2868, %v2872
        %v2885 = vadd.s32 %v2869, %v2873
        %v2886 = vadd.s32 %v2870, %v2874
        %v2887 = vadd.s32 %v2871, %v2875
        %v2888 = vadd.s32 %v2884, %v2876
        %v2889 = vadd.s32 %v2885, %v2877
        %v2890 = vadd.s32 %v2886, %v2878
        %v2891 = vadd.s32 %v2887, %v2879
        %v2892 = vadd.s32 %v2888, %v2880
        %v2893 = vadd.s32 %v2889, %v2881
        %v2894 = vadd.s32 %v2890, %v2882
        %v2895 = vadd.s32 %v2891, %v2883
        %v2896 = vadd.s32 %v2892, %v2893
        %v2897 = vadd.s32 %v2894, %v2895
        %v2898 = vadd.s32 %v2896, %v2897
        %v2899 = vrot.slane %v2898, 4
        %v2900 = vadd.s32 %v2898, %v2899
        %v2901 = vrot.slane %v2900, 2
        %v2902 = vadd.s32 %v2900, %v2901
        %v2903 = vrot.slane %v2902, 1
        %v2904 = vadd.s32 %v2902, %v2903
        %vm2905 = vcmp.lt.s32.totalorder %v2904, 10
        %v2906 = vsel %vm2905, 1, 0
        %v2907 = vcvt.s32.f32 %v2906
        %s2908 = scalar_lea.vmem %s184, 14
        %v2909 = vld [vmem:[%s2908] sm:$0x3]
        %s2910 = scalar_lea.vmem %s153, 896 [#allocation2]
        %v2911 = vld [vmem:[%s2910] sm:$0xff]
        %v2912 = vld [vmem:[%s2910 + $0x8] sm:$0xff]
        %v2913 = vld [vmem:[%s2910 + $0x10] sm:$0xff]
        %v2914 = vld [vmem:[%s2910 + $0x18] sm:$0xff]
        %v2915 = vld [vmem:[%s2910 + $0x20] sm:$0xff]
        %v2916 = vld [vmem:[%s2910 + $0x28] sm:$0xff]
        %v2917 = vld [vmem:[%s2910 + $0x30] sm:$0xff]
        %v2918 = vld [vmem:[%s2910 + $0x38] sm:$0xff]
        %v2919 = vld [vmem:[%s2910 + $0x40] sm:$0xff]
        %v2920 = vld [vmem:[%s2910 + $0x48] sm:$0xff]
        %v2921 = vld [vmem:[%s2910 + $0x50] sm:$0xff]
        %v2922 = vld [vmem:[%s2910 + $0x58] sm:$0xff]
        %v2923 = vld [vmem:[%s2910 + $0x60] sm:$0xff]
        %v2924 = vld [vmem:[%s2910 + $0x68] sm:$0xff]
        %v2925 = vld [vmem:[%s2910 + $0x70] sm:$0xff]
        %v2926 = vld [vmem:[%s2910 + $0x78] sm:$0xff]
        %v2929 = vunpack.c.l.s4 1966171168
        %v2930 = vunpack.c.0.s8 %v2929
        %v2931 = vlaneseq
        %v2932 = vshrl.u32 %v2931, 7
        %v2933 = vsub.s32 %v2930, %v2932
        %v2934 = vrot.slane %v2909, %v2933
        %v2935 = vcombine.high %v2934, %v2934
        %v2937 = vunpack.c.l.s4 1966171168
        %v2938 = vunpack.c.0.s8 %v2937
        %v2939 = vlaneseq
        %v2940 = vshrl.u32 %v2939, 7
        %v2941 = vsub.s32 %v2938, %v2940
        %v2942 = vrot.slane %v2934, %v2941
        %v2944 = vunpack.c.l.s4 1966171168
        %v2945 = vunpack.c.0.s8 %v2944
        %v2946 = vlaneseq
        %v2947 = vshrl.u32 %v2946, 7
        %v2948 = vsub.s32 %v2945, %v2947
        %v2949 = vrot.slane %v2935, %v2948
        %v2968 = vunpack.c.l.b16 %v2911
        %v2969 = vunpack.c.h.b16 %v2911
        %v2970 = vunpack.c.l.b16 %v2912
        %v2971 = vunpack.c.h.b16 %v2912
        %v2972 = vunpack.c.l.b16 %v2913
        %v2973 = vunpack.c.h.b16 %v2913
        %v2974 = vunpack.c.l.b16 %v2914
        %v2975 = vunpack.c.h.b16 %v2914
        %v2976 = vunpack.c.l.b16 %v2915
        %v2977 = vunpack.c.h.b16 %v2915
        %v2978 = vunpack.c.l.b16 %v2916
        %v2979 = vunpack.c.h.b16 %v2916
        %v2980 = vunpack.c.l.b16 %v2917
        %v2981 = vunpack.c.h.b16 %v2917
        %v2982 = vunpack.c.l.b16 %v2918
        %v2983 = vunpack.c.h.b16 %v2918
        %v2984 = vunpack.c.l.b16 %v2919
        %v2985 = vunpack.c.h.b16 %v2919
        %v2986 = vunpack.c.l.b16 %v2920
        %v2987 = vunpack.c.h.b16 %v2920
        %v2988 = vunpack.c.l.b16 %v2921
        %v2989 = vunpack.c.h.b16 %v2921
        %v2990 = vunpack.c.l.b16 %v2922
        %v2991 = vunpack.c.h.b16 %v2922
        %v2992 = vunpack.c.l.b16 %v2923
        %v2993 = vunpack.c.h.b16 %v2923
        %v2994 = vunpack.c.l.b16 %v2924
        %v2995 = vunpack.c.h.b16 %v2924
        %v2996 = vunpack.c.l.b16 %v2925
        %v2997 = vunpack.c.h.b16 %v2925
        %v2998 = vunpack.c.l.b16 %v2926
        %v2999 = vunpack.c.h.b16 %v2926
        %v3000 = vpack.c.b16 %v2970, %v2968
        %v3001 = vpack.c.b16 %v2971, %v2969
        %v3002 = vpack.c.b16 %v2974, %v2972
        %v3003 = vpack.c.b16 %v2975, %v2973
        %v3004 = vpack.c.b16 %v2978, %v2976
        %v3005 = vpack.c.b16 %v2979, %v2977
        %v3006 = vpack.c.b16 %v2982, %v2980
        %v3007 = vpack.c.b16 %v2983, %v2981
        %v3008 = vpack.c.b16 %v2986, %v2984
        %v3009 = vpack.c.b16 %v2987, %v2985
        %v3010 = vpack.c.b16 %v2990, %v2988
        %v3011 = vpack.c.b16 %v2991, %v2989
        %v3012 = vpack.c.b16 %v2994, %v2992
        %v3013 = vpack.c.b16 %v2995, %v2993
        %v3014 = vpack.c.b16 %v2998, %v2996
        %v3015 = vpack.c.b16 %v2999, %v2997
        %3032 = vmatprep.subr.bf16.mxu0 %v3001
        %3033 = vmatpush1.bf16.xpose.msra.mxu0 %v3000
        %3034 = vmatprep.subr.bf16.mxu0 %v3003
        %3035 = vmatpush1.bf16.xpose.msra.mxu0 %v3002
        %3036 = vmatprep.subr.bf16.mxu0 %v3005
        %3037 = vmatpush1.bf16.xpose.msra.mxu0 %v3004
        %3038 = vmatprep.subr.bf16.mxu0 %v3007
        %3039 = vmatpush1.bf16.xpose.msra.mxu0 %v3006
        %3040 = vmatprep.subr.bf16.mxu0 %v3009
        %3041 = vmatpush1.bf16.xpose.msra.mxu0 %v3008
        %3042 = vmatprep.subr.bf16.mxu0 %v3011
        %3043 = vmatpush1.bf16.xpose.msra.mxu0 %v3010
        %3044 = vmatprep.subr.bf16.mxu0 %v3013
        %3045 = vmatpush1.bf16.xpose.msra.mxu0 %v3012
        %3046 = vmatprep.subr.bf16.mxu0 %v3015
        %3047 = vmatpush1.bf16.xpose.msra.mxu0 %v3014
        %3048 = vmatprep.subr.bf16.mxu0 0
        %3049 = vmatpush1.bf16.xpose.msra.mxu0 0
        %3050 = vmatprep.subr.bf16.mxu0 0
        %3051 = vmatpush1.bf16.xpose.msra.mxu0 0
        %3052 = vmatprep.subr.bf16.mxu0 0
        %3053 = vmatpush1.bf16.xpose.msra.mxu0 0
        %3054 = vmatprep.subr.bf16.mxu0 0
        %3055 = vmatpush1.bf16.xpose.msra.mxu0 0
        %3056 = vmatprep.subr.bf16.mxu0 0
        %3057 = vmatpush1.bf16.xpose.msra.mxu0 0
        %3058 = vmatprep.subr.bf16.mxu0 0
        %3059 = vmatpush1.bf16.xpose.msra.mxu0 0
        %3060 = vmatprep.subr.bf16.mxu0 0
        %3061 = vmatpush1.bf16.xpose.msra.mxu0 0
        %3062 = vmatprep.subr.bf16.mxu0 0
        %3063 = vmatpush1.bf16.xpose.msra.mxu0 0
        %3064 = vmatprep.mubr.bf16.mxu0 %v2949
        %3065 = vmatmul.mubr.bf16.gmra.mrb[0].mxu0 %v2942
        %v3066 = vpop.f32.mrb[0].mxu0
        %v3067 = vadd.f32 0.0, %v3066
        %v3068 = vpop.f32.mrb[0].mxu0
        %v3069 = vpop.f32.mrb[0].mxu0
        %v3070 = vpop.f32.mrb[0].mxu0
        %3071 = vdwg.mxu0
        %3072 = vxpose.xlu0.b32.start [1/16] %v3067, 128
        %3073 = vxpose.xlu0.b32.cont [2/16] 0.0, 128
        %3074 = vxpose.xlu0.b32.cont [3/16] 0.0, 128
        %3075 = vxpose.xlu0.b32.cont [4/16] 0.0, 128
        %3076 = vxpose.xlu0.b32.cont [5/16] 0.0, 128
        %3077 = vxpose.xlu0.b32.cont [6/16] 0.0, 128
        %3078 = vxpose.xlu0.b32.cont [7/16] 0.0, 128
        %3079 = vxpose.xlu0.b32.cont [8/16] 0.0, 128
        %3080 = vxpose.xlu0.b32.cont [9/16] 0.0, 128
        %3081 = vxpose.xlu0.b32.cont [10/16] 0.0, 128
        %3082 = vxpose.xlu0.b32.cont [11/16] 0.0, 128
        %3083 = vxpose.xlu0.b32.cont [12/16] 0.0, 128
        %3084 = vxpose.xlu0.b32.cont [13/16] 0.0, 128
        %3085 = vxpose.xlu0.b32.cont [14/16] 0.0, 128
        %3086 = vxpose.xlu0.b32.cont [15/16] 0.0, 128
        %3087 = vxpose.xlu0.b32.end [16/16] 0.0, 128
        %v3088 = vpop.trf.xlu0
        %v3089 = vpop.trf.xlu0
        %v3090 = vpop.trf.xlu0
        %v3091 = vpop.trf.xlu0
        %v3092 = vpop.trf.xlu0
        %v3093 = vpop.trf.xlu0
        %v3094 = vpop.trf.xlu0
        %v3095 = vpop.trf.xlu0
        %v3096 = vpop.trf.xlu0
        %v3097 = vpop.trf.xlu0
        %v3098 = vpop.trf.xlu0
        %v3099 = vpop.trf.xlu0
        %v3100 = vpop.trf.xlu0
        %v3101 = vpop.trf.xlu0
        %v3102 = vpop.trf.xlu0
        %v3103 = vpop.trf.xlu0
        %3105 = vset.pattern.permute.xlu0 0
        %3106 = vperm.xlu0 %3105, %v3088
        %v3107 = vpop.permute.xlu0 %3106
        %3110 = vset.pattern.permute.xlu0 0
        %3111 = vperm.xlu0 %3110, %v3089
        %v3112 = vpop.permute.xlu0 %3111
        %3115 = vset.pattern.permute.xlu0 0
        %3116 = vperm.xlu0 %3115, %v3090
        %v3117 = vpop.permute.xlu0 %3116
        %3120 = vset.pattern.permute.xlu0 0
        %3121 = vperm.xlu0 %3120, %v3091
        %v3122 = vpop.permute.xlu0 %3121
        %3125 = vset.pattern.permute.xlu0 0
        %3126 = vperm.xlu0 %3125, %v3092
        %v3127 = vpop.permute.xlu0 %3126
        %3130 = vset.pattern.permute.xlu0 0
        %3131 = vperm.xlu0 %3130, %v3093
        %v3132 = vpop.permute.xlu0 %3131
        %3135 = vset.pattern.permute.xlu0 0
        %3136 = vperm.xlu0 %3135, %v3094
        %v3137 = vpop.permute.xlu0 %3136
        %3140 = vset.pattern.permute.xlu0 0
        %3141 = vperm.xlu0 %3140, %v3095
        %v3142 = vpop.permute.xlu0 %3141
        %3145 = vset.pattern.permute.xlu0 0
        %3146 = vperm.xlu0 %3145, %v3096
        %v3147 = vpop.permute.xlu0 %3146
        %3150 = vset.pattern.permute.xlu0 0
        %3151 = vperm.xlu0 %3150, %v3097
        %v3152 = vpop.permute.xlu0 %3151
        %3155 = vset.pattern.permute.xlu0 0
        %3156 = vperm.xlu0 %3155, %v3098
        %v3157 = vpop.permute.xlu0 %3156
        %3160 = vset.pattern.permute.xlu0 0
        %3161 = vperm.xlu0 %3160, %v3099
        %v3162 = vpop.permute.xlu0 %3161
        %3165 = vset.pattern.permute.xlu0 0
        %3166 = vperm.xlu0 %3165, %v3100
        %v3167 = vpop.permute.xlu0 %3166
        %3170 = vset.pattern.permute.xlu0 0
        %3171 = vperm.xlu0 %3170, %v3101
        %v3172 = vpop.permute.xlu0 %3171
        %3175 = vset.pattern.permute.xlu0 0
        %3176 = vperm.xlu0 %3175, %v3102
        %v3177 = vpop.permute.xlu0 %3176
        %3180 = vset.pattern.permute.xlu0 0
        %3181 = vperm.xlu0 %3180, %v3103
        %v3182 = vpop.permute.xlu0 %3181
        %v3184 = vlaneseq
        %v3185 = vshrl.u32 %v3184, 7
        %v3186 = vsub.s32 0, %v3185
        %v3187 = vrot.slane %v3067, %v3186
        %vm3188 = vcmp.gt.f32.partialorder %v3107, %v3187
        %vm3189 = vcmp.gt.f32.partialorder %v3112, %v3187
        %vm3190 = vcmp.gt.f32.partialorder %v3117, %v3187
        %vm3191 = vcmp.gt.f32.partialorder %v3122, %v3187
        %vm3192 = vcmp.gt.f32.partialorder %v3127, %v3187
        %vm3193 = vcmp.gt.f32.partialorder %v3132, %v3187
        %vm3194 = vcmp.gt.f32.partialorder %v3137, %v3187
        %vm3195 = vcmp.gt.f32.partialorder %v3142, %v3187
        %vm3196 = vcmp.gt.f32.partialorder %v3147, %v3187
        %vm3197 = vcmp.gt.f32.partialorder %v3152, %v3187
        %vm3198 = vcmp.gt.f32.partialorder %v3157, %v3187
        %vm3199 = vcmp.gt.f32.partialorder %v3162, %v3187
        %vm3200 = vcmp.gt.f32.partialorder %v3167, %v3187
        %vm3201 = vcmp.gt.f32.partialorder %v3172, %v3187
        %vm3202 = vcmp.gt.f32.partialorder %v3177, %v3187
        %vm3203 = vcmp.gt.f32.partialorder %v3182, %v3187
        %vm3204 = vcmp.eq.f32.partialorder %v3107, %v3187
        %vm3205 = vcmp.eq.f32.partialorder %v3112, %v3187
        %vm3206 = vcmp.eq.f32.partialorder %v3117, %v3187
        %vm3207 = vcmp.eq.f32.partialorder %v3122, %v3187
        %vm3208 = vcmp.eq.f32.partialorder %v3127, %v3187
        %vm3209 = vcmp.eq.f32.partialorder %v3132, %v3187
        %vm3210 = vcmp.eq.f32.partialorder %v3137, %v3187
        %vm3211 = vcmp.eq.f32.partialorder %v3142, %v3187
        %vm3212 = vcmp.eq.f32.partialorder %v3147, %v3187
        %vm3213 = vcmp.eq.f32.partialorder %v3152, %v3187
        %vm3214 = vcmp.eq.f32.partialorder %v3157, %v3187
        %vm3215 = vcmp.eq.f32.partialorder %v3162, %v3187
        %vm3216 = vcmp.eq.f32.partialorder %v3167, %v3187
        %vm3217 = vcmp.eq.f32.partialorder %v3172, %v3187
        %vm3218 = vcmp.eq.f32.partialorder %v3177, %v3187
        %vm3219 = vcmp.eq.f32.partialorder %v3182, %v3187
        %vm3220 = vmand %vm3204, %vm206
        %vm3221 = vmand %vm3205, %vm207
        %vm3222 = vmand %vm3206, %vm208
        %vm3223 = vmand %vm3207, %vm209
        %vm3224 = vmand %vm3208, %vm210
        %vm3225 = vmand %vm3209, %vm211
        %vm3226 = vmand %vm3210, %vm212
        %vm3227 = vmand %vm3211, %vm213
        %vm3228 = vmand %vm3212, %vm214
        %vm3229 = vmand %vm3213, %vm215
        %vm3230 = vmand %vm3214, %vm216
        %vm3231 = vmand %vm3215, %vm217
        %vm3232 = vmand %vm3216, %vm218
        %vm3233 = vmand %vm3217, %vm219
        %vm3234 = vmand %vm3218, %vm220
        %vm3235 = vmand %vm3219, %vm221
        %vm3236 = vmor %vm3188, %vm3220
        %vm3237 = vmor %vm3189, %vm3221
        %vm3238 = vmor %vm3190, %vm3222
        %vm3239 = vmor %vm3191, %vm3223
        %vm3240 = vmor %vm3192, %vm3224
        %vm3241 = vmor %vm3193, %vm3225
        %vm3242 = vmor %vm3194, %vm3226
        %vm3243 = vmor %vm3195, %vm3227
        %vm3244 = vmor %vm3196, %vm3228
        %vm3245 = vmor %vm3197, %vm3229
        %vm3246 = vmor %vm3198, %vm3230
        %vm3247 = vmor %vm3199, %vm3231
        %vm3248 = vmor %vm3200, %vm3232
        %vm3249 = vmor %vm3201, %vm3233
        %vm3250 = vmor %vm3202, %vm3234
        %vm3251 = vmor %vm3203, %vm3235
        %v3252 = vsel %vm3236, 1, 0
        %v3253 = vsel %vm3237, 1, 0
        %v3254 = vsel %vm3238, 1, 0
        %v3255 = vsel %vm3239, 1, 0
        %v3256 = vsel %vm3240, 1, 0
        %v3257 = vsel %vm3241, 1, 0
        %v3258 = vsel %vm3242, 1, 0
        %v3259 = vsel %vm3243, 1, 0
        %v3260 = vsel %vm3244, 1, 0
        %v3261 = vsel %vm3245, 1, 0
        %v3262 = vsel %vm3246, 1, 0
        %v3263 = vsel %vm3247, 1, 0
        %v3264 = vsel %vm3248, 1, 0
        %v3265 = vsel %vm3249, 1, 0
        %v3266 = vsel %vm3250, 1, 0
        %v3267 = vsel %vm3251, 1, 0
        %v3268 = vadd.s32 %v3252, %v3256
        %v3269 = vadd.s32 %v3253, %v3257
        %v3270 = vadd.s32 %v3254, %v3258
        %v3271 = vadd.s32 %v3255, %v3259
        %v3272 = vadd.s32 %v3268, %v3260
        %v3273 = vadd.s32 %v3269, %v3261
        %v3274 = vadd.s32 %v3270, %v3262
        %v3275 = vadd.s32 %v3271, %v3263
        %v3276 = vadd.s32 %v3272, %v3264
        %v3277 = vadd.s32 %v3273, %v3265
        %v3278 = vadd.s32 %v3274, %v3266
        %v3279 = vadd.s32 %v3275, %v3267
        %v3280 = vadd.s32 %v3276, %v3277
        %v3281 = vadd.s32 %v3278, %v3279
        %v3282 = vadd.s32 %v3280, %v3281
        %v3283 = vrot.slane %v3282, 4
        %v3284 = vadd.s32 %v3282, %v3283
        %v3285 = vrot.slane %v3284, 2
        %v3286 = vadd.s32 %v3284, %v3285
        %v3287 = vrot.slane %v3286, 1
        %v3288 = vadd.s32 %v3286, %v3287
        %vm3289 = vcmp.lt.s32.totalorder %v3288, 10
        %v3290 = vsel %vm3289, 1, 0
        %v3291 = vcvt.s32.f32 %v3290
        %vm3292 = vcmask 1040384
        %v3293 = vsel %vm3292, %v603, %v987
        %vm3294 = vcmask 1041408
        %v3295 = vsel %vm3294, %v3293, %v1371
        %vm3296 = vcmask 1042432
        %v3297 = vsel %vm3296, %v3295, %v1755
        %vm3298 = vcmask 1043456
        %v3299 = vsel %vm3298, %v3297, %v2139
        %vm3300 = vcmask 1044480
        %v3301 = vsel %vm3300, %v3299, %v2523
        %vm3302 = vcmask 1045504
        %v3303 = vsel %vm3302, %v3301, %v2907
        %vm3304 = vcmask 1046528
        %v3305 = vsel %vm3304, %v3303, %v3291
        %3306 = vst [vmem:[%s178] sm:$0xff] %v3305
        %s3307 = sand.u32 %s79, 1
        %s3308 = scalar_lea.sflag [#allocation4], %s3307
        %s3309 = sand.u32 %s79, 1
        %s3310 = smul.addr %s3309, 8
        %s3311 = scalar_lea.vmem [#allocation5], %s3310
        // Predicated region
        $region33: #{tpu_custom_call.1} parent=27 // pred_check
          %p3312 = pneg %p89
        $region34: #{tpu_custom_call.1} parent=27 // pred_check_branch
          %3314 = sbr.rel (%p3312) target = $region36
        $region35: #{tpu_custom_call.1} parent=27 // pred_region
          %s3316 = ssub.s32 128, 128
          %3317 = vsyncadd %s3308, %s3316
          %s3318 = smul.addr %s19, 128
          %s3319 = scalar_lea.hbm %s2, %s3318
          %s3321 = sshll.u32 %s3311, 4
          %s3322 = int_to_ptr.vmem [resolvable:$true] %s3321
          %3324 = dma.vmem_to_hbm [thread:$0]  %s3322, 128, %s3319, %s3308
        $region36: #{tpu_custom_call.1} parent=27 // pred_fallthru
          _
      $region28: #{tpu_custom_call.1} parent=5 // pred_fallthru
        _
      %p3325 = scmp.le.s32.totalorder 2, %s14
      // Predicated region
      $region37: #{tpu_custom_call.1} parent=5 // pred_check
        %p3326 = pneg %p3325
      $region38: #{tpu_custom_call.1} parent=5 // pred_check_branch
        %3328 = sbr.rel (%p3326) target = $region40
      $region39: #{tpu_custom_call.1} parent=5 // pred_region
        %s3329 = ssub.s32 %s14, 2
        // Predicated region
        $region41: #{tpu_custom_call.1} parent=39 // pred_check
          %p3330 = pneg %p95
        $region42: #{tpu_custom_call.1} parent=39 // pred_check_branch
          %3332 = sbr.rel (%p3330) target = $region44
        $region43: #{tpu_custom_call.1} parent=39 // pred_region
          %s3333 = sand.u32 %s80, 1
          %s3334 = scalar_lea.sflag [#allocation4], %s3333
          %s3335 = sand.u32 %s80, 1
          %s3336 = smul.addr %s3335, 8
          %s3337 = scalar_lea.vmem [#allocation5], %s3336
          %3338 = dma.done %s3334, 128
        $region44: #{tpu_custom_call.1} parent=39 // pred_fallthru
          _
      $region40: #{tpu_custom_call.1} parent=5 // pred_fallthru
        _
    $region6: #{tpu_custom_call.1} parent=1 // loop_footer
      %s18 = sadd.s32 1, %s14
    $region7: #{tpu_custom_call.1} parent=1 // loop_footer_branch
      %13 = sbr.rel target = $region3
    $region8: #{tpu_custom_call.1} parent=1 // loop_exit
      _
    %3339 = vsyncpa [#allocation3], 1
    %s3340 = scalar_lea.sflag [#allocation3], 1
    %3341 = vsyncpa %s3340, 1
    %3342 = vsyncpa [#allocation4], 1
    %s3343 = scalar_lea.sflag [#allocation4], 1
    %3344 = vsyncpa %s3343, 1

</llo_original>
